<compile_context>
chip_gen: v7x
topology: tpu7x:2x2x1
jax: 0.10.0
libtpu: 0.0.40
codegen_flags: <defaults>
</compile_context>

<pallas_src>
import math
import functools

import jax
import jax.numpy as jnp
import numpy as np
from jax import lax
from jax.experimental import pallas as pl
from jax.experimental.pallas import tpu as pltpu


COMPUTE_DTYPE = jnp.bfloat16     # MXU operand dtype; accumulation is always f32
GA_SCALE = 256.0                 # reference GroupAttention hardcodes d_model = 256.

WEIGHT_NAMES = (
    "ga_na", "ga_nb", "ga_wk", "ga_bk", "ga_wq", "ga_bq",
    "n1a", "n1b",
    "wq", "bq", "wk", "bk", "wv", "bv", "wo", "bo",
    "n2a", "n2b",
    "w1", "b1", "w2", "b2",
)
MATRIX_NAMES = frozenset({"ga_wk", "ga_wq", "wq", "wk", "wv", "wo", "w1", "w2"})


# ----------------------------- in-kernel helpers -----------------------------

def _layernorm(x, a, b, eps=1e-6):
    """Tree-Transformer LayerNorm: torch unbiased std, a*(x-mean)/(std+eps)+b."""
    mean = jnp.mean(x, axis=-1, keepdims=True)
    diff = x - mean
    var = jnp.sum(diff * diff, axis=-1, keepdims=True) / (x.shape[-1] - 1)
    std = jnp.sqrt(var)
    return a * diff / (std + eps) + b


def _softmax(x):
    m = jnp.max(x, axis=-1, keepdims=True)
    e = jnp.exp(x - m)
    return e * pl.reciprocal(jnp.sum(e, axis=-1, keepdims=True), approx=True)


# ----------------------------- fused encoder kernel --------------------------

def _encoder_stack_kernel(
    x_ref, pe_ref, mask_ref,
    ga_na, ga_nb, ga_wk, ga_bk, ga_wq, ga_bq,
    n1a, n1b,
    wq, bq, wk, bk, wv, bv, wo, bo,
    n2a, n2b,
    w1, b1, w2, b2,
    fin_a, fin_b,
    o_ref,
    x_sc, gp_sc,
    *, n_heads):
    layer = pl.program_id(1)
    n_layers = pl.num_programs(1)
    S, D = x_sc.shape
    d_k = D // n_heads
    cdt = COMPUTE_DTYPE

    @pl.when(layer == 0)
    def _():
        # x = inputs + pos_emb.pe[:, :n_sents]; group_prob starts at 0.0
        x_sc[...] = x_ref[0] + pe_ref[0]
        gp_sc[...] = jnp.zeros_like(gp_sc)

    x = x_sc[...]                          # [S, D] running activation (f32)
    prior = gp_sc[...]                     # [S, S] previous layer group_prob
    key_mask = mask_ref[0] > 0.0           # [1, S] bool (valid key positions)

    row = lax.broadcasted_iota(jnp.int32, (S, S), 0)
    col = lax.broadcasted_iota(jnp.int32, (S, S), 1)
    adj = jnp.abs(row - col) == 1          # a + c  (|i-j| == 1)
    a_sup = col == row + 1                 # torch.diag(ones, 1)
    diag = row == col                      # torch.diag(ones)
    tri = (col >= row).astype(jnp.float32)  # triu(ones, diagonal=0)
    strict_upper = col > row

    # ---------------- GroupAttention (constituent prior) ----------------
    h = _layernorm(x, ga_na[0], ga_nb[0])
    h_c = h.astype(cdt)
    k_g = jnp.dot(h_c, ga_wk[0], preferred_element_type=jnp.float32) + ga_bk[0]
    q_g = jnp.dot(h_c, ga_wq[0], preferred_element_type=jnp.float32) + ga_bq[0]
    scores = lax.dot_general(q_g, k_g, (((1,), (1,)), ((), ())),
                             preferred_element_type=jnp.float32) / GA_SCALE
    scores = jnp.where(adj & key_mask, scores, -1e9)
    neibor = _softmax(scores)
    neibor = jnp.sqrt(neibor * neibor.T + 1e-9)
    neibor = prior + (1.0 - prior) * neibor

    t = jnp.where(a_sup, jnp.log(neibor + 1e-9), 0.0)
    t = jnp.dot(t, tri, preferred_element_type=jnp.float32)
    g = jnp.exp(jnp.dot(tri, t, preferred_element_type=jnp.float32))
    g = jnp.where(strict_upper, g, 0.0)
    group_prob = g + g.T + jnp.where(diag, neibor, 1e-9)

    # ---------------- multi-head self-attention sublayer ----------------
    xn = _layernorm(x, n1a[0], n1b[0])
    xn_c = xn.astype(cdt)
    q_all = jnp.dot(xn_c, wq[0], preferred_element_type=jnp.float32) + bq[0]
    k_all = jnp.dot(xn_c, wk[0], preferred_element_type=jnp.float32) + bk[0]
    v_all = jnp.dot(xn_c, wv[0], preferred_element_type=jnp.float32) + bv[0]

    inv_sqrt_dk = 1.0 / math.sqrt(d_k)
    ctx_heads = []
    for hd in range(n_heads):               # static, unrolled head loop
        sl = slice(hd * d_k, (hd + 1) * d_k)
        qh, kh, vh = q_all[:, sl], k_all[:, sl], v_all[:, sl]
        sc = lax.dot_general(qh.astype(cdt), kh.astype(cdt),
                             (((1,), (1,)), ((), ())),
                             preferred_element_type=jnp.float32) * inv_sqrt_dk
        sc = jnp.where(key_mask, sc, -1e9)
        p = _softmax(sc) * group_prob       # tree constraint: p_attn * group_prob
        ctx_heads.append(jnp.dot(p.astype(cdt), vh.astype(cdt),
                                 preferred_element_type=jnp.float32))
    ctx = jnp.concatenate(ctx_heads, axis=-1)          # [S, D]
    attn_out = jnp.dot(ctx.astype(cdt), wo[0],          # one full [S,D]@[D,D]
                       preferred_element_type=jnp.float32) + bo[0]
    x = x + attn_out                         # residual (dropout is eval no-op)

    # ---------------- position-wise feed-forward sublayer ----------------
    xn2 = _layernorm(x, n2a[0], n2b[0])
    ff = jnp.dot(xn2.astype(cdt), w1[0], preferred_element_type=jnp.float32) + b1[0]
    ff = jnp.maximum(ff, 0.0)
    ff = jnp.dot(ff.astype(cdt), w2[0], preferred_element_type=jnp.float32) + b2[0]
    x = x + ff

    x_sc[...] = x
    gp_sc[...] = group_prob

    @pl.when(layer == n_layers - 1)
    def _():
        o_ref[0] = _layernorm(x, fin_a[...], fin_b[...])   # final Encoder.norm


# ----------------------------- wrapper ---------------------------------------

def _stacked_spec(arr):
    nd = arr.ndim
    blk = (1,) + arr.shape[1:]
    return pl.BlockSpec(blk, lambda b, l, _nd=nd: (l,) + (0,) * (_nd - 1))


def _const_spec(arr):
    nd = arr.ndim
    return pl.BlockSpec(arr.shape, lambda b, l, _nd=nd: (0,) * _nd)


def encoder_forward(x, mask, layer_params, final_a, final_b, pe, *, n_heads):
    B, S, D = x.shape
    n_layers = len(layer_params)

    # Stack per-layer weights on a leading layer axis; matrices go to bf16.
    stacked = []
    for name in WEIGHT_NAMES:
        a = jnp.stack([p[name] for p in layer_params], axis=0)
        if name in MATRIX_NAMES:
            a = a.astype(COMPUTE_DTYPE)
        stacked.append(a)

    pe_s = pe[:, :S]                         # pos_emb.pe[:, :n_sents]

    in_specs = [
        pl.BlockSpec((1, S, D), lambda b, l: (b, 0, 0)),   # x (constant over l)
        pl.BlockSpec((1, S, D), lambda b, l: (0, 0, 0)),   # positional encoding
        pl.BlockSpec((1, 1, S), lambda b, l: (b, 0, 0)),   # mask
    ]
    in_specs += [_stacked_spec(a) for a in stacked]        # per-layer weights
    in_specs += [_const_spec(final_a), _const_spec(final_b)]

    kernel = functools.partial(_encoder_stack_kernel, n_heads=n_heads)

    # TODO(synk): for production d_model/S on v7x, additionally tile attention
    # over query rows and single-buffer the constant-index weight specs.
    out = pl.pallas_call(
        kernel,
        grid=(B, n_layers),
        in_specs=in_specs,
        out_specs=pl.BlockSpec((1, S, D), lambda b, l: (b, 0, 0)),
        out_shape=jax.ShapeDtypeStruct((B, S, D), jnp.float32),
        scratch_shapes=[pltpu.VMEM((S, D), jnp.float32),   # running x
                        pltpu.VMEM((S, S), jnp.float32)],  # running group_prob
        compiler_params=pltpu.CompilerParams(
            dimension_semantics=("parallel", "arbitrary"),
            vmem_limit_bytes=64 * 1024 * 1024,
        ),
    )(x, pe_s, mask, *stacked, final_a, final_b)

    break_probs = []      # reference forward() returns an empty list
    return out, break_probs


# ----------------------------- parameter setup --------------------------------

def make_positional_encoding(max_len, d_model):
    position = np.arange(max_len, dtype=np.float32)[:, None]
    div_term = np.exp(np.arange(0, d_model, 2, dtype=np.float32)
                      * -(math.log(10000.0) / d_model))
    pe = np.zeros((max_len, d_model), np.float32)
    pe[:, 0::2] = np.sin(position * div_term)
    pe[:, 1::2] = np.cos(position * div_term)
    return jnp.asarray(pe[None])                      # [1, max_len, d_model]


def init_layer_params(key, d_model, d_ff):
    ks = jax.random.split(key, 8)

    def lin(k, din, dout):
        return jax.random.normal(k, (din, dout), jnp.float32) / math.sqrt(din)

    ones = lambda n: jnp.ones((1, n), jnp.float32)
    zeros = lambda n: jnp.zeros((1, n), jnp.float32)
    return {
        "ga_na": ones(d_model), "ga_nb": zeros(d_model),
        "ga_wk": lin(ks[0], d_model, d_model), "ga_bk": zeros(d_model),
        "ga_wq": lin(ks[1], d_model, d_model), "ga_bq": zeros(d_model),
        "n1a": ones(d_model), "n1b": zeros(d_model),
        "wq": lin(ks[2], d_model, d_model), "bq": zeros(d_model),
        "wk": lin(ks[3], d_model, d_model), "bk": zeros(d_model),
        "wv": lin(ks[4], d_model, d_model), "bv": zeros(d_model),
        "wo": lin(ks[5], d_model, d_model), "bo": zeros(d_model),
        "n2a": ones(d_model), "n2b": zeros(d_model),
        "w1": lin(ks[6], d_model, d_ff), "b1": zeros(d_ff),
        "w2": lin(ks[7], d_ff, d_model), "b2": zeros(d_model),
    }


# ----------------------------- main --------------------------------------------

if __name__ == "__main__":
    B, S, D, H, DFF, N_LAYERS = 2, 8, 32, 4, 64, 2

    root = jax.random.PRNGKey(0)
    kx, *kl = jax.random.split(root, N_LAYERS + 1)

    x = jax.random.normal(kx, (B, S, D), jnp.float32)
    lengths = jnp.array([S, S - 2], dtype=jnp.int32)
    mask = (jnp.arange(S)[None, :] < lengths[:, None]).astype(jnp.float32)[:, None, :]  # [B,1,S]

    layer_params = [init_layer_params(k, D, DFF) for k in kl]
    final_a = jnp.ones((1, D), jnp.float32)
    final_b = jnp.zeros((1, D), jnp.float32)
    pe = make_positional_encoding(64, D)

    out, break_probs = encoder_forward(x, mask, layer_params, final_a, final_b, pe, n_heads=H)
    out = jax.block_until_ready(out)

    assert out.shape == (B, S, D)
    assert bool(jnp.all(jnp.isfinite(out)))
    assert break_probs == []
    print("KERNEL_OK")
</pallas_src>

<mosaic_0001>
module attributes {stable_mosaic.version = 11 : i64} {
  func.func @_encoder_stack_kernel(%arg0: i32, %arg1: i32, %arg2: memref<1x8x32xf32, #tpu.memory_space<vmem>>, %arg3: memref<1x8x32xf32, #tpu.memory_space<vmem>>, %arg4: memref<1x1x8xf32, #tpu.memory_space<vmem>>, %arg5: memref<1x1x32xf32, #tpu.memory_space<vmem>>, %arg6: memref<1x1x32xf32, #tpu.memory_space<vmem>>, %arg7: memref<1x32x32xbf16, #tpu.memory_space<vmem>>, %arg8: memref<1x1x32xf32, #tpu.memory_space<vmem>>, %arg9: memref<1x32x32xbf16, #tpu.memory_space<vmem>>, %arg10: memref<1x1x32xf32, #tpu.memory_space<vmem>>, %arg11: memref<1x1x32xf32, #tpu.memory_space<vmem>>, %arg12: memref<1x1x32xf32, #tpu.memory_space<vmem>>, %arg13: memref<1x32x32xbf16, #tpu.memory_space<vmem>>, %arg14: memref<1x1x32xf32, #tpu.memory_space<vmem>>, %arg15: memref<1x32x32xbf16, #tpu.memory_space<vmem>>, %arg16: memref<1x1x32xf32, #tpu.memory_space<vmem>>, %arg17: memref<1x32x32xbf16, #tpu.memory_space<vmem>>, %arg18: memref<1x1x32xf32, #tpu.memory_space<vmem>>, %arg19: memref<1x32x32xbf16, #tpu.memory_space<vmem>>, %arg20: memref<1x1x32xf32, #tpu.memory_space<vmem>>, %arg21: memref<1x1x32xf32, #tpu.memory_space<vmem>>, %arg22: memref<1x1x32xf32, #tpu.memory_space<vmem>>, %arg23: memref<1x32x64xbf16, #tpu.memory_space<vmem>>, %arg24: memref<1x1x64xf32, #tpu.memory_space<vmem>>, %arg25: memref<1x64x32xbf16, #tpu.memory_space<vmem>>, %arg26: memref<1x1x32xf32, #tpu.memory_space<vmem>>, %arg27: memref<1x32xf32, #tpu.memory_space<vmem>>, %arg28: memref<1x32xf32, #tpu.memory_space<vmem>>, %arg29: memref<1x8x32xf32, #tpu.memory_space<vmem>>, %arg30: memref<8x32xf32, #tpu.memory_space<vmem>>, %arg31: memref<8x8xf32, #tpu.memory_space<vmem>>) attributes {dimension_semantics = [#tpu.dimension_semantics<parallel>, #tpu.dimension_semantics<arbitrary>], iteration_bounds = array<i64: 2, 2>, scalar_prefetch = 0 : i64, scratch_operands = 2 : i64, tpu.core_type = #tpu.core_type<tc>, window_params = [{transform_indices = @transform_0, window_bounds = array<i64: 1, 8, 32>}, {pipeline_mode = #tpu.pipeline_mode<synchronous>, transform_indices = @transform_1, window_bounds = array<i64: 1, 8, 32>}, {transform_indices = @transform_2, window_bounds = array<i64: 1, 1, 8>}, {transform_indices = @transform_3, window_bounds = array<i64: 1, 1, 32>}, {transform_indices = @transform_4, window_bounds = array<i64: 1, 1, 32>}, {transform_indices = @transform_5, window_bounds = array<i64: 1, 32, 32>}, {transform_indices = @transform_6, window_bounds = array<i64: 1, 1, 32>}, {transform_indices = @transform_7, window_bounds = array<i64: 1, 32, 32>}, {transform_indices = @transform_8, window_bounds = array<i64: 1, 1, 32>}, {transform_indices = @transform_9, window_bounds = array<i64: 1, 1, 32>}, {transform_indices = @transform_10, window_bounds = array<i64: 1, 1, 32>}, {transform_indices = @transform_11, window_bounds = array<i64: 1, 32, 32>}, {transform_indices = @transform_12, window_bounds = array<i64: 1, 1, 32>}, {transform_indices = @transform_13, window_bounds = array<i64: 1, 32, 32>}, {transform_indices = @transform_14, window_bounds = array<i64: 1, 1, 32>}, {transform_indices = @transform_15, window_bounds = array<i64: 1, 32, 32>}, {transform_indices = @transform_16, window_bounds = array<i64: 1, 1, 32>}, {transform_indices = @transform_17, window_bounds = array<i64: 1, 32, 32>}, {transform_indices = @transform_18, window_bounds = array<i64: 1, 1, 32>}, {transform_indices = @transform_19, window_bounds = array<i64: 1, 1, 32>}, {transform_indices = @transform_20, window_bounds = array<i64: 1, 1, 32>}, {transform_indices = @transform_21, window_bounds = array<i64: 1, 32, 64>}, {transform_indices = @transform_22, window_bounds = array<i64: 1, 1, 64>}, {transform_indices = @transform_23, window_bounds = array<i64: 1, 64, 32>}, {transform_indices = @transform_24, window_bounds = array<i64: 1, 1, 32>}, {pipeline_mode = #tpu.pipeline_mode<synchronous>, transform_indices = @transform_25, window_bounds = array<i64: 1, 32>}, {pipeline_mode = #tpu.pipeline_mode<synchronous>, transform_indices = @transform_26, window_bounds = array<i64: 1, 32>}, {transform_indices = @transform_27, window_bounds = array<i64: 1, 8, 32>}]} {
    %c0_i32 = arith.constant 0 : i32
    %0 = arith.cmpi eq, %arg1, %c0_i32 : i32
    %1 = arith.extui %0 : i1 to i32
    %c0_i32_0 = arith.constant 0 : i32
    %2 = arith.cmpi ne, %1, %c0_i32_0 : i32
    scf.if %2 {
      %c0_141 = arith.constant 0 : index
      %c0_142 = arith.constant 0 : index
      %c0_143 = arith.constant 0 : index
      %311 = vector.load %arg2[%c0_141, %c0_142, %c0_143] : memref<1x8x32xf32, #tpu.memory_space<vmem>>, vector<1x8x32xf32>
      %312 = vector.shape_cast %311 : vector<1x8x32xf32> to vector<8x32xf32>
      %c0_144 = arith.constant 0 : index
      %c0_145 = arith.constant 0 : index
      %c0_146 = arith.constant 0 : index
      %313 = vector.load %arg3[%c0_144, %c0_145, %c0_146] : memref<1x8x32xf32, #tpu.memory_space<vmem>>, vector<1x8x32xf32>
      %314 = vector.shape_cast %313 : vector<1x8x32xf32> to vector<8x32xf32>
      %315 = arith.addf %312, %314 : vector<8x32xf32>
      %c0_147 = arith.constant 0 : index
      %c0_148 = arith.constant 0 : index
      %316 = vector.load %arg30[%c0_147, %c0_148] : memref<8x32xf32, #tpu.memory_space<vmem>>, vector<8x32xf32>
      tpu.vector_store %arg30[%c0_147, %c0_148], %315 {strides = array<i32>} : memref<8x32xf32, #tpu.memory_space<vmem>>, vector<8x32xf32>,
      %cst_149 = arith.constant 0.000000e+00 : f32
      %317 = vector.broadcast %cst_149 : f32 to vector<8x8xf32>
      %c0_150 = arith.constant 0 : index
      %c0_151 = arith.constant 0 : index
      %318 = vector.load %arg31[%c0_150, %c0_151] : memref<8x8xf32, #tpu.memory_space<vmem>>, vector<8x8xf32>
      tpu.vector_store %arg31[%c0_150, %c0_151], %317 {strides = array<i32>} : memref<8x8xf32, #tpu.memory_space<vmem>>, vector<8x8xf32>,
    } else {
    }
    %c0 = arith.constant 0 : index
    %c0_1 = arith.constant 0 : index
    %3 = vector.load %arg30[%c0, %c0_1] : memref<8x32xf32, #tpu.memory_space<vmem>>, vector<8x32xf32>
    %c0_2 = arith.constant 0 : index
    %c0_3 = arith.constant 0 : index
    %4 = vector.load %arg31[%c0_2, %c0_3] : memref<8x8xf32, #tpu.memory_space<vmem>>, vector<8x8xf32>
    %c0_4 = arith.constant 0 : index
    %c0_5 = arith.constant 0 : index
    %c0_6 = arith.constant 0 : index
    %5 = vector.load %arg4[%c0_4, %c0_5, %c0_6] : memref<1x1x8xf32, #tpu.memory_space<vmem>>, vector<1x1x8xf32>
    %6 = vector.shape_cast %5 : vector<1x1x8xf32> to vector<1x8xf32>
    %cst = arith.constant 0.000000e+00 : f32
    %7 = vector.broadcast %cst : f32 to vector<1x8xf32>
    %8 = arith.cmpf ogt, %6, %7 : vector<1x8xf32>
    %9 = tpu.iota {dimensions = array<i32: 0>} : vector<8x8xi32>
    %10 = tpu.iota {dimensions = array<i32: 1>} : vector<8x8xi32>
    %11 = arith.subi %9, %10 : vector<8x8xi32>
    %12 = math.absi %11 : vector<8x8xi32>
    %c1_i32 = arith.constant 1 : i32
    %13 = vector.broadcast %c1_i32 : i32 to vector<8x8xi32>
    %14 = arith.cmpi eq, %12, %13 : vector<8x8xi32>
    %c1_i32_7 = arith.constant 1 : i32
    %15 = vector.broadcast %c1_i32_7 : i32 to vector<8x8xi32>
    %16 = arith.addi %9, %15 : vector<8x8xi32>
    %17 = arith.cmpi eq, %10, %16 : vector<8x8xi32>
    %18 = arith.cmpi eq, %9, %10 : vector<8x8xi32>
    %19 = arith.cmpi sge, %10, %9 : vector<8x8xi32>
    %20 = arith.extui %19 : vector<8x8xi1> to vector<8x8xi32>
    %21 = arith.sitofp %20 : vector<8x8xi32> to vector<8x8xf32>
    %22 = arith.cmpi sgt, %10, %9 : vector<8x8xi32>
    %c0_8 = arith.constant 0 : index
    %c0_9 = arith.constant 0 : index
    %c0_10 = arith.constant 0 : index
    %23 = vector.load %arg5[%c0_8, %c0_9, %c0_10] : memref<1x1x32xf32, #tpu.memory_space<vmem>>, vector<1x1x32xf32>
    %24 = vector.shape_cast %23 : vector<1x1x32xf32> to vector<1x32xf32>
    %c0_11 = arith.constant 0 : index
    %c0_12 = arith.constant 0 : index
    %c0_13 = arith.constant 0 : index
    %25 = vector.load %arg6[%c0_11, %c0_12, %c0_13] : memref<1x1x32xf32, #tpu.memory_space<vmem>>, vector<1x1x32xf32>
    %26 = vector.shape_cast %25 : vector<1x1x32xf32> to vector<1x32xf32>
    %cst_14 = arith.constant dense<0.000000e+00> : vector<8xf32>
    %27 = vector.multi_reduction <add>, %3, %cst_14 [1] : vector<8x32xf32> to vector<8xf32>
    %28 = vector.shape_cast %27 : vector<8xf32> to vector<8x1xf32>
    %cst_15 = arith.constant 3.200000e+01 : f32
    %29 = vector.broadcast %cst_15 : f32 to vector<8x1xf32>
    %30 = arith.divf %28, %29 : vector<8x1xf32>
    %31 = vector.broadcast %30 : vector<8x1xf32> to vector<8x32xf32>
    %32 = arith.subf %3, %31 : vector<8x32xf32>
    %33 = arith.mulf %32, %32 : vector<8x32xf32>
    %cst_16 = arith.constant dense<0.000000e+00> : vector<8xf32>
    %34 = vector.multi_reduction <add>, %33, %cst_16 [1] : vector<8x32xf32> to vector<8xf32>
    %35 = vector.shape_cast %34 : vector<8xf32> to vector<8x1xf32>
    %cst_17 = arith.constant 3.100000e+01 : f32
    %36 = vector.broadcast %cst_17 : f32 to vector<8x1xf32>
    %37 = arith.divf %35, %36 : vector<8x1xf32>
    %38 = math.sqrt %37 : vector<8x1xf32>
    %39 = vector.broadcast %24 : vector<1x32xf32> to vector<8x32xf32>
    %40 = arith.mulf %39, %32 : vector<8x32xf32>
    %cst_18 = arith.constant 9.99999997E-7 : f32
    %41 = vector.broadcast %cst_18 : f32 to vector<8x1xf32>
    %42 = arith.addf %38, %41 : vector<8x1xf32>
    %43 = vector.broadcast %42 : vector<8x1xf32> to vector<8x32xf32>
    %44 = arith.divf %40, %43 : vector<8x32xf32>
    %45 = vector.broadcast %26 : vector<1x32xf32> to vector<8x32xf32>
    %46 = arith.addf %44, %45 : vector<8x32xf32>
    %47 = arith.truncf %46 : vector<8x32xf32> to vector<8x32xbf16>
    %c0_19 = arith.constant 0 : index
    %c0_20 = arith.constant 0 : index
    %c0_21 = arith.constant 0 : index
    %48 = vector.load %arg7[%c0_19, %c0_20, %c0_21] : memref<1x32x32xbf16, #tpu.memory_space<vmem>>, vector<1x32x32xbf16>
    %49 = vector.shape_cast %48 : vector<1x32x32xbf16> to vector<32x32xbf16>
    %cst_22 = arith.constant dense<0.000000e+00> : vector<8x32xf32>
    %50 = tpu.matmul %47, %49, %cst_22 {dimension_numbers = #tpu.dot_dimension_numbers<[1], [0], [0], [1], [0, 0, 1, 1], [], []>} : vector<8x32xbf16>, vector<32x32xbf16>, vector<8x32xf32> -> vector<8x32xf32>
    %c0_23 = arith.constant 0 : index
    %c0_24 = arith.constant 0 : index
    %c0_25 = arith.constant 0 : index
    %51 = vector.load %arg8[%c0_23, %c0_24, %c0_25] : memref<1x1x32xf32, #tpu.memory_space<vmem>>, vector<1x1x32xf32>
    %52 = vector.shape_cast %51 : vector<1x1x32xf32> to vector<1x32xf32>
    %53 = vector.broadcast %52 : vector<1x32xf32> to vector<8x32xf32>
    %54 = arith.addf %50, %53 : vector<8x32xf32>
    %c0_26 = arith.constant 0 : index
    %c0_27 = arith.constant 0 : index
    %c0_28 = arith.constant 0 : index
    %55 = vector.load %arg9[%c0_26, %c0_27, %c0_28] : memref<1x32x32xbf16, #tpu.memory_space<vmem>>, vector<1x32x32xbf16>
    %56 = vector.shape_cast %55 : vector<1x32x32xbf16> to vector<32x32xbf16>
    %cst_29 = arith.constant dense<0.000000e+00> : vector<8x32xf32>
    %57 = tpu.matmul %47, %56, %cst_29 {dimension_numbers = #tpu.dot_dimension_numbers<[1], [0], [0], [1], [0, 0, 1, 1], [], []>} : vector<8x32xbf16>, vector<32x32xbf16>, vector<8x32xf32> -> vector<8x32xf32>
    %c0_30 = arith.constant 0 : index
    %c0_31 = arith.constant 0 : index
    %c0_32 = arith.constant 0 : index
    %58 = vector.load %arg10[%c0_30, %c0_31, %c0_32] : memref<1x1x32xf32, #tpu.memory_space<vmem>>, vector<1x1x32xf32>
    %59 = vector.shape_cast %58 : vector<1x1x32xf32> to vector<1x32xf32>
    %60 = vector.broadcast %59 : vector<1x32xf32> to vector<8x32xf32>
    %61 = arith.addf %57, %60 : vector<8x32xf32>
    %cst_33 = arith.constant dense<0.000000e+00> : vector<8x8xf32>
    %62 = tpu.matmul %61, %54, %cst_33 {dimension_numbers = #tpu.dot_dimension_numbers<[1], [1], [0], [0], [0, 0, 1, 0], [], []>} : vector<8x32xf32>, vector<8x32xf32>, vector<8x8xf32> -> vector<8x8xf32>
    %cst_34 = arith.constant 2.560000e+02 : f32
    %63 = vector.broadcast %cst_34 : f32 to vector<8x8xf32>
    %64 = arith.divf %62, %63 : vector<8x8xf32>
    %65 = vector.broadcast %8 : vector<1x8xi1> to vector<8x8xi1>
    %66 = arith.andi %14, %65 : vector<8x8xi1>
    %cst_35 = arith.constant -1.000000e+09 : f32
    %67 = vector.broadcast %cst_35 : f32 to vector<8x8xf32>
    %68 = arith.select %66, %64, %67 : vector<8x8xi1>, vector<8x8xf32>
    %cst_36 = arith.constant dense<0xFF800000> : vector<8xf32>
    %69 = vector.multi_reduction <maximumf>, %68, %cst_36 [1] : vector<8x8xf32> to vector<8xf32>
    %70 = vector.shape_cast %69 : vector<8xf32> to vector<8x1xf32>
    %71 = vector.broadcast %70 : vector<8x1xf32> to vector<8x8xf32>
    %72 = arith.subf %68, %71 : vector<8x8xf32>
    %73 = math.exp %72 : vector<8x8xf32>
    %cst_37 = arith.constant dense<0.000000e+00> : vector<8xf32>
    %74 = vector.multi_reduction <add>, %73, %cst_37 [1] : vector<8x8xf32> to vector<8xf32>
    %75 = vector.shape_cast %74 : vector<8xf32> to vector<8x1xf32>
    %76 = tpu.reciprocal %75 {approx = true} : vector<8x1xf32> -> vector<8x1xf32>
    %77 = vector.broadcast %76 : vector<8x1xf32> to vector<8x8xf32>
    %78 = arith.mulf %73, %77 : vector<8x8xf32>
    %79 = tpu.transpose %78, [1, 0] : vector<8x8xf32> -> vector<8x8xf32>
    %80 = arith.mulf %78, %79 : vector<8x8xf32>
    %cst_38 = arith.constant 9.99999971E-10 : f32
    %81 = vector.broadcast %cst_38 : f32 to vector<8x8xf32>
    %82 = arith.addf %80, %81 : vector<8x8xf32>
    %83 = math.sqrt %82 : vector<8x8xf32>
    %cst_39 = arith.constant 1.000000e+00 : f32
    %84 = vector.broadcast %cst_39 : f32 to vector<8x8xf32>
    %85 = arith.subf %84, %4 : vector<8x8xf32>
    %86 = arith.mulf %85, %83 : vector<8x8xf32>
    %87 = arith.addf %4, %86 : vector<8x8xf32>
    %cst_40 = arith.constant 9.99999971E-10 : f32
    %88 = vector.broadcast %cst_40 : f32 to vector<8x8xf32>
    %89 = arith.addf %87, %88 : vector<8x8xf32>
    %90 = math.log %89 : vector<8x8xf32>
    %cst_41 = arith.constant 0.000000e+00 : f32
    %91 = vector.broadcast %cst_41 : f32 to vector<8x8xf32>
    %92 = arith.select %17, %90, %91 : vector<8x8xi1>, vector<8x8xf32>
    %cst_42 = arith.constant dense<0.000000e+00> : vector<8x8xf32>
    %93 = tpu.matmul %92, %21, %cst_42 {dimension_numbers = #tpu.dot_dimension_numbers<[1], [0], [0], [1], [0, 0, 1, 1], [], []>} : vector<8x8xf32>, vector<8x8xf32>, vector<8x8xf32> -> vector<8x8xf32>
    %cst_43 = arith.constant dense<0.000000e+00> : vector<8x8xf32>
    %94 = tpu.matmul %21, %93, %cst_43 {dimension_numbers = #tpu.dot_dimension_numbers<[1], [0], [0], [1], [0, 0, 1, 1], [], []>} : vector<8x8xf32>, vector<8x8xf32>, vector<8x8xf32> -> vector<8x8xf32>
    %95 = math.exp %94 : vector<8x8xf32>
    %cst_44 = arith.constant 0.000000e+00 : f32
    %96 = vector.broadcast %cst_44 : f32 to vector<8x8xf32>
    %97 = arith.select %22, %95, %96 : vector<8x8xi1>, vector<8x8xf32>
    %98 = tpu.transpose %97, [1, 0] : vector<8x8xf32> -> vector<8x8xf32>
    %99 = arith.addf %97, %98 : vector<8x8xf32>
    %cst_45 = arith.constant 9.99999971E-10 : f32
    %100 = vector.broadcast %cst_45 : f32 to vector<8x8xf32>
    %101 = arith.select %18, %87, %100 : vector<8x8xi1>, vector<8x8xf32>
    %102 = arith.addf %99, %101 : vector<8x8xf32>
    %c0_46 = arith.constant 0 : index
    %c0_47 = arith.constant 0 : index
    %c0_48 = arith.constant 0 : index
    %103 = vector.load %arg11[%c0_46, %c0_47, %c0_48] : memref<1x1x32xf32, #tpu.memory_space<vmem>>, vector<1x1x32xf32>
    %104 = vector.shape_cast %103 : vector<1x1x32xf32> to vector<1x32xf32>
    %c0_49 = arith.constant 0 : index
    %c0_50 = arith.constant 0 : index
    %c0_51 = arith.constant 0 : index
    %105 = vector.load %arg12[%c0_49, %c0_50, %c0_51] : memref<1x1x32xf32, #tpu.memory_space<vmem>>, vector<1x1x32xf32>
    %106 = vector.shape_cast %105 : vector<1x1x32xf32> to vector<1x32xf32>
    %cst_52 = arith.constant dense<0.000000e+00> : vector<8xf32>
    %107 = vector.multi_reduction <add>, %3, %cst_52 [1] : vector<8x32xf32> to vector<8xf32>
    %108 = vector.shape_cast %107 : vector<8xf32> to vector<8x1xf32>
    %cst_53 = arith.constant 3.200000e+01 : f32
    %109 = vector.broadcast %cst_53 : f32 to vector<8x1xf32>
    %110 = arith.divf %108, %109 : vector<8x1xf32>
    %111 = vector.broadcast %110 : vector<8x1xf32> to vector<8x32xf32>
    %112 = arith.subf %3, %111 : vector<8x32xf32>
    %113 = arith.mulf %112, %112 : vector<8x32xf32>
    %cst_54 = arith.constant dense<0.000000e+00> : vector<8xf32>
    %114 = vector.multi_reduction <add>, %113, %cst_54 [1] : vector<8x32xf32> to vector<8xf32>
    %115 = vector.shape_cast %114 : vector<8xf32> to vector<8x1xf32>
    %cst_55 = arith.constant 3.100000e+01 : f32
    %116 = vector.broadcast %cst_55 : f32 to vector<8x1xf32>
    %117 = arith.divf %115, %116 : vector<8x1xf32>
    %118 = math.sqrt %117 : vector<8x1xf32>
    %119 = vector.broadcast %104 : vector<1x32xf32> to vector<8x32xf32>
    %120 = arith.mulf %119, %112 : vector<8x32xf32>
    %cst_56 = arith.constant 9.99999997E-7 : f32
    %121 = vector.broadcast %cst_56 : f32 to vector<8x1xf32>
    %122 = arith.addf %118, %121 : vector<8x1xf32>
    %123 = vector.broadcast %122 : vector<8x1xf32> to vector<8x32xf32>
    %124 = arith.divf %120, %123 : vector<8x32xf32>
    %125 = vector.broadcast %106 : vector<1x32xf32> to vector<8x32xf32>
    %126 = arith.addf %124, %125 : vector<8x32xf32>
    %127 = arith.truncf %126 : vector<8x32xf32> to vector<8x32xbf16>
    %c0_57 = arith.constant 0 : index
    %c0_58 = arith.constant 0 : index
    %c0_59 = arith.constant 0 : index
    %128 = vector.load %arg13[%c0_57, %c0_58, %c0_59] : memref<1x32x32xbf16, #tpu.memory_space<vmem>>, vector<1x32x32xbf16>
    %129 = vector.shape_cast %128 : vector<1x32x32xbf16> to vector<32x32xbf16>
    %cst_60 = arith.constant dense<0.000000e+00> : vector<8x32xf32>
    %130 = tpu.matmul %127, %129, %cst_60 {dimension_numbers = #tpu.dot_dimension_numbers<[1], [0], [0], [1], [0, 0, 1, 1], [], []>} : vector<8x32xbf16>, vector<32x32xbf16>, vector<8x32xf32> -> vector<8x32xf32>
    %c0_61 = arith.constant 0 : index
    %c0_62 = arith.constant 0 : index
    %c0_63 = arith.constant 0 : index
    %131 = vector.load %arg14[%c0_61, %c0_62, %c0_63] : memref<1x1x32xf32, #tpu.memory_space<vmem>>, vector<1x1x32xf32>
    %132 = vector.shape_cast %131 : vector<1x1x32xf32> to vector<1x32xf32>
    %133 = vector.broadcast %132 : vector<1x32xf32> to vector<8x32xf32>
    %134 = arith.addf %130, %133 : vector<8x32xf32>
    %c0_64 = arith.constant 0 : index
    %c0_65 = arith.constant 0 : index
    %c0_66 = arith.constant 0 : index
    %135 = vector.load %arg15[%c0_64, %c0_65, %c0_66] : memref<1x32x32xbf16, #tpu.memory_space<vmem>>, vector<1x32x32xbf16>
    %136 = vector.shape_cast %135 : vector<1x32x32xbf16> to vector<32x32xbf16>
    %cst_67 = arith.constant dense<0.000000e+00> : vector<8x32xf32>
    %137 = tpu.matmul %127, %136, %cst_67 {dimension_numbers = #tpu.dot_dimension_numbers<[1], [0], [0], [1], [0, 0, 1, 1], [], []>} : vector<8x32xbf16>, vector<32x32xbf16>, vector<8x32xf32> -> vector<8x32xf32>
    %c0_68 = arith.constant 0 : index
    %c0_69 = arith.constant 0 : index
    %c0_70 = arith.constant 0 : index
    %138 = vector.load %arg16[%c0_68, %c0_69, %c0_70] : memref<1x1x32xf32, #tpu.memory_space<vmem>>, vector<1x1x32xf32>
    %139 = vector.shape_cast %138 : vector<1x1x32xf32> to vector<1x32xf32>
    %140 = vector.broadcast %139 : vector<1x32xf32> to vector<8x32xf32>
    %141 = arith.addf %137, %140 : vector<8x32xf32>
    %c0_71 = arith.constant 0 : index
    %c0_72 = arith.constant 0 : index
    %c0_73 = arith.constant 0 : index
    %142 = vector.load %arg17[%c0_71, %c0_72, %c0_73] : memref<1x32x32xbf16, #tpu.memory_space<vmem>>, vector<1x32x32xbf16>
    %143 = vector.shape_cast %142 : vector<1x32x32xbf16> to vector<32x32xbf16>
    %cst_74 = arith.constant dense<0.000000e+00> : vector<8x32xf32>
    %144 = tpu.matmul %127, %143, %cst_74 {dimension_numbers = #tpu.dot_dimension_numbers<[1], [0], [0], [1], [0, 0, 1, 1], [], []>} : vector<8x32xbf16>, vector<32x32xbf16>, vector<8x32xf32> -> vector<8x32xf32>
    %c0_75 = arith.constant 0 : index
    %c0_76 = arith.constant 0 : index
    %c0_77 = arith.constant 0 : index
    %145 = vector.load %arg18[%c0_75, %c0_76, %c0_77] : memref<1x1x32xf32, #tpu.memory_space<vmem>>, vector<1x1x32xf32>
    %146 = vector.shape_cast %145 : vector<1x1x32xf32> to vector<1x32xf32>
    %147 = vector.broadcast %146 : vector<1x32xf32> to vector<8x32xf32>
    %148 = arith.addf %144, %147 : vector<8x32xf32>
    %149 = vector.extract_strided_slice %134 {offsets = [0, 0], sizes = [8, 8], strides = [1, 1]} : vector<8x32xf32> to vector<8x8xf32>
    %150 = vector.extract_strided_slice %141 {offsets = [0, 0], sizes = [8, 8], strides = [1, 1]} : vector<8x32xf32> to vector<8x8xf32>
    %151 = vector.extract_strided_slice %148 {offsets = [0, 0], sizes = [8, 8], strides = [1, 1]} : vector<8x32xf32> to vector<8x8xf32>
    %152 = arith.truncf %149 : vector<8x8xf32> to vector<8x8xbf16>
    %153 = arith.truncf %150 : vector<8x8xf32> to vector<8x8xbf16>
    %cst_78 = arith.constant dense<0.000000e+00> : vector<8x8xf32>
    %154 = tpu.matmul %152, %153, %cst_78 {dimension_numbers = #tpu.dot_dimension_numbers<[1], [1], [0], [0], [0, 0, 1, 0], [], []>} : vector<8x8xbf16>, vector<8x8xbf16>, vector<8x8xf32> -> vector<8x8xf32>
    %cst_79 = arith.constant 0.353553385 : f32
    %155 = vector.broadcast %cst_79 : f32 to vector<8x8xf32>
    %156 = arith.mulf %154, %155 : vector<8x8xf32>
    %cst_80 = arith.constant -1.000000e+09 : f32
    %157 = vector.shape_cast %8 : vector<1x8xi1> to vector<1x8xi1>
    %158 = vector.broadcast %157 : vector<1x8xi1> to vector<8x8xi1>
    %159 = vector.broadcast %cst_80 : f32 to vector<8x8xf32>
    %160 = arith.select %158, %156, %159 : vector<8x8xi1>, vector<8x8xf32>
    %cst_81 = arith.constant dense<0xFF800000> : vector<8xf32>
    %161 = vector.multi_reduction <maximumf>, %160, %cst_81 [1] : vector<8x8xf32> to vector<8xf32>
    %162 = vector.shape_cast %161 : vector<8xf32> to vector<8x1xf32>
    %163 = vector.broadcast %162 : vector<8x1xf32> to vector<8x8xf32>
    %164 = arith.subf %160, %163 : vector<8x8xf32>
    %165 = math.exp %164 : vector<8x8xf32>
    %cst_82 = arith.constant dense<0.000000e+00> : vector<8xf32>
    %166 = vector.multi_reduction <add>, %165, %cst_82 [1] : vector<8x8xf32> to vector<8xf32>
    %167 = vector.shape_cast %166 : vector<8xf32> to vector<8x1xf32>
    %168 = tpu.reciprocal %167 {approx = true} : vector<8x1xf32> -> vector<8x1xf32>
    %169 = vector.broadcast %168 : vector<8x1xf32> to vector<8x8xf32>
    %170 = arith.mulf %165, %169 : vector<8x8xf32>
    %171 = arith.mulf %170, %102 : vector<8x8xf32>
    %172 = arith.truncf %171 : vector<8x8xf32> to vector<8x8xbf16>
    %173 = arith.truncf %151 : vector<8x8xf32> to vector<8x8xbf16>
    %cst_83 = arith.constant dense<0.000000e+00> : vector<8x8xf32>
    %174 = tpu.matmul %172, %173, %cst_83 {dimension_numbers = #tpu.dot_dimension_numbers<[1], [0], [0], [1], [0, 0, 1, 1], [], []>} : vector<8x8xbf16>, vector<8x8xbf16>, vector<8x8xf32> -> vector<8x8xf32>
    %175 = vector.extract_strided_slice %134 {offsets = [0, 8], sizes = [8, 8], strides = [1, 1]} : vector<8x32xf32> to vector<8x8xf32>
    %176 = vector.extract_strided_slice %141 {offsets = [0, 8], sizes = [8, 8], strides = [1, 1]} : vector<8x32xf32> to vector<8x8xf32>
    %177 = vector.extract_strided_slice %148 {offsets = [0, 8], sizes = [8, 8], strides = [1, 1]} : vector<8x32xf32> to vector<8x8xf32>
    %178 = arith.truncf %175 : vector<8x8xf32> to vector<8x8xbf16>
    %179 = arith.truncf %176 : vector<8x8xf32> to vector<8x8xbf16>
    %cst_84 = arith.constant dense<0.000000e+00> : vector<8x8xf32>
    %180 = tpu.matmul %178, %179, %cst_84 {dimension_numbers = #tpu.dot_dimension_numbers<[1], [1], [0], [0], [0, 0, 1, 0], [], []>} : vector<8x8xbf16>, vector<8x8xbf16>, vector<8x8xf32> -> vector<8x8xf32>
    %cst_85 = arith.constant 0.353553385 : f32
    %181 = vector.broadcast %cst_85 : f32 to vector<8x8xf32>
    %182 = arith.mulf %180, %181 : vector<8x8xf32>
    %cst_86 = arith.constant -1.000000e+09 : f32
    %183 = vector.shape_cast %8 : vector<1x8xi1> to vector<1x8xi1>
    %184 = vector.broadcast %183 : vector<1x8xi1> to vector<8x8xi1>
    %185 = vector.broadcast %cst_86 : f32 to vector<8x8xf32>
    %186 = arith.select %184, %182, %185 : vector<8x8xi1>, vector<8x8xf32>
    %cst_87 = arith.constant dense<0xFF800000> : vector<8xf32>
    %187 = vector.multi_reduction <maximumf>, %186, %cst_87 [1] : vector<8x8xf32> to vector<8xf32>
    %188 = vector.shape_cast %187 : vector<8xf32> to vector<8x1xf32>
    %189 = vector.broadcast %188 : vector<8x1xf32> to vector<8x8xf32>
    %190 = arith.subf %186, %189 : vector<8x8xf32>
    %191 = math.exp %190 : vector<8x8xf32>
    %cst_88 = arith.constant dense<0.000000e+00> : vector<8xf32>
    %192 = vector.multi_reduction <add>, %191, %cst_88 [1] : vector<8x8xf32> to vector<8xf32>
    %193 = vector.shape_cast %192 : vector<8xf32> to vector<8x1xf32>
    %194 = tpu.reciprocal %193 {approx = true} : vector<8x1xf32> -> vector<8x1xf32>
    %195 = vector.broadcast %194 : vector<8x1xf32> to vector<8x8xf32>
    %196 = arith.mulf %191, %195 : vector<8x8xf32>
    %197 = arith.mulf %196, %102 : vector<8x8xf32>
    %198 = arith.truncf %197 : vector<8x8xf32> to vector<8x8xbf16>
    %199 = arith.truncf %177 : vector<8x8xf32> to vector<8x8xbf16>
    %cst_89 = arith.constant dense<0.000000e+00> : vector<8x8xf32>
    %200 = tpu.matmul %198, %199, %cst_89 {dimension_numbers = #tpu.dot_dimension_numbers<[1], [0], [0], [1], [0, 0, 1, 1], [], []>} : vector<8x8xbf16>, vector<8x8xbf16>, vector<8x8xf32> -> vector<8x8xf32>
    %201 = vector.extract_strided_slice %134 {offsets = [0, 16], sizes = [8, 8], strides = [1, 1]} : vector<8x32xf32> to vector<8x8xf32>
    %202 = vector.extract_strided_slice %141 {offsets = [0, 16], sizes = [8, 8], strides = [1, 1]} : vector<8x32xf32> to vector<8x8xf32>
    %203 = vector.extract_strided_slice %148 {offsets = [0, 16], sizes = [8, 8], strides = [1, 1]} : vector<8x32xf32> to vector<8x8xf32>
    %204 = arith.truncf %201 : vector<8x8xf32> to vector<8x8xbf16>
    %205 = arith.truncf %202 : vector<8x8xf32> to vector<8x8xbf16>
    %cst_90 = arith.constant dense<0.000000e+00> : vector<8x8xf32>
    %206 = tpu.matmul %204, %205, %cst_90 {dimension_numbers = #tpu.dot_dimension_numbers<[1], [1], [0], [0], [0, 0, 1, 0], [], []>} : vector<8x8xbf16>, vector<8x8xbf16>, vector<8x8xf32> -> vector<8x8xf32>
    %cst_91 = arith.constant 0.353553385 : f32
    %207 = vector.broadcast %cst_91 : f32 to vector<8x8xf32>
    %208 = arith.mulf %206, %207 : vector<8x8xf32>
    %cst_92 = arith.constant -1.000000e+09 : f32
    %209 = vector.shape_cast %8 : vector<1x8xi1> to vector<1x8xi1>
    %210 = vector.broadcast %209 : vector<1x8xi1> to vector<8x8xi1>
    %211 = vector.broadcast %cst_92 : f32 to vector<8x8xf32>
    %212 = arith.select %210, %208, %211 : vector<8x8xi1>, vector<8x8xf32>
    %cst_93 = arith.constant dense<0xFF800000> : vector<8xf32>
    %213 = vector.multi_reduction <maximumf>, %212, %cst_93 [1] : vector<8x8xf32> to vector<8xf32>
    %214 = vector.shape_cast %213 : vector<8xf32> to vector<8x1xf32>
    %215 = vector.broadcast %214 : vector<8x1xf32> to vector<8x8xf32>
    %216 = arith.subf %212, %215 : vector<8x8xf32>
    %217 = math.exp %216 : vector<8x8xf32>
    %cst_94 = arith.constant dense<0.000000e+00> : vector<8xf32>
    %218 = vector.multi_reduction <add>, %217, %cst_94 [1] : vector<8x8xf32> to vector<8xf32>
    %219 = vector.shape_cast %218 : vector<8xf32> to vector<8x1xf32>
    %220 = tpu.reciprocal %219 {approx = true} : vector<8x1xf32> -> vector<8x1xf32>
    %221 = vector.broadcast %220 : vector<8x1xf32> to vector<8x8xf32>
    %222 = arith.mulf %217, %221 : vector<8x8xf32>
    %223 = arith.mulf %222, %102 : vector<8x8xf32>
    %224 = arith.truncf %223 : vector<8x8xf32> to vector<8x8xbf16>
    %225 = arith.truncf %203 : vector<8x8xf32> to vector<8x8xbf16>
    %cst_95 = arith.constant dense<0.000000e+00> : vector<8x8xf32>
    %226 = tpu.matmul %224, %225, %cst_95 {dimension_numbers = #tpu.dot_dimension_numbers<[1], [0], [0], [1], [0, 0, 1, 1], [], []>} : vector<8x8xbf16>, vector<8x8xbf16>, vector<8x8xf32> -> vector<8x8xf32>
    %227 = vector.extract_strided_slice %134 {offsets = [0, 24], sizes = [8, 8], strides = [1, 1]} : vector<8x32xf32> to vector<8x8xf32>
    %228 = vector.extract_strided_slice %141 {offsets = [0, 24], sizes = [8, 8], strides = [1, 1]} : vector<8x32xf32> to vector<8x8xf32>
    %229 = vector.extract_strided_slice %148 {offsets = [0, 24], sizes = [8, 8], strides = [1, 1]} : vector<8x32xf32> to vector<8x8xf32>
    %230 = arith.truncf %227 : vector<8x8xf32> to vector<8x8xbf16>
    %231 = arith.truncf %228 : vector<8x8xf32> to vector<8x8xbf16>
    %cst_96 = arith.constant dense<0.000000e+00> : vector<8x8xf32>
    %232 = tpu.matmul %230, %231, %cst_96 {dimension_numbers = #tpu.dot_dimension_numbers<[1], [1], [0], [0], [0, 0, 1, 0], [], []>} : vector<8x8xbf16>, vector<8x8xbf16>, vector<8x8xf32> -> vector<8x8xf32>
    %cst_97 = arith.constant 0.353553385 : f32
    %233 = vector.broadcast %cst_97 : f32 to vector<8x8xf32>
    %234 = arith.mulf %232, %233 : vector<8x8xf32>
    %cst_98 = arith.constant -1.000000e+09 : f32
    %235 = vector.shape_cast %8 : vector<1x8xi1> to vector<1x8xi1>
    %236 = vector.broadcast %235 : vector<1x8xi1> to vector<8x8xi1>
    %237 = vector.broadcast %cst_98 : f32 to vector<8x8xf32>
    %238 = arith.select %236, %234, %237 : vector<8x8xi1>, vector<8x8xf32>
    %cst_99 = arith.constant dense<0xFF800000> : vector<8xf32>
    %239 = vector.multi_reduction <maximumf>, %238, %cst_99 [1] : vector<8x8xf32> to vector<8xf32>
    %240 = vector.shape_cast %239 : vector<8xf32> to vector<8x1xf32>
    %241 = vector.broadcast %240 : vector<8x1xf32> to vector<8x8xf32>
    %242 = arith.subf %238, %241 : vector<8x8xf32>
    %243 = math.exp %242 : vector<8x8xf32>
    %cst_100 = arith.constant dense<0.000000e+00> : vector<8xf32>
    %244 = vector.multi_reduction <add>, %243, %cst_100 [1] : vector<8x8xf32> to vector<8xf32>
    %245 = vector.shape_cast %244 : vector<8xf32> to vector<8x1xf32>
    %246 = tpu.reciprocal %245 {approx = true} : vector<8x1xf32> -> vector<8x1xf32>
    %247 = vector.broadcast %246 : vector<8x1xf32> to vector<8x8xf32>
    %248 = arith.mulf %243, %247 : vector<8x8xf32>
    %249 = arith.mulf %248, %102 : vector<8x8xf32>
    %250 = arith.truncf %249 : vector<8x8xf32> to vector<8x8xbf16>
    %251 = arith.truncf %229 : vector<8x8xf32> to vector<8x8xbf16>
    %cst_101 = arith.constant dense<0.000000e+00> : vector<8x8xf32>
    %252 = tpu.matmul %250, %251, %cst_101 {dimension_numbers = #tpu.dot_dimension_numbers<[1], [0], [0], [1], [0, 0, 1, 1], [], []>} : vector<8x8xbf16>, vector<8x8xbf16>, vector<8x8xf32> -> vector<8x8xf32>
    %253 = tpu.concatenate %174, %200, %226, %252 in 1 : vector<8x8xf32>, vector<8x8xf32>, vector<8x8xf32>, vector<8x8xf32> -> vector<8x32xf32>
    %254 = arith.truncf %253 : vector<8x32xf32> to vector<8x32xbf16>
    %c0_102 = arith.constant 0 : index
    %c0_103 = arith.constant 0 : index
    %c0_104 = arith.constant 0 : index
    %255 = vector.load %arg19[%c0_102, %c0_103, %c0_104] : memref<1x32x32xbf16, #tpu.memory_space<vmem>>, vector<1x32x32xbf16>
    %256 = vector.shape_cast %255 : vector<1x32x32xbf16> to vector<32x32xbf16>
    %cst_105 = arith.constant dense<0.000000e+00> : vector<8x32xf32>
    %257 = tpu.matmul %254, %256, %cst_105 {dimension_numbers = #tpu.dot_dimension_numbers<[1], [0], [0], [1], [0, 0, 1, 1], [], []>} : vector<8x32xbf16>, vector<32x32xbf16>, vector<8x32xf32> -> vector<8x32xf32>
    %c0_106 = arith.constant 0 : index
    %c0_107 = arith.constant 0 : index
    %c0_108 = arith.constant 0 : index
    %258 = vector.load %arg20[%c0_106, %c0_107, %c0_108] : memref<1x1x32xf32, #tpu.memory_space<vmem>>, vector<1x1x32xf32>
    %259 = vector.shape_cast %258 : vector<1x1x32xf32> to vector<1x32xf32>
    %260 = vector.broadcast %259 : vector<1x32xf32> to vector<8x32xf32>
    %261 = arith.addf %257, %260 : vector<8x32xf32>
    %262 = arith.addf %3, %261 : vector<8x32xf32>
    %c0_109 = arith.constant 0 : index
    %c0_110 = arith.constant 0 : index
    %c0_111 = arith.constant 0 : index
    %263 = vector.load %arg21[%c0_109, %c0_110, %c0_111] : memref<1x1x32xf32, #tpu.memory_space<vmem>>, vector<1x1x32xf32>
    %264 = vector.shape_cast %263 : vector<1x1x32xf32> to vector<1x32xf32>
    %c0_112 = arith.constant 0 : index
    %c0_113 = arith.constant 0 : index
    %c0_114 = arith.constant 0 : index
    %265 = vector.load %arg22[%c0_112, %c0_113, %c0_114] : memref<1x1x32xf32, #tpu.memory_space<vmem>>, vector<1x1x32xf32>
    %266 = vector.shape_cast %265 : vector<1x1x32xf32> to vector<1x32xf32>
    %cst_115 = arith.constant dense<0.000000e+00> : vector<8xf32>
    %267 = vector.multi_reduction <add>, %262, %cst_115 [1] : vector<8x32xf32> to vector<8xf32>
    %268 = vector.shape_cast %267 : vector<8xf32> to vector<8x1xf32>
    %cst_116 = arith.constant 3.200000e+01 : f32
    %269 = vector.broadcast %cst_116 : f32 to vector<8x1xf32>
    %270 = arith.divf %268, %269 : vector<8x1xf32>
    %271 = vector.broadcast %270 : vector<8x1xf32> to vector<8x32xf32>
    %272 = arith.subf %262, %271 : vector<8x32xf32>
    %273 = arith.mulf %272, %272 : vector<8x32xf32>
    %cst_117 = arith.constant dense<0.000000e+00> : vector<8xf32>
    %274 = vector.multi_reduction <add>, %273, %cst_117 [1] : vector<8x32xf32> to vector<8xf32>
    %275 = vector.shape_cast %274 : vector<8xf32> to vector<8x1xf32>
    %cst_118 = arith.constant 3.100000e+01 : f32
    %276 = vector.broadcast %cst_118 : f32 to vector<8x1xf32>
    %277 = arith.divf %275, %276 : vector<8x1xf32>
    %278 = math.sqrt %277 : vector<8x1xf32>
    %279 = vector.broadcast %264 : vector<1x32xf32> to vector<8x32xf32>
    %280 = arith.mulf %279, %272 : vector<8x32xf32>
    %cst_119 = arith.constant 9.99999997E-7 : f32
    %281 = vector.broadcast %cst_119 : f32 to vector<8x1xf32>
    %282 = arith.addf %278, %281 : vector<8x1xf32>
    %283 = vector.broadcast %282 : vector<8x1xf32> to vector<8x32xf32>
    %284 = arith.divf %280, %283 : vector<8x32xf32>
    %285 = vector.broadcast %266 : vector<1x32xf32> to vector<8x32xf32>
    %286 = arith.addf %284, %285 : vector<8x32xf32>
    %287 = arith.truncf %286 : vector<8x32xf32> to vector<8x32xbf16>
    %c0_120 = arith.constant 0 : index
    %c0_121 = arith.constant 0 : index
    %c0_122 = arith.constant 0 : index
    %288 = vector.load %arg23[%c0_120, %c0_121, %c0_122] : memref<1x32x64xbf16, #tpu.memory_space<vmem>>, vector<1x32x64xbf16>
    %289 = vector.shape_cast %288 : vector<1x32x64xbf16> to vector<32x64xbf16>
    %cst_123 = arith.constant dense<0.000000e+00> : vector<8x64xf32>
    %290 = tpu.matmul %287, %289, %cst_123 {dimension_numbers = #tpu.dot_dimension_numbers<[1], [0], [0], [1], [0, 0, 1, 1], [], []>} : vector<8x32xbf16>, vector<32x64xbf16>, vector<8x64xf32> -> vector<8x64xf32>
    %c0_124 = arith.constant 0 : index
    %c0_125 = arith.constant 0 : index
    %c0_126 = arith.constant 0 : index
    %291 = vector.load %arg24[%c0_124, %c0_125, %c0_126] : memref<1x1x64xf32, #tpu.memory_space<vmem>>, vector<1x1x64xf32>
    %292 = vector.shape_cast %291 : vector<1x1x64xf32> to vector<1x64xf32>
    %293 = vector.broadcast %292 : vector<1x64xf32> to vector<8x64xf32>
    %294 = arith.addf %290, %293 : vector<8x64xf32>
    %cst_127 = arith.constant 0.000000e+00 : f32
    %295 = vector.broadcast %cst_127 : f32 to vector<8x64xf32>
    %296 = arith.maximumf %294, %295 : vector<8x64xf32>
    %297 = arith.truncf %296 : vector<8x64xf32> to vector<8x64xbf16>
    %c0_128 = arith.constant 0 : index
    %c0_129 = arith.constant 0 : index
    %c0_130 = arith.constant 0 : index
    %298 = vector.load %arg25[%c0_128, %c0_129, %c0_130] : memref<1x64x32xbf16, #tpu.memory_space<vmem>>, vector<1x64x32xbf16>
    %299 = vector.shape_cast %298 : vector<1x64x32xbf16> to vector<64x32xbf16>
    %cst_131 = arith.constant dense<0.000000e+00> : vector<8x32xf32>
    %300 = tpu.matmul %297, %299, %cst_131 {dimension_numbers = #tpu.dot_dimension_numbers<[1], [0], [0], [1], [0, 0, 1, 1], [], []>} : vector<8x64xbf16>, vector<64x32xbf16>, vector<8x32xf32> -> vector<8x32xf32>
    %c0_132 = arith.constant 0 : index
    %c0_133 = arith.constant 0 : index
    %c0_134 = arith.constant 0 : index
    %301 = vector.load %arg26[%c0_132, %c0_133, %c0_134] : memref<1x1x32xf32, #tpu.memory_space<vmem>>, vector<1x1x32xf32>
    %302 = vector.shape_cast %301 : vector<1x1x32xf32> to vector<1x32xf32>
    %303 = vector.broadcast %302 : vector<1x32xf32> to vector<8x32xf32>
    %304 = arith.addf %300, %303 : vector<8x32xf32>
    %305 = arith.addf %262, %304 : vector<8x32xf32>
    %c0_135 = arith.constant 0 : index
    %c0_136 = arith.constant 0 : index
    %306 = vector.load %arg30[%c0_135, %c0_136] : memref<8x32xf32, #tpu.memory_space<vmem>>, vector<8x32xf32>
    tpu.vector_store %arg30[%c0_135, %c0_136], %305 {strides = array<i32>} : memref<8x32xf32, #tpu.memory_space<vmem>>, vector<8x32xf32>,
    %c0_137 = arith.constant 0 : index
    %c0_138 = arith.constant 0 : index
    %307 = vector.load %arg31[%c0_137, %c0_138] : memref<8x8xf32, #tpu.memory_space<vmem>>, vector<8x8xf32>
    tpu.vector_store %arg31[%c0_137, %c0_138], %102 {strides = array<i32>} : memref<8x8xf32, #tpu.memory_space<vmem>>, vector<8x8xf32>,
    %c1_i32_139 = arith.constant 1 : i32
    %308 = arith.cmpi eq, %arg1, %c1_i32_139 : i32
    %309 = arith.extui %308 : i1 to i32
    %c0_i32_140 = arith.constant 0 : i32
    %310 = arith.cmpi ne, %309, %c0_i32_140 : i32
    scf.if %310 {
      %c0_141 = arith.constant 0 : index
      %c0_142 = arith.constant 0 : index
      %311 = vector.load %arg27[%c0_141, %c0_142] : memref<1x32xf32, #tpu.memory_space<vmem>>, vector<1x32xf32>
      %c0_143 = arith.constant 0 : index
      %c0_144 = arith.constant 0 : index
      %312 = vector.load %arg28[%c0_143, %c0_144] : memref<1x32xf32, #tpu.memory_space<vmem>>, vector<1x32xf32>
      %cst_145 = arith.constant dense<0.000000e+00> : vector<8xf32>
      %313 = vector.multi_reduction <add>, %305, %cst_145 [1] : vector<8x32xf32> to vector<8xf32>
      %314 = vector.shape_cast %313 : vector<8xf32> to vector<8x1xf32>
      %cst_146 = arith.constant 3.200000e+01 : f32
      %315 = vector.broadcast %cst_146 : f32 to vector<8x1xf32>
      %316 = arith.divf %314, %315 : vector<8x1xf32>
      %317 = vector.broadcast %316 : vector<8x1xf32> to vector<8x32xf32>
      %318 = arith.subf %305, %317 : vector<8x32xf32>
      %319 = arith.mulf %318, %318 : vector<8x32xf32>
      %cst_147 = arith.constant dense<0.000000e+00> : vector<8xf32>
      %320 = vector.multi_reduction <add>, %319, %cst_147 [1] : vector<8x32xf32> to vector<8xf32>
      %321 = vector.shape_cast %320 : vector<8xf32> to vector<8x1xf32>
      %cst_148 = arith.constant 3.100000e+01 : f32
      %322 = vector.broadcast %cst_148 : f32 to vector<8x1xf32>
      %323 = arith.divf %321, %322 : vector<8x1xf32>
      %324 = math.sqrt %323 : vector<8x1xf32>
      %325 = vector.broadcast %311 : vector<1x32xf32> to vector<8x32xf32>
      %326 = arith.mulf %325, %318 : vector<8x32xf32>
      %cst_149 = arith.constant 9.99999997E-7 : f32
      %327 = vector.broadcast %cst_149 : f32 to vector<8x1xf32>
      %328 = arith.addf %324, %327 : vector<8x1xf32>
      %329 = vector.broadcast %328 : vector<8x1xf32> to vector<8x32xf32>
      %330 = arith.divf %326, %329 : vector<8x32xf32>
      %331 = vector.broadcast %312 : vector<1x32xf32> to vector<8x32xf32>
      %332 = arith.addf %330, %331 : vector<8x32xf32>
      %c0_150 = arith.constant 0 : index
      %c0_151 = arith.constant 0 : index
      %c0_152 = arith.constant 0 : index
      %333 = vector.load %arg29[%c0_150, %c0_151, %c0_152] : memref<1x8x32xf32, #tpu.memory_space<vmem>>, vector<1x8x32xf32>
      %334 = vector.shape_cast %333 : vector<1x8x32xf32> to vector<8x32xf32>
      %335 = vector.shape_cast %332 : vector<8x32xf32> to vector<1x8x32xf32>
      tpu.vector_store %arg29[%c0_150, %c0_151, %c0_152], %335 {strides = array<i32>} : memref<1x8x32xf32, #tpu.memory_space<vmem>>, vector<1x8x32xf32>,
    } else {
    }
    return
  }
  func.func @transform_0(%arg0: i32, %arg1: i32) -> (i32, i32, i32) {
    %c0_i32 = arith.constant 0 : i32
    %c0_i32_0 = arith.constant 0 : i32
    %c0_i32_1 = arith.constant 0 : i32
    return %arg0, %c0_i32, %c0_i32_0 : i32, i32, i32
  }
  func.func @transform_1(%arg0: i32, %arg1: i32) -> (i32, i32, i32) {
    %c0_i32 = arith.constant 0 : i32
    %c0_i32_0 = arith.constant 0 : i32
    %c0_i32_1 = arith.constant 0 : i32
    %c0_i32_2 = arith.constant 0 : i32
    return %c0_i32, %c0_i32_0, %c0_i32_1 : i32, i32, i32
  }
  func.func @transform_2(%arg0: i32, %arg1: i32) -> (i32, i32, i32) {
    %c0_i32 = arith.constant 0 : i32
    %c0_i32_0 = arith.constant 0 : i32
    %c0_i32_1 = arith.constant 0 : i32
    return %arg0, %c0_i32, %c0_i32_0 : i32, i32, i32
  }
  func.func @transform_3(%arg0: i32, %arg1: i32) -> (i32, i32, i32) {
    %c0_i32 = arith.constant 0 : i32
    %c0_i32_0 = arith.constant 0 : i32
    %c0_i32_1 = arith.constant 0 : i32
    return %arg1, %c0_i32, %c0_i32_0 : i32, i32, i32
  }
  func.func @transform_4(%arg0: i32, %arg1: i32) -> (i32, i32, i32) {
    %c0_i32 = arith.constant 0 : i32
    %c0_i32_0 = arith.constant 0 : i32
    %c0_i32_1 = arith.constant 0 : i32
    return %arg1, %c0_i32, %c0_i32_0 : i32, i32, i32
  }
  func.func @transform_5(%arg0: i32, %arg1: i32) -> (i32, i32, i32) {
    %c0_i32 = arith.constant 0 : i32
    %c0_i32_0 = arith.constant 0 : i32
    %c0_i32_1 = arith.constant 0 : i32
    return %arg1, %c0_i32, %c0_i32_0 : i32, i32, i32
  }
  func.func @transform_6(%arg0: i32, %arg1: i32) -> (i32, i32, i32) {
    %c0_i32 = arith.constant 0 : i32
    %c0_i32_0 = arith.constant 0 : i32
    %c0_i32_1 = arith.constant 0 : i32
    return %arg1, %c0_i32, %c0_i32_0 : i32, i32, i32
  }
  func.func @transform_7(%arg0: i32, %arg1: i32) -> (i32, i32, i32) {
    %c0_i32 = arith.constant 0 : i32
    %c0_i32_0 = arith.constant 0 : i32
    %c0_i32_1 = arith.constant 0 : i32
    return %arg1, %c0_i32, %c0_i32_0 : i32, i32, i32
  }
  func.func @transform_8(%arg0: i32, %arg1: i32) -> (i32, i32, i32) {
    %c0_i32 = arith.constant 0 : i32
    %c0_i32_0 = arith.constant 0 : i32
    %c0_i32_1 = arith.constant 0 : i32
    return %arg1, %c0_i32, %c0_i32_0 : i32, i32, i32
  }
  func.func @transform_9(%arg0: i32, %arg1: i32) -> (i32, i32, i32) {
    %c0_i32 = arith.constant 0 : i32
    %c0_i32_0 = arith.constant 0 : i32
    %c0_i32_1 = arith.constant 0 : i32
    return %arg1, %c0_i32, %c0_i32_0 : i32, i32, i32
  }
  func.func @transform_10(%arg0: i32, %arg1: i32) -> (i32, i32, i32) {
    %c0_i32 = arith.constant 0 : i32
    %c0_i32_0 = arith.constant 0 : i32
    %c0_i32_1 = arith.constant 0 : i32
    return %arg1, %c0_i32, %c0_i32_0 : i32, i32, i32
  }
  func.func @transform_11(%arg0: i32, %arg1: i32) -> (i32, i32, i32) {
    %c0_i32 = arith.constant 0 : i32
    %c0_i32_0 = arith.constant 0 : i32
    %c0_i32_1 = arith.constant 0 : i32
    return %arg1, %c0_i32, %c0_i32_0 : i32, i32, i32
  }
  func.func @transform_12(%arg0: i32, %arg1: i32) -> (i32, i32, i32) {
    %c0_i32 = arith.constant 0 : i32
    %c0_i32_0 = arith.constant 0 : i32
    %c0_i32_1 = arith.constant 0 : i32
    return %arg1, %c0_i32, %c0_i32_0 : i32, i32, i32
  }
  func.func @transform_13(%arg0: i32, %arg1: i32) -> (i32, i32, i32) {
    %c0_i32 = arith.constant 0 : i32
    %c0_i32_0 = arith.constant 0 : i32
    %c0_i32_1 = arith.constant 0 : i32
    return %arg1, %c0_i32, %c0_i32_0 : i32, i32, i32
  }
  func.func @transform_14(%arg0: i32, %arg1: i32) -> (i32, i32, i32) {
    %c0_i32 = arith.constant 0 : i32
    %c0_i32_0 = arith.constant 0 : i32
    %c0_i32_1 = arith.constant 0 : i32
    return %arg1, %c0_i32, %c0_i32_0 : i32, i32, i32
  }
  func.func @transform_15(%arg0: i32, %arg1: i32) -> (i32, i32, i32) {
    %c0_i32 = arith.constant 0 : i32
    %c0_i32_0 = arith.constant 0 : i32
    %c0_i32_1 = arith.constant 0 : i32
    return %arg1, %c0_i32, %c0_i32_0 : i32, i32, i32
  }
  func.func @transform_16(%arg0: i32, %arg1: i32) -> (i32, i32, i32) {
    %c0_i32 = arith.constant 0 : i32
    %c0_i32_0 = arith.constant 0 : i32
    %c0_i32_1 = arith.constant 0 : i32
    return %arg1, %c0_i32, %c0_i32_0 : i32, i32, i32
  }
  func.func @transform_17(%arg0: i32, %arg1: i32) -> (i32, i32, i32) {
    %c0_i32 = arith.constant 0 : i32
    %c0_i32_0 = arith.constant 0 : i32
    %c0_i32_1 = arith.constant 0 : i32
    return %arg1, %c0_i32, %c0_i32_0 : i32, i32, i32
  }
  func.func @transform_18(%arg0: i32, %arg1: i32) -> (i32, i32, i32) {
    %c0_i32 = arith.constant 0 : i32
    %c0_i32_0 = arith.constant 0 : i32
    %c0_i32_1 = arith.constant 0 : i32
    return %arg1, %c0_i32, %c0_i32_0 : i32, i32, i32
  }
  func.func @transform_19(%arg0: i32, %arg1: i32) -> (i32, i32, i32) {
    %c0_i32 = arith.constant 0 : i32
    %c0_i32_0 = arith.constant 0 : i32
    %c0_i32_1 = arith.constant 0 : i32
    return %arg1, %c0_i32, %c0_i32_0 : i32, i32, i32
  }
  func.func @transform_20(%arg0: i32, %arg1: i32) -> (i32, i32, i32) {
    %c0_i32 = arith.constant 0 : i32
    %c0_i32_0 = arith.constant 0 : i32
    %c0_i32_1 = arith.constant 0 : i32
    return %arg1, %c0_i32, %c0_i32_0 : i32, i32, i32
  }
  func.func @transform_21(%arg0: i32, %arg1: i32) -> (i32, i32, i32) {
    %c0_i32 = arith.constant 0 : i32
    %c0_i32_0 = arith.constant 0 : i32
    %c0_i32_1 = arith.constant 0 : i32
    return %arg1, %c0_i32, %c0_i32_0 : i32, i32, i32
  }
  func.func @transform_22(%arg0: i32, %arg1: i32) -> (i32, i32, i32) {
    %c0_i32 = arith.constant 0 : i32
    %c0_i32_0 = arith.constant 0 : i32
    %c0_i32_1 = arith.constant 0 : i32
    return %arg1, %c0_i32, %c0_i32_0 : i32, i32, i32
  }
  func.func @transform_23(%arg0: i32, %arg1: i32) -> (i32, i32, i32) {
    %c0_i32 = arith.constant 0 : i32
    %c0_i32_0 = arith.constant 0 : i32
    %c0_i32_1 = arith.constant 0 : i32
    return %arg1, %c0_i32, %c0_i32_0 : i32, i32, i32
  }
  func.func @transform_24(%arg0: i32, %arg1: i32) -> (i32, i32, i32) {
    %c0_i32 = arith.constant 0 : i32
    %c0_i32_0 = arith.constant 0 : i32
    %c0_i32_1 = arith.constant 0 : i32
    return %arg1, %c0_i32, %c0_i32_0 : i32, i32, i32
  }
  func.func @transform_25(%arg0: i32, %arg1: i32) -> (i32, i32) {
    %c0_i32 = arith.constant 0 : i32
    %c0_i32_0 = arith.constant 0 : i32
    %c0_i32_1 = arith.constant 0 : i32
    return %c0_i32, %c0_i32_0 : i32, i32
  }
  func.func @transform_26(%arg0: i32, %arg1: i32) -> (i32, i32) {
    %c0_i32 = arith.constant 0 : i32
    %c0_i32_0 = arith.constant 0 : i32
    %c0_i32_1 = arith.constant 0 : i32
    return %c0_i32, %c0_i32_0 : i32, i32
  }
  func.func @transform_27(%arg0: i32, %arg1: i32) -> (i32, i32, i32) {
    %c0_i32 = arith.constant 0 : i32
    %c0_i32_0 = arith.constant 0 : i32
    %c0_i32_1 = arith.constant 0 : i32
    return %arg0, %c0_i32, %c0_i32_0 : i32, i32, i32
  }
}

</mosaic_0001>

<llo_original>
// kernel: tpu_custom_call.1
$region0: #{tpu_custom_call.1}
  #allocation0 [shape = 'u32[]', space=smem, size = 0x4, offset = 0x4, fixed_abs, tag = 'smem constant byte address 0x4 - core index']
  #allocation1 [shape = 'u32[144,128]{1,0:T(1,128)}', space=vmem, size = 0x12000, scoped, tag = 'internal scratch']
  #allocation2 [shape = 'f32[8,32]{1,0:T(8,128)}', space=vmem, size = 0x1000, scoped, tag = 'scratch operand']
  #allocation3 [shape = 'f32[8,8]{1,0:T(8,128)}', space=vmem, size = 0x1000, scoped, tag = 'scratch operand']
  %s0 = inlined_call_operand.hbm [shape: f32[2,8,32], index: 0, kind: input, shape index: {}]
  %s1 = inlined_call_operand.hbm [shape: f32[1,8,32], index: 1, kind: input, shape index: {}]
  %s2 = inlined_call_operand.hbm [shape: f32[2,1,8], index: 2, kind: input, shape index: {}]
  %s3 = inlined_call_operand.hbm [shape: f32[2,1,32], index: 3, kind: input, shape index: {}]
  %s4 = inlined_call_operand.hbm [shape: f32[2,1,32], index: 4, kind: input, shape index: {}]
  %s5 = inlined_call_operand.hbm [shape: bf16[2,32,32], index: 5, kind: input, shape index: {}]
  %s6 = inlined_call_operand.hbm [shape: f32[2,1,32], index: 6, kind: input, shape index: {}]
  %s7 = inlined_call_operand.hbm [shape: bf16[2,32,32], index: 7, kind: input, shape index: {}]
  %s8 = inlined_call_operand.hbm [shape: f32[2,1,32], index: 8, kind: input, shape index: {}]
  %s9 = inlined_call_operand.hbm [shape: f32[2,1,32], index: 9, kind: input, shape index: {}]
  %s10 = inlined_call_operand.hbm [shape: f32[2,1,32], index: 10, kind: input, shape index: {}]
  %s11 = inlined_call_operand.hbm [shape: bf16[2,32,32], index: 11, kind: input, shape index: {}]
  %s12 = inlined_call_operand.hbm [shape: f32[2,1,32], index: 12, kind: input, shape index: {}]
  %s13 = inlined_call_operand.hbm [shape: bf16[2,32,32], index: 13, kind: input, shape index: {}]
  %s14 = inlined_call_operand.hbm [shape: f32[2,1,32], index: 14, kind: input, shape index: {}]
  %s15 = inlined_call_operand.hbm [shape: bf16[2,32,32], index: 15, kind: input, shape index: {}]
  %s16 = inlined_call_operand.hbm [shape: f32[2,1,32], index: 16, kind: input, shape index: {}]
  %s17 = inlined_call_operand.hbm [shape: bf16[2,32,32], index: 17, kind: input, shape index: {}]
  %s18 = inlined_call_operand.hbm [shape: f32[2,1,32], index: 18, kind: input, shape index: {}]
  %s19 = inlined_call_operand.hbm [shape: f32[2,1,32], index: 19, kind: input, shape index: {}]
  %s20 = inlined_call_operand.hbm [shape: f32[2,1,32], index: 20, kind: input, shape index: {}]
  %s21 = inlined_call_operand.hbm [shape: bf16[2,32,64], index: 21, kind: input, shape index: {}]
  %s22 = inlined_call_operand.hbm [shape: f32[2,1,64], index: 22, kind: input, shape index: {}]
  %s23 = inlined_call_operand.hbm [shape: bf16[2,64,32], index: 23, kind: input, shape index: {}]
  %s24 = inlined_call_operand.hbm [shape: f32[2,1,32], index: 24, kind: input, shape index: {}]
  %s25 = inlined_call_operand.hbm [shape: f32[1,32], index: 25, kind: input, shape index: {}]
  %s26 = inlined_call_operand.hbm [shape: f32[1,32], index: 26, kind: input, shape index: {}]
  %s27 = inlined_call_operand.hbm [shape: f32[2,8,32], index: 27, kind: output, shape index: {}]
  %s28 = sld [smem:[#allocation0]]
  $region257: #{tpu_custom_call.1} parent=0
    _
  %s30 = ssub.s32 1, %s28
  %s31 = scalar_select 0, %s30, %s28
  $region1: #{tpu_custom_call.1} parent=0
    #allocation4 [shape = 'u8[8192]{0}', space=vmem, size = 0x2000, scoped, tag = 'input window, operand 0']
    #allocation5 [shape = 's32[2]{0}', space=sflag, size = 0x8, scoped, tag = 'scoped memory for tpu_custom_call.1']
    #allocation6 [shape = 's32[2]{0}', space=sflag, size = 0x8, scoped, tag = 'scoped memory for tpu_custom_call.1']
    #allocation7 [shape = 'u8[4096]{0}', space=vmem, size = 0x1000, scoped, tag = 'input window, operand 1, single buffered']
    #allocation8 [shape = 's32[1]{0}', space=sflag, size = 0x4, scoped, tag = 'scoped memory for tpu_custom_call.1']
    #allocation9 [shape = 'u8[1024]{0}', space=vmem, size = 0x400, scoped, tag = 'input window, operand 2']
    #allocation10 [shape = 'u8[1024]{0}', space=vmem, size = 0x400, scoped, tag = 'input window, operand 3']
    #allocation11 [shape = 'u8[1024]{0}', space=vmem, size = 0x400, scoped, tag = 'input window, operand 4']
    #allocation12 [shape = 'u8[16384]{0}', space=vmem, size = 0x4000, scoped, tag = 'input window, operand 5']
    #allocation13 [shape = 'u8[1024]{0}', space=vmem, size = 0x400, scoped, tag = 'input window, operand 6']
    #allocation14 [shape = 'u8[16384]{0}', space=vmem, size = 0x4000, scoped, tag = 'input window, operand 7']
    #allocation15 [shape = 'u8[1024]{0}', space=vmem, size = 0x400, scoped, tag = 'input window, operand 8']
    #allocation16 [shape = 'u8[1024]{0}', space=vmem, size = 0x400, scoped, tag = 'input window, operand 9']
    #allocation17 [shape = 'u8[1024]{0}', space=vmem, size = 0x400, scoped, tag = 'input window, operand 10']
    #allocation18 [shape = 'u8[16384]{0}', space=vmem, size = 0x4000, scoped, tag = 'input window, operand 11']
    #allocation19 [shape = 'u8[1024]{0}', space=vmem, size = 0x400, scoped, tag = 'input window, operand 12']
    #allocation20 [shape = 'u8[16384]{0}', space=vmem, size = 0x4000, scoped, tag = 'input window, operand 13']
    #allocation21 [shape = 'u8[1024]{0}', space=vmem, size = 0x400, scoped, tag = 'input window, operand 14']
    #allocation22 [shape = 'u8[16384]{0}', space=vmem, size = 0x4000, scoped, tag = 'input window, operand 15']
    #allocation23 [shape = 'u8[1024]{0}', space=vmem, size = 0x400, scoped, tag = 'input window, operand 16']
    #allocation24 [shape = 'u8[16384]{0}', space=vmem, size = 0x4000, scoped, tag = 'input window, operand 17']
    #allocation25 [shape = 'u8[1024]{0}', space=vmem, size = 0x400, scoped, tag = 'input window, operand 18']
    #allocation26 [shape = 'u8[1024]{0}', space=vmem, size = 0x400, scoped, tag = 'input window, operand 19']
    #allocation27 [shape = 'u8[1024]{0}', space=vmem, size = 0x400, scoped, tag = 'input window, operand 20']
    #allocation28 [shape = 'u8[16384]{0}', space=vmem, size = 0x4000, scoped, tag = 'input window, operand 21']
    #allocation29 [shape = 'u8[1024]{0}', space=vmem, size = 0x400, scoped, tag = 'input window, operand 22']
    #allocation30 [shape = 'u8[32768]{0}', space=vmem, size = 0x8000, scoped, tag = 'input window, operand 23']
    #allocation31 [shape = 'u8[1024]{0}', space=vmem, size = 0x400, scoped, tag = 'input window, operand 24']
    #allocation32 [shape = 'u8[512]{0}', space=vmem, size = 0x400, scoped, tag = 'input window, operand 25, single buffered']
    #allocation33 [shape = 'u8[512]{0}', space=vmem, size = 0x400, scoped, tag = 'input window, operand 26, single buffered']
    #allocation34 [shape = 's32[1]{0}', space=sflag, size = 0x4, scoped, tag = 'scoped memory for tpu_custom_call.1']
    #allocation35 [shape = 'u8[8192]{0}', space=vmem, size = 0x2000, scoped, tag = 'output window, operand 0']
    %32 = vsyncpa [#allocation5], 0
    %s33 = scalar_lea.sflag [#allocation5], 1
    %34 = vsyncpa %s33, 0
    %35 = vsyncpa [#allocation8], 0
    %36 = vsyncpa [#allocation34], 0
    %37 = vsyncpa [#allocation6], 0
    %s38 = scalar_lea.sflag [#allocation6], 1
    %39 = vsyncpa %s38, 0
    loop: start=0, step=1, limit=6
    $region2: #{tpu_custom_call.1} parent=1 // loop_pre_header
      _
    $region3: #{tpu_custom_call.1} parent=1 // loop_header
      %s41 = sphi 0, %s45
      %p42 = scmp.ge.s32.totalorder %s41, 6
      %s48 = sphi 0, %s60
      %s49 = sphi 0, %s56
      %s50 = sphi 0, %s48
      %s51 = sphi 0, %s49
      %s52 = sphi 0, %s50
      %s53 = sphi 0, %s51
      %s63 = sphi 0, %s65
      %s66 = sphi 0, %s63
      %s67 = sphi 0, %s66
      %s83 = sphi 0, %s67
      %s87 = sphi 0, %s87
      %s89 = sphi 0, %s87
      %s90 = sphi 0, %s89
      %s104 = sphi 0, %s90
      %s110 = sphi 0, %s112
      %s113 = sphi 0, %s110
      %s114 = sphi 0, %s113
      %s130 = sphi 0, %s114
      %s136 = sphi 0, %s138
      %s139 = sphi 0, %s136
      %s140 = sphi 0, %s139
      %s156 = sphi 0, %s140
      %s162 = sphi 0, %s164
      %s165 = sphi 0, %s162
      %s166 = sphi 0, %s165
      %s182 = sphi 0, %s166
      %s188 = sphi 0, %s190
      %s191 = sphi 0, %s188
      %s192 = sphi 0, %s191
      %s208 = sphi 0, %s192
      %s214 = sphi 0, %s216
      %s217 = sphi 0, %s214
      %s218 = sphi 0, %s217
      %s234 = sphi 0, %s218
      %s240 = sphi 0, %s242
      %s243 = sphi 0, %s240
      %s244 = sphi 0, %s243
      %s260 = sphi 0, %s244
      %s266 = sphi 0, %s268
      %s269 = sphi 0, %s266
      %s270 = sphi 0, %s269
      %s286 = sphi 0, %s270
      %s292 = sphi 0, %s294
      %s295 = sphi 0, %s292
      %s296 = sphi 0, %s295
      %s312 = sphi 0, %s296
      %s318 = sphi 0, %s320
      %s321 = sphi 0, %s318
      %s322 = sphi 0, %s321
      %s338 = sphi 0, %s322
      %s344 = sphi 0, %s346
      %s347 = sphi 0, %s344
      %s348 = sphi 0, %s347
      %s364 = sphi 0, %s348
      %s370 = sphi 0, %s372
      %s373 = sphi 0, %s370
      %s374 = sphi 0, %s373
      %s390 = sphi 0, %s374
      %s396 = sphi 0, %s398
      %s399 = sphi 0, %s396
      %s400 = sphi 0, %s399
      %s416 = sphi 0, %s400
      %s422 = sphi 0, %s424
      %s425 = sphi 0, %s422
      %s426 = sphi 0, %s425
      %s442 = sphi 0, %s426
      %s448 = sphi 0, %s450
      %s451 = sphi 0, %s448
      %s452 = sphi 0, %s451
      %s468 = sphi 0, %s452
      %s474 = sphi 0, %s476
      %s477 = sphi 0, %s474
      %s478 = sphi 0, %s477
      %s494 = sphi 0, %s478
      %s500 = sphi 0, %s502
      %s503 = sphi 0, %s500
      %s504 = sphi 0, %s503
      %s520 = sphi 0, %s504
      %s526 = sphi 0, %s528
      %s529 = sphi 0, %s526
      %s530 = sphi 0, %s529
      %s546 = sphi 0, %s530
      %s552 = sphi 0, %s554
      %s555 = sphi 0, %s552
      %s556 = sphi 0, %s555
      %s572 = sphi 0, %s556
      %s578 = sphi 0, %s580
      %s581 = sphi 0, %s578
      %s582 = sphi 0, %s581
      %s598 = sphi 0, %s582
      %s604 = sphi 0, %s606
      %s607 = sphi 0, %s604
      %s608 = sphi 0, %s607
      %s624 = sphi 0, %s608
      %s630 = sphi 0, %s632
      %s633 = sphi 0, %s630
      %s634 = sphi 0, %s633
      %s650 = sphi 0, %s634
      %s656 = sphi 0, %s658
      %s659 = sphi 0, %s656
      %s660 = sphi 0, %s659
      %s676 = sphi 0, %s660
      %s682 = sphi 0, %s684
      %s685 = sphi 0, %s682
      %s686 = sphi 0, %s685
      %s702 = sphi 0, %s686
      %s706 = sphi 0, %s706
      %s708 = sphi 0, %s706
      %s709 = sphi 0, %s708
      %s723 = sphi 0, %s709
      %s727 = sphi 0, %s727
      %s729 = sphi 0, %s727
      %s730 = sphi 0, %s729
      %s744 = sphi 0, %s730
      %s750 = sphi 0, %s752
      %s753 = sphi 0, %s750
      %s754 = sphi 0, %s753
      %s770 = sphi 0, %s754
    $region4: #{tpu_custom_call.1} parent=1 // loop_header_branch
      %44 = sbr.rel (%p42) target = $region8
    $region5: #{tpu_custom_call.1} parent=1 // loop_body
      %s46 = ssub.s32 %s41, 1
      %s47 = ssub.s32 %s41, 2
      %s54 = sadd.s32 1, %s49
      %p55 = scmp.ge.s32.totalorder %s54, 2
      %s56 = scalar_select %p55, 0, %s54
      %s57 = sadd.s32 1, %s48
      %s58 = scalar_select %p55, %s57, %s48
      %p59 = scmp.ge.s32.totalorder %s58, 2
      %s60 = scalar_select %p59, 0, %s58
      %s61 = ssub.s32 %s48, %s60
      %p62 = scmp.eq.s32.totalorder %s61, 0
      %s64 = sadd.s32 %s63, 1
      %s65 = scalar_select %p62, %s63, %s64
      %p68 = pneg %p62
      %p69 = scmp.eq.s32.totalorder %s41, 3
      %p70 = por %p68, %p69
      %p71 = scmp.ne.s32.totalorder %s63, %s66
      %p72 = scmp.eq.s32.totalorder %s41, 0
      %p73 = por %p71, %p72
      %p74 = scmp.ne.s32.totalorder %s63, %s66
      %p75 = scmp.eq.s32.totalorder %s46, 3
      %p76 = por %p74, %p75
      %p77 = scmp.ne.s32.totalorder %s66, %s67
      %p78 = scmp.eq.s32.totalorder %s46, 0
      %p79 = por %p77, %p78
      %p80 = scmp.ne.s32.totalorder %s66, %s67
      %p81 = scmp.eq.s32.totalorder %s47, 3
      %p82 = por %p80, %p81
      %p84 = scmp.ne.s32.totalorder %s67, %s83
      %p85 = scmp.eq.s32.totalorder %s47, 0
      %p86 = por %p84, %p85
      %s88 = sadd.s32 %s87, 1
      %p91 = scmp.eq.s32.totalorder %s41, 3
      %p92 = scmp.ne.s32.totalorder %s87, %s89
      %p93 = scmp.eq.s32.totalorder %s41, 0
      %p94 = por %p92, %p93
      %p95 = scmp.ne.s32.totalorder %s87, %s89
      %p96 = scmp.eq.s32.totalorder %s46, 3
      %p97 = por %p95, %p96
      %p98 = scmp.ne.s32.totalorder %s89, %s90
      %p99 = scmp.eq.s32.totalorder %s46, 0
      %p100 = por %p98, %p99
      %p101 = scmp.ne.s32.totalorder %s89, %s90
      %p102 = scmp.eq.s32.totalorder %s47, 3
      %p103 = por %p101, %p102
      %p105 = scmp.ne.s32.totalorder %s90, %s104
      %p106 = scmp.eq.s32.totalorder %s47, 0
      %p107 = por %p105, %p106
      %s108 = ssub.s32 %s48, %s60
      %p109 = scmp.eq.s32.totalorder %s108, 0
      %s111 = sadd.s32 %s110, 1
      %s112 = scalar_select %p109, %s110, %s111
      %p115 = pneg %p109
      %p116 = scmp.eq.s32.totalorder %s41, 3
      %p117 = por %p115, %p116
      %p118 = scmp.ne.s32.totalorder %s110, %s113
      %p119 = scmp.eq.s32.totalorder %s41, 0
      %p120 = por %p118, %p119
      %p121 = scmp.ne.s32.totalorder %s110, %s113
      %p122 = scmp.eq.s32.totalorder %s46, 3
      %p123 = por %p121, %p122
      %p124 = scmp.ne.s32.totalorder %s113, %s114
      %p125 = scmp.eq.s32.totalorder %s46, 0
      %p126 = por %p124, %p125
      %p127 = scmp.ne.s32.totalorder %s113, %s114
      %p128 = scmp.eq.s32.totalorder %s47, 3
      %p129 = por %p127, %p128
      %p131 = scmp.ne.s32.totalorder %s114, %s130
      %p132 = scmp.eq.s32.totalorder %s47, 0
      %p133 = por %p131, %p132
      %s134 = ssub.s32 %s49, %s56
      %p135 = scmp.eq.s32.totalorder %s134, 0
      %s137 = sadd.s32 %s136, 1
      %s138 = scalar_select %p135, %s136, %s137
      %p141 = pneg %p135
      %p142 = scmp.eq.s32.totalorder %s41, 3
      %p143 = por %p141, %p142
      %p144 = scmp.ne.s32.totalorder %s136, %s139
      %p145 = scmp.eq.s32.totalorder %s41, 0
      %p146 = por %p144, %p145
      %p147 = scmp.ne.s32.totalorder %s136, %s139
      %p148 = scmp.eq.s32.totalorder %s46, 3
      %p149 = por %p147, %p148
      %p150 = scmp.ne.s32.totalorder %s139, %s140
      %p151 = scmp.eq.s32.totalorder %s46, 0
      %p152 = por %p150, %p151
      %p153 = scmp.ne.s32.totalorder %s139, %s140
      %p154 = scmp.eq.s32.totalorder %s47, 3
      %p155 = por %p153, %p154
      %p157 = scmp.ne.s32.totalorder %s140, %s156
      %p158 = scmp.eq.s32.totalorder %s47, 0
      %p159 = por %p157, %p158
      %s160 = ssub.s32 %s49, %s56
      %p161 = scmp.eq.s32.totalorder %s160, 0
      %s163 = sadd.s32 %s162, 1
      %s164 = scalar_select %p161, %s162, %s163
      %p167 = pneg %p161
      %p168 = scmp.eq.s32.totalorder %s41, 3
      %p169 = por %p167, %p168
      %p170 = scmp.ne.s32.totalorder %s162, %s165
      %p171 = scmp.eq.s32.totalorder %s41, 0
      %p172 = por %p170, %p171
      %p173 = scmp.ne.s32.totalorder %s162, %s165
      %p174 = scmp.eq.s32.totalorder %s46, 3
      %p175 = por %p173, %p174
      %p176 = scmp.ne.s32.totalorder %s165, %s166
      %p177 = scmp.eq.s32.totalorder %s46, 0
      %p178 = por %p176, %p177
      %p179 = scmp.ne.s32.totalorder %s165, %s166
      %p180 = scmp.eq.s32.totalorder %s47, 3
      %p181 = por %p179, %p180
      %p183 = scmp.ne.s32.totalorder %s166, %s182
      %p184 = scmp.eq.s32.totalorder %s47, 0
      %p185 = por %p183, %p184
      %s186 = ssub.s32 %s49, %s56
      %p187 = scmp.eq.s32.totalorder %s186, 0
      %s189 = sadd.s32 %s188, 1
      %s190 = scalar_select %p187, %s188, %s189
      %p193 = pneg %p187
      %p194 = scmp.eq.s32.totalorder %s41, 3
      %p195 = por %p193, %p194
      %p196 = scmp.ne.s32.totalorder %s188, %s191
      %p197 = scmp.eq.s32.totalorder %s41, 0
      %p198 = por %p196, %p197
      %p199 = scmp.ne.s32.totalorder %s188, %s191
      %p200 = scmp.eq.s32.totalorder %s46, 3
      %p201 = por %p199, %p200
      %p202 = scmp.ne.s32.totalorder %s191, %s192
      %p203 = scmp.eq.s32.totalorder %s46, 0
      %p204 = por %p202, %p203
      %p205 = scmp.ne.s32.totalorder %s191, %s192
      %p206 = scmp.eq.s32.totalorder %s47, 3
      %p207 = por %p205, %p206
      %p209 = scmp.ne.s32.totalorder %s192, %s208
      %p210 = scmp.eq.s32.totalorder %s47, 0
      %p211 = por %p209, %p210
      %s212 = ssub.s32 %s49, %s56
      %p213 = scmp.eq.s32.totalorder %s212, 0
      %s215 = sadd.s32 %s214, 1
      %s216 = scalar_select %p213, %s214, %s215
      %p219 = pneg %p213
      %p220 = scmp.eq.s32.totalorder %s41, 3
      %p221 = por %p219, %p220
      %p222 = scmp.ne.s32.totalorder %s214, %s217
      %p223 = scmp.eq.s32.totalorder %s41, 0
      %p224 = por %p222, %p223
      %p225 = scmp.ne.s32.totalorder %s214, %s217
      %p226 = scmp.eq.s32.totalorder %s46, 3
      %p227 = por %p225, %p226
      %p228 = scmp.ne.s32.totalorder %s217, %s218
      %p229 = scmp.eq.s32.totalorder %s46, 0
      %p230 = por %p228, %p229
      %p231 = scmp.ne.s32.totalorder %s217, %s218
      %p232 = scmp.eq.s32.totalorder %s47, 3
      %p233 = por %p231, %p232
      %p235 = scmp.ne.s32.totalorder %s218, %s234
      %p236 = scmp.eq.s32.totalorder %s47, 0
      %p237 = por %p235, %p236
      %s238 = ssub.s32 %s49, %s56
      %p239 = scmp.eq.s32.totalorder %s238, 0
      %s241 = sadd.s32 %s240, 1
      %s242 = scalar_select %p239, %s240, %s241
      %p245 = pneg %p239
      %p246 = scmp.eq.s32.totalorder %s41, 3
      %p247 = por %p245, %p246
      %p248 = scmp.ne.s32.totalorder %s240, %s243
      %p249 = scmp.eq.s32.totalorder %s41, 0
      %p250 = por %p248, %p249
      %p251 = scmp.ne.s32.totalorder %s240, %s243
      %p252 = scmp.eq.s32.totalorder %s46, 3
      %p253 = por %p251, %p252
      %p254 = scmp.ne.s32.totalorder %s243, %s244
      %p255 = scmp.eq.s32.totalorder %s46, 0
      %p256 = por %p254, %p255
      %p257 = scmp.ne.s32.totalorder %s243, %s244
      %p258 = scmp.eq.s32.totalorder %s47, 3
      %p259 = por %p257, %p258
      %p261 = scmp.ne.s32.totalorder %s244, %s260
      %p262 = scmp.eq.s32.totalorder %s47, 0
      %p263 = por %p261, %p262
      %s264 = ssub.s32 %s49, %s56
      %p265 = scmp.eq.s32.totalorder %s264, 0
      %s267 = sadd.s32 %s266, 1
      %s268 = scalar_select %p265, %s266, %s267
      %p271 = pneg %p265
      %p272 = scmp.eq.s32.totalorder %s41, 3
      %p273 = por %p271, %p272
      %p274 = scmp.ne.s32.totalorder %s266, %s269
      %p275 = scmp.eq.s32.totalorder %s41, 0
      %p276 = por %p274, %p275
      %p277 = scmp.ne.s32.totalorder %s266, %s269
      %p278 = scmp.eq.s32.totalorder %s46, 3
      %p279 = por %p277, %p278
      %p280 = scmp.ne.s32.totalorder %s269, %s270
      %p281 = scmp.eq.s32.totalorder %s46, 0
      %p282 = por %p280, %p281
      %p283 = scmp.ne.s32.totalorder %s269, %s270
      %p284 = scmp.eq.s32.totalorder %s47, 3
      %p285 = por %p283, %p284
      %p287 = scmp.ne.s32.totalorder %s270, %s286
      %p288 = scmp.eq.s32.totalorder %s47, 0
      %p289 = por %p287, %p288
      %s290 = ssub.s32 %s49, %s56
      %p291 = scmp.eq.s32.totalorder %s290, 0
      %s293 = sadd.s32 %s292, 1
      %s294 = scalar_select %p291, %s292, %s293
      %p297 = pneg %p291
      %p298 = scmp.eq.s32.totalorder %s41, 3
      %p299 = por %p297, %p298
      %p300 = scmp.ne.s32.totalorder %s292, %s295
      %p301 = scmp.eq.s32.totalorder %s41, 0
      %p302 = por %p300, %p301
      %p303 = scmp.ne.s32.totalorder %s292, %s295
      %p304 = scmp.eq.s32.totalorder %s46, 3
      %p305 = por %p303, %p304
      %p306 = scmp.ne.s32.totalorder %s295, %s296
      %p307 = scmp.eq.s32.totalorder %s46, 0
      %p308 = por %p306, %p307
      %p309 = scmp.ne.s32.totalorder %s295, %s296
      %p310 = scmp.eq.s32.totalorder %s47, 3
      %p311 = por %p309, %p310
      %p313 = scmp.ne.s32.totalorder %s296, %s312
      %p314 = scmp.eq.s32.totalorder %s47, 0
      %p315 = por %p313, %p314
      %s316 = ssub.s32 %s49, %s56
      %p317 = scmp.eq.s32.totalorder %s316, 0
      %s319 = sadd.s32 %s318, 1
      %s320 = scalar_select %p317, %s318, %s319
      %p323 = pneg %p317
      %p324 = scmp.eq.s32.totalorder %s41, 3
      %p325 = por %p323, %p324
      %p326 = scmp.ne.s32.totalorder %s318, %s321
      %p327 = scmp.eq.s32.totalorder %s41, 0
      %p328 = por %p326, %p327
      %p329 = scmp.ne.s32.totalorder %s318, %s321
      %p330 = scmp.eq.s32.totalorder %s46, 3
      %p331 = por %p329, %p330
      %p332 = scmp.ne.s32.totalorder %s321, %s322
      %p333 = scmp.eq.s32.totalorder %s46, 0
      %p334 = por %p332, %p333
      %p335 = scmp.ne.s32.totalorder %s321, %s322
      %p336 = scmp.eq.s32.totalorder %s47, 3
      %p337 = por %p335, %p336
      %p339 = scmp.ne.s32.totalorder %s322, %s338
      %p340 = scmp.eq.s32.totalorder %s47, 0
      %p341 = por %p339, %p340
      %s342 = ssub.s32 %s49, %s56
      %p343 = scmp.eq.s32.totalorder %s342, 0
      %s345 = sadd.s32 %s344, 1
      %s346 = scalar_select %p343, %s344, %s345
      %p349 = pneg %p343
      %p350 = scmp.eq.s32.totalorder %s41, 3
      %p351 = por %p349, %p350
      %p352 = scmp.ne.s32.totalorder %s344, %s347
      %p353 = scmp.eq.s32.totalorder %s41, 0
      %p354 = por %p352, %p353
      %p355 = scmp.ne.s32.totalorder %s344, %s347
      %p356 = scmp.eq.s32.totalorder %s46, 3
      %p357 = por %p355, %p356
      %p358 = scmp.ne.s32.totalorder %s347, %s348
      %p359 = scmp.eq.s32.totalorder %s46, 0
      %p360 = por %p358, %p359
      %p361 = scmp.ne.s32.totalorder %s347, %s348
      %p362 = scmp.eq.s32.totalorder %s47, 3
      %p363 = por %p361, %p362
      %p365 = scmp.ne.s32.totalorder %s348, %s364
      %p366 = scmp.eq.s32.totalorder %s47, 0
      %p367 = por %p365, %p366
      %s368 = ssub.s32 %s49, %s56
      %p369 = scmp.eq.s32.totalorder %s368, 0
      %s371 = sadd.s32 %s370, 1
      %s372 = scalar_select %p369, %s370, %s371
      %p375 = pneg %p369
      %p376 = scmp.eq.s32.totalorder %s41, 3
      %p377 = por %p375, %p376
      %p378 = scmp.ne.s32.totalorder %s370, %s373
      %p379 = scmp.eq.s32.totalorder %s41, 0
      %p380 = por %p378, %p379
      %p381 = scmp.ne.s32.totalorder %s370, %s373
      %p382 = scmp.eq.s32.totalorder %s46, 3
      %p383 = por %p381, %p382
      %p384 = scmp.ne.s32.totalorder %s373, %s374
      %p385 = scmp.eq.s32.totalorder %s46, 0
      %p386 = por %p384, %p385
      %p387 = scmp.ne.s32.totalorder %s373, %s374
      %p388 = scmp.eq.s32.totalorder %s47, 3
      %p389 = por %p387, %p388
      %p391 = scmp.ne.s32.totalorder %s374, %s390
      %p392 = scmp.eq.s32.totalorder %s47, 0
      %p393 = por %p391, %p392
      %s394 = ssub.s32 %s49, %s56
      %p395 = scmp.eq.s32.totalorder %s394, 0
      %s397 = sadd.s32 %s396, 1
      %s398 = scalar_select %p395, %s396, %s397
      %p401 = pneg %p395
      %p402 = scmp.eq.s32.totalorder %s41, 3
      %p403 = por %p401, %p402
      %p404 = scmp.ne.s32.totalorder %s396, %s399
      %p405 = scmp.eq.s32.totalorder %s41, 0
      %p406 = por %p404, %p405
      %p407 = scmp.ne.s32.totalorder %s396, %s399
      %p408 = scmp.eq.s32.totalorder %s46, 3
      %p409 = por %p407, %p408
      %p410 = scmp.ne.s32.totalorder %s399, %s400
      %p411 = scmp.eq.s32.totalorder %s46, 0
      %p412 = por %p410, %p411
      %p413 = scmp.ne.s32.totalorder %s399, %s400
      %p414 = scmp.eq.s32.totalorder %s47, 3
      %p415 = por %p413, %p414
      %p417 = scmp.ne.s32.totalorder %s400, %s416
      %p418 = scmp.eq.s32.totalorder %s47, 0
      %p419 = por %p417, %p418
      %s420 = ssub.s32 %s49, %s56
      %p421 = scmp.eq.s32.totalorder %s420, 0
      %s423 = sadd.s32 %s422, 1
      %s424 = scalar_select %p421, %s422, %s423
      %p427 = pneg %p421
      %p428 = scmp.eq.s32.totalorder %s41, 3
      %p429 = por %p427, %p428
      %p430 = scmp.ne.s32.totalorder %s422, %s425
      %p431 = scmp.eq.s32.totalorder %s41, 0
      %p432 = por %p430, %p431
      %p433 = scmp.ne.s32.totalorder %s422, %s425
      %p434 = scmp.eq.s32.totalorder %s46, 3
      %p435 = por %p433, %p434
      %p436 = scmp.ne.s32.totalorder %s425, %s426
      %p437 = scmp.eq.s32.totalorder %s46, 0
      %p438 = por %p436, %p437
      %p439 = scmp.ne.s32.totalorder %s425, %s426
      %p440 = scmp.eq.s32.totalorder %s47, 3
      %p441 = por %p439, %p440
      %p443 = scmp.ne.s32.totalorder %s426, %s442
      %p444 = scmp.eq.s32.totalorder %s47, 0
      %p445 = por %p443, %p444
      %s446 = ssub.s32 %s49, %s56
      %p447 = scmp.eq.s32.totalorder %s446, 0
      %s449 = sadd.s32 %s448, 1
      %s450 = scalar_select %p447, %s448, %s449
      %p453 = pneg %p447
      %p454 = scmp.eq.s32.totalorder %s41, 3
      %p455 = por %p453, %p454
      %p456 = scmp.ne.s32.totalorder %s448, %s451
      %p457 = scmp.eq.s32.totalorder %s41, 0
      %p458 = por %p456, %p457
      %p459 = scmp.ne.s32.totalorder %s448, %s451
      %p460 = scmp.eq.s32.totalorder %s46, 3
      %p461 = por %p459, %p460
      %p462 = scmp.ne.s32.totalorder %s451, %s452
      %p463 = scmp.eq.s32.totalorder %s46, 0
      %p464 = por %p462, %p463
      %p465 = scmp.ne.s32.totalorder %s451, %s452
      %p466 = scmp.eq.s32.totalorder %s47, 3
      %p467 = por %p465, %p466
      %p469 = scmp.ne.s32.totalorder %s452, %s468
      %p470 = scmp.eq.s32.totalorder %s47, 0
      %p471 = por %p469, %p470
      %s472 = ssub.s32 %s49, %s56
      %p473 = scmp.eq.s32.totalorder %s472, 0
      %s475 = sadd.s32 %s474, 1
      %s476 = scalar_select %p473, %s474, %s475
      %p479 = pneg %p473
      %p480 = scmp.eq.s32.totalorder %s41, 3
      %p481 = por %p479, %p480
      %p482 = scmp.ne.s32.totalorder %s474, %s477
      %p483 = scmp.eq.s32.totalorder %s41, 0
      %p484 = por %p482, %p483
      %p485 = scmp.ne.s32.totalorder %s474, %s477
      %p486 = scmp.eq.s32.totalorder %s46, 3
      %p487 = por %p485, %p486
      %p488 = scmp.ne.s32.totalorder %s477, %s478
      %p489 = scmp.eq.s32.totalorder %s46, 0
      %p490 = por %p488, %p489
      %p491 = scmp.ne.s32.totalorder %s477, %s478
      %p492 = scmp.eq.s32.totalorder %s47, 3
      %p493 = por %p491, %p492
      %p495 = scmp.ne.s32.totalorder %s478, %s494
      %p496 = scmp.eq.s32.totalorder %s47, 0
      %p497 = por %p495, %p496
      %s498 = ssub.s32 %s49, %s56
      %p499 = scmp.eq.s32.totalorder %s498, 0
      %s501 = sadd.s32 %s500, 1
      %s502 = scalar_select %p499, %s500, %s501
      %p505 = pneg %p499
      %p506 = scmp.eq.s32.totalorder %s41, 3
      %p507 = por %p505, %p506
      %p508 = scmp.ne.s32.totalorder %s500, %s503
      %p509 = scmp.eq.s32.totalorder %s41, 0
      %p510 = por %p508, %p509
      %p511 = scmp.ne.s32.totalorder %s500, %s503
      %p512 = scmp.eq.s32.totalorder %s46, 3
      %p513 = por %p511, %p512
      %p514 = scmp.ne.s32.totalorder %s503, %s504
      %p515 = scmp.eq.s32.totalorder %s46, 0
      %p516 = por %p514, %p515
      %p517 = scmp.ne.s32.totalorder %s503, %s504
      %p518 = scmp.eq.s32.totalorder %s47, 3
      %p519 = por %p517, %p518
      %p521 = scmp.ne.s32.totalorder %s504, %s520
      %p522 = scmp.eq.s32.totalorder %s47, 0
      %p523 = por %p521, %p522
      %s524 = ssub.s32 %s49, %s56
      %p525 = scmp.eq.s32.totalorder %s524, 0
      %s527 = sadd.s32 %s526, 1
      %s528 = scalar_select %p525, %s526, %s527
      %p531 = pneg %p525
      %p532 = scmp.eq.s32.totalorder %s41, 3
      %p533 = por %p531, %p532
      %p534 = scmp.ne.s32.totalorder %s526, %s529
      %p535 = scmp.eq.s32.totalorder %s41, 0
      %p536 = por %p534, %p535
      %p537 = scmp.ne.s32.totalorder %s526, %s529
      %p538 = scmp.eq.s32.totalorder %s46, 3
      %p539 = por %p537, %p538
      %p540 = scmp.ne.s32.totalorder %s529, %s530
      %p541 = scmp.eq.s32.totalorder %s46, 0
      %p542 = por %p540, %p541
      %p543 = scmp.ne.s32.totalorder %s529, %s530
      %p544 = scmp.eq.s32.totalorder %s47, 3
      %p545 = por %p543, %p544
      %p547 = scmp.ne.s32.totalorder %s530, %s546
      %p548 = scmp.eq.s32.totalorder %s47, 0
      %p549 = por %p547, %p548
      %s550 = ssub.s32 %s49, %s56
      %p551 = scmp.eq.s32.totalorder %s550, 0
      %s553 = sadd.s32 %s552, 1
      %s554 = scalar_select %p551, %s552, %s553
      %p557 = pneg %p551
      %p558 = scmp.eq.s32.totalorder %s41, 3
      %p559 = por %p557, %p558
      %p560 = scmp.ne.s32.totalorder %s552, %s555
      %p561 = scmp.eq.s32.totalorder %s41, 0
      %p562 = por %p560, %p561
      %p563 = scmp.ne.s32.totalorder %s552, %s555
      %p564 = scmp.eq.s32.totalorder %s46, 3
      %p565 = por %p563, %p564
      %p566 = scmp.ne.s32.totalorder %s555, %s556
      %p567 = scmp.eq.s32.totalorder %s46, 0
      %p568 = por %p566, %p567
      %p569 = scmp.ne.s32.totalorder %s555, %s556
      %p570 = scmp.eq.s32.totalorder %s47, 3
      %p571 = por %p569, %p570
      %p573 = scmp.ne.s32.totalorder %s556, %s572
      %p574 = scmp.eq.s32.totalorder %s47, 0
      %p575 = por %p573, %p574
      %s576 = ssub.s32 %s49, %s56
      %p577 = scmp.eq.s32.totalorder %s576, 0
      %s579 = sadd.s32 %s578, 1
      %s580 = scalar_select %p577, %s578, %s579
      %p583 = pneg %p577
      %p584 = scmp.eq.s32.totalorder %s41, 3
      %p585 = por %p583, %p584
      %p586 = scmp.ne.s32.totalorder %s578, %s581
      %p587 = scmp.eq.s32.totalorder %s41, 0
      %p588 = por %p586, %p587
      %p589 = scmp.ne.s32.totalorder %s578, %s581
      %p590 = scmp.eq.s32.totalorder %s46, 3
      %p591 = por %p589, %p590
      %p592 = scmp.ne.s32.totalorder %s581, %s582
      %p593 = scmp.eq.s32.totalorder %s46, 0
      %p594 = por %p592, %p593
      %p595 = scmp.ne.s32.totalorder %s581, %s582
      %p596 = scmp.eq.s32.totalorder %s47, 3
      %p597 = por %p595, %p596
      %p599 = scmp.ne.s32.totalorder %s582, %s598
      %p600 = scmp.eq.s32.totalorder %s47, 0
      %p601 = por %p599, %p600
      %s602 = ssub.s32 %s49, %s56
      %p603 = scmp.eq.s32.totalorder %s602, 0
      %s605 = sadd.s32 %s604, 1
      %s606 = scalar_select %p603, %s604, %s605
      %p609 = pneg %p603
      %p610 = scmp.eq.s32.totalorder %s41, 3
      %p611 = por %p609, %p610
      %p612 = scmp.ne.s32.totalorder %s604, %s607
      %p613 = scmp.eq.s32.totalorder %s41, 0
      %p614 = por %p612, %p613
      %p615 = scmp.ne.s32.totalorder %s604, %s607
      %p616 = scmp.eq.s32.totalorder %s46, 3
      %p617 = por %p615, %p616
      %p618 = scmp.ne.s32.totalorder %s607, %s608
      %p619 = scmp.eq.s32.totalorder %s46, 0
      %p620 = por %p618, %p619
      %p621 = scmp.ne.s32.totalorder %s607, %s608
      %p622 = scmp.eq.s32.totalorder %s47, 3
      %p623 = por %p621, %p622
      %p625 = scmp.ne.s32.totalorder %s608, %s624
      %p626 = scmp.eq.s32.totalorder %s47, 0
      %p627 = por %p625, %p626
      %s628 = ssub.s32 %s49, %s56
      %p629 = scmp.eq.s32.totalorder %s628, 0
      %s631 = sadd.s32 %s630, 1
      %s632 = scalar_select %p629, %s630, %s631
      %p635 = pneg %p629
      %p636 = scmp.eq.s32.totalorder %s41, 3
      %p637 = por %p635, %p636
      %p638 = scmp.ne.s32.totalorder %s630, %s633
      %p639 = scmp.eq.s32.totalorder %s41, 0
      %p640 = por %p638, %p639
      %p641 = scmp.ne.s32.totalorder %s630, %s633
      %p642 = scmp.eq.s32.totalorder %s46, 3
      %p643 = por %p641, %p642
      %p644 = scmp.ne.s32.totalorder %s633, %s634
      %p645 = scmp.eq.s32.totalorder %s46, 0
      %p646 = por %p644, %p645
      %p647 = scmp.ne.s32.totalorder %s633, %s634
      %p648 = scmp.eq.s32.totalorder %s47, 3
      %p649 = por %p647, %p648
      %p651 = scmp.ne.s32.totalorder %s634, %s650
      %p652 = scmp.eq.s32.totalorder %s47, 0
      %p653 = por %p651, %p652
      %s654 = ssub.s32 %s49, %s56
      %p655 = scmp.eq.s32.totalorder %s654, 0
      %s657 = sadd.s32 %s656, 1
      %s658 = scalar_select %p655, %s656, %s657
      %p661 = pneg %p655
      %p662 = scmp.eq.s32.totalorder %s41, 3
      %p663 = por %p661, %p662
      %p664 = scmp.ne.s32.totalorder %s656, %s659
      %p665 = scmp.eq.s32.totalorder %s41, 0
      %p666 = por %p664, %p665
      %p667 = scmp.ne.s32.totalorder %s656, %s659
      %p668 = scmp.eq.s32.totalorder %s46, 3
      %p669 = por %p667, %p668
      %p670 = scmp.ne.s32.totalorder %s659, %s660
      %p671 = scmp.eq.s32.totalorder %s46, 0
      %p672 = por %p670, %p671
      %p673 = scmp.ne.s32.totalorder %s659, %s660
      %p674 = scmp.eq.s32.totalorder %s47, 3
      %p675 = por %p673, %p674
      %p677 = scmp.ne.s32.totalorder %s660, %s676
      %p678 = scmp.eq.s32.totalorder %s47, 0
      %p679 = por %p677, %p678
      %s680 = ssub.s32 %s49, %s56
      %p681 = scmp.eq.s32.totalorder %s680, 0
      %s683 = sadd.s32 %s682, 1
      %s684 = scalar_select %p681, %s682, %s683
      %p687 = pneg %p681
      %p688 = scmp.eq.s32.totalorder %s41, 3
      %p689 = por %p687, %p688
      %p690 = scmp.ne.s32.totalorder %s682, %s685
      %p691 = scmp.eq.s32.totalorder %s41, 0
      %p692 = por %p690, %p691
      %p693 = scmp.ne.s32.totalorder %s682, %s685
      %p694 = scmp.eq.s32.totalorder %s46, 3
      %p695 = por %p693, %p694
      %p696 = scmp.ne.s32.totalorder %s685, %s686
      %p697 = scmp.eq.s32.totalorder %s46, 0
      %p698 = por %p696, %p697
      %p699 = scmp.ne.s32.totalorder %s685, %s686
      %p700 = scmp.eq.s32.totalorder %s47, 3
      %p701 = por %p699, %p700
      %p703 = scmp.ne.s32.totalorder %s686, %s702
      %p704 = scmp.eq.s32.totalorder %s47, 0
      %p705 = por %p703, %p704
      %s707 = sadd.s32 %s706, 1
      %p710 = scmp.eq.s32.totalorder %s41, 3
      %p711 = scmp.ne.s32.totalorder %s706, %s708
      %p712 = scmp.eq.s32.totalorder %s41, 0
      %p713 = por %p711, %p712
      %p714 = scmp.ne.s32.totalorder %s706, %s708
      %p715 = scmp.eq.s32.totalorder %s46, 3
      %p716 = por %p714, %p715
      %p717 = scmp.ne.s32.totalorder %s708, %s709
      %p718 = scmp.eq.s32.totalorder %s46, 0
      %p719 = por %p717, %p718
      %p720 = scmp.ne.s32.totalorder %s708, %s709
      %p721 = scmp.eq.s32.totalorder %s47, 3
      %p722 = por %p720, %p721
      %p724 = scmp.ne.s32.totalorder %s709, %s723
      %p725 = scmp.eq.s32.totalorder %s47, 0
      %p726 = por %p724, %p725
      %s728 = sadd.s32 %s727, 1
      %p731 = scmp.eq.s32.totalorder %s41, 3
      %p732 = scmp.ne.s32.totalorder %s727, %s729
      %p733 = scmp.eq.s32.totalorder %s41, 0
      %p734 = por %p732, %p733
      %p735 = scmp.ne.s32.totalorder %s727, %s729
      %p736 = scmp.eq.s32.totalorder %s46, 3
      %p737 = por %p735, %p736
      %p738 = scmp.ne.s32.totalorder %s729, %s730
      %p739 = scmp.eq.s32.totalorder %s46, 0
      %p740 = por %p738, %p739
      %p741 = scmp.ne.s32.totalorder %s729, %s730
      %p742 = scmp.eq.s32.totalorder %s47, 3
      %p743 = por %p741, %p742
      %p745 = scmp.ne.s32.totalorder %s730, %s744
      %p746 = scmp.eq.s32.totalorder %s47, 0
      %p747 = por %p745, %p746
      %s748 = ssub.s32 %s48, %s60
      %p749 = scmp.eq.s32.totalorder %s748, 0
      %s751 = sadd.s32 %s750, 1
      %s752 = scalar_select %p749, %s750, %s751
      %p755 = pneg %p749
      %p756 = scmp.eq.s32.totalorder %s41, 3
      %p757 = por %p755, %p756
      %p758 = scmp.ne.s32.totalorder %s750, %s753
      %p759 = scmp.eq.s32.totalorder %s41, 0
      %p760 = por %p758, %p759
      %p761 = scmp.ne.s32.totalorder %s750, %s753
      %p762 = scmp.eq.s32.totalorder %s46, 3
      %p763 = por %p761, %p762
      %p764 = scmp.ne.s32.totalorder %s753, %s754
      %p765 = scmp.eq.s32.totalorder %s46, 0
      %p766 = por %p764, %p765
      %p767 = scmp.ne.s32.totalorder %s753, %s754
      %p768 = scmp.eq.s32.totalorder %s47, 3
      %p769 = por %p767, %p768
      %p771 = scmp.ne.s32.totalorder %s754, %s770
      %p772 = scmp.eq.s32.totalorder %s47, 0
      %p773 = por %p771, %p772
      %p774 = scmp.le.s32.totalorder 1, %s41
      %p775 = scmp.lt.s32.totalorder %s41, 5
      %p776 = pnand %p774, %p775
      %p777 = pneg %p776
      // Predicated region
      $region9: #{tpu_custom_call.1} parent=5 // pred_check
        _
      $region10: #{tpu_custom_call.1} parent=5 // pred_check_branch
        %779 = sbr.rel (%p776) target = $region12
      $region11: #{tpu_custom_call.1} parent=5 // pred_region
        %s780 = ssub.s32 %s41, 1
        // Predicated region
        $region13: #{tpu_custom_call.1} parent=11 // pred_check
          %p781 = pneg %p100
        $region14: #{tpu_custom_call.1} parent=11 // pred_check_branch
          %783 = sbr.rel (%p781) target = $region16
        $region15: #{tpu_custom_call.1} parent=11 // pred_region
          %s785 = ssub.s32 128, 128
          %786 = vsyncadd [#allocation8], %s785
          %s788 = sshll.u32 [#allocation7], 4
          %s789 = int_to_ptr.vmem [resolvable:$true] %s788
          %791 = dma.hbm_to_vmem [thread:$0]  %s1, 128, %s789, [#allocation8]
        $region16: #{tpu_custom_call.1} parent=11 // pred_fallthru
          _
        // Predicated region
        $region17: #{tpu_custom_call.1} parent=11 // pred_check
          %p792 = pneg %p719
        $region18: #{tpu_custom_call.1} parent=11 // pred_check_branch
          %794 = sbr.rel (%p792) target = $region20
        $region19: #{tpu_custom_call.1} parent=11 // pred_region
          %s796 = ssub.s32 16, 16
          %797 = vsyncadd [#allocation8], %s796
          %s799 = sshll.u32 [#allocation32], 4
          %s800 = int_to_ptr.vmem [resolvable:$true] %s799
          %802 = dma.hbm_to_vmem [thread:$0]  %s25, 16, %s800, [#allocation8]
        $region20: #{tpu_custom_call.1} parent=11 // pred_fallthru
          _
        // Predicated region
        $region21: #{tpu_custom_call.1} parent=11 // pred_check
          %p803 = pneg %p740
        $region22: #{tpu_custom_call.1} parent=11 // pred_check_branch
          %805 = sbr.rel (%p803) target = $region24
        $region23: #{tpu_custom_call.1} parent=11 // pred_region
          %s807 = ssub.s32 16, 16
          %808 = vsyncadd [#allocation34], %s807
          %s810 = sshll.u32 [#allocation33], 4
          %s811 = int_to_ptr.vmem [resolvable:$true] %s810
          %813 = dma.hbm_to_vmem [thread:$0]  %s26, 16, %s811, [#allocation34]
        $region24: #{tpu_custom_call.1} parent=11 // pred_fallthru
          _
      $region12: #{tpu_custom_call.1} parent=5 // pred_fallthru
        _
      %p814 = scmp.lt.s32.totalorder %s41, 4
      // Predicated region
      $region25: #{tpu_custom_call.1} parent=5 // pred_check
        %p815 = pneg %p814
      $region26: #{tpu_custom_call.1} parent=5 // pred_check_branch
        %817 = sbr.rel (%p815) target = $region28
      $region27: #{tpu_custom_call.1} parent=5 // pred_region
        // Predicated region
        $region29: #{tpu_custom_call.1} parent=27 // pred_check
          %p818 = pneg %p73
        $region30: #{tpu_custom_call.1} parent=27 // pred_check_branch
          %820 = sbr.rel (%p818) target = $region32
        $region31: #{tpu_custom_call.1} parent=27 // pred_region
          %s821 = sand.u32 %s41, 1
          %s822 = scalar_lea.sflag [#allocation5], %s821
          %s823 = sand.u32 %s63, 1
          %s824 = smul.addr %s823, 8
          %s825 = scalar_lea.vmem [#allocation4], %s824
          %s827 = ssub.s32 128, 128
          %828 = vsyncadd %s822, %s827
          %s829 = smul.addr %s48, 128
          %s830 = scalar_lea.hbm %s0, %s829
          %s832 = sshll.u32 %s825, 4
          %s833 = int_to_ptr.vmem [resolvable:$true] %s832
          %835 = dma.hbm_to_vmem [thread:$0]  %s830, 128, %s833, %s822
        $region32: #{tpu_custom_call.1} parent=27 // pred_fallthru
          _
        // Predicated region
        $region33: #{tpu_custom_call.1} parent=27 // pred_check
          %p836 = pneg %p120
        $region34: #{tpu_custom_call.1} parent=27 // pred_check_branch
          %838 = sbr.rel (%p836) target = $region36
        $region35: #{tpu_custom_call.1} parent=27 // pred_region
          %s839 = sand.u32 %s41, 1
          %s840 = scalar_lea.sflag [#allocation5], %s839
          %s841 = sand.u32 %s110, 1
          %s842 = scalar_lea.vmem [#allocation9], %s841
          %s844 = ssub.s32 16, 16
          %845 = vsyncadd %s840, %s844
          %s846 = smul.addr %s48, 16
          %s847 = scalar_lea.hbm %s2, %s846
          %s849 = sshll.u32 %s842, 4
          %s850 = int_to_ptr.vmem [resolvable:$true] %s849
          %852 = dma.hbm_to_vmem [thread:$0]  %s847, 16, %s850, %s840
        $region36: #{tpu_custom_call.1} parent=27 // pred_fallthru
          _
        // Predicated region
        $region37: #{tpu_custom_call.1} parent=27 // pred_check
          %p853 = pneg %p146
        $region38: #{tpu_custom_call.1} parent=27 // pred_check_branch
          %855 = sbr.rel (%p853) target = $region40
        $region39: #{tpu_custom_call.1} parent=27 // pred_region
          %s856 = sand.u32 %s41, 1
          %s857 = scalar_lea.sflag [#allocation5], %s856
          %s858 = sand.u32 %s136, 1
          %s859 = scalar_lea.vmem [#allocation10], %s858
          %s861 = ssub.s32 16, 16
          %862 = vsyncadd %s857, %s861
          %s863 = smul.addr %s49, 16
          %s864 = scalar_lea.hbm %s3, %s863
          %s866 = sshll.u32 %s859, 4
          %s867 = int_to_ptr.vmem [resolvable:$true] %s866
          %869 = dma.hbm_to_vmem [thread:$0]  %s864, 16, %s867, %s857
        $region40: #{tpu_custom_call.1} parent=27 // pred_fallthru
          _
        // Predicated region
        $region41: #{tpu_custom_call.1} parent=27 // pred_check
          %p870 = pneg %p172
        $region42: #{tpu_custom_call.1} parent=27 // pred_check_branch
          %872 = sbr.rel (%p870) target = $region44
        $region43: #{tpu_custom_call.1} parent=27 // pred_region
          %s873 = sand.u32 %s41, 1
          %s874 = scalar_lea.sflag [#allocation5], %s873
          %s875 = sand.u32 %s162, 1
          %s876 = scalar_lea.vmem [#allocation11], %s875
          %s878 = ssub.s32 16, 16
          %879 = vsyncadd %s874, %s878
          %s880 = smul.addr %s49, 16
          %s881 = scalar_lea.hbm %s4, %s880
          %s883 = sshll.u32 %s876, 4
          %s884 = int_to_ptr.vmem [resolvable:$true] %s883
          %886 = dma.hbm_to_vmem [thread:$0]  %s881, 16, %s884, %s874
        $region44: #{tpu_custom_call.1} parent=27 // pred_fallthru
          _
        // Predicated region
        $region45: #{tpu_custom_call.1} parent=27 // pred_check
          %p887 = pneg %p198
        $region46: #{tpu_custom_call.1} parent=27 // pred_check_branch
          %889 = sbr.rel (%p887) target = $region48
        $region47: #{tpu_custom_call.1} parent=27 // pred_region
          %s890 = sand.u32 %s41, 1
          %s891 = scalar_lea.sflag [#allocation5], %s890
          %s892 = sand.u32 %s188, 1
          %s893 = smul.addr %s892, 16
          %s894 = scalar_lea.vmem [#allocation12], %s893
          %s896 = ssub.s32 256, 256
          %897 = vsyncadd %s891, %s896
          %s898 = smul.addr %s49, 4
          %s899 = smul.addr %s898, 64
          %s900 = scalar_lea.hbm %s5, %s899
          %s901 = sshll.u32 %s894, 4
          %s902 = int_to_ptr.vmem [resolvable:$true] %s901
          %907 = dma.hbm_to_vmem [thread:$0]  %s900, 256, %s902, %s891, 64, 64, 4
        $region48: #{tpu_custom_call.1} parent=27 // pred_fallthru
          _
        // Predicated region
        $region49: #{tpu_custom_call.1} parent=27 // pred_check
          %p908 = pneg %p224
        $region50: #{tpu_custom_call.1} parent=27 // pred_check_branch
          %910 = sbr.rel (%p908) target = $region52
        $region51: #{tpu_custom_call.1} parent=27 // pred_region
          %s911 = sand.u32 %s41, 1
          %s912 = scalar_lea.sflag [#allocation5], %s911
          %s913 = sand.u32 %s214, 1
          %s914 = scalar_lea.vmem [#allocation13], %s913
          %s916 = ssub.s32 16, 16
          %917 = vsyncadd %s912, %s916
          %s918 = smul.addr %s49, 16
          %s919 = scalar_lea.hbm %s6, %s918
          %s921 = sshll.u32 %s914, 4
          %s922 = int_to_ptr.vmem [resolvable:$true] %s921
          %924 = dma.hbm_to_vmem [thread:$0]  %s919, 16, %s922, %s912
        $region52: #{tpu_custom_call.1} parent=27 // pred_fallthru
          _
        // Predicated region
        $region53: #{tpu_custom_call.1} parent=27 // pred_check
          %p925 = pneg %p250
        $region54: #{tpu_custom_call.1} parent=27 // pred_check_branch
          %927 = sbr.rel (%p925) target = $region56
        $region55: #{tpu_custom_call.1} parent=27 // pred_region
          %s928 = sand.u32 %s41, 1
          %s929 = scalar_lea.sflag [#allocation5], %s928
          %s930 = sand.u32 %s240, 1
          %s931 = smul.addr %s930, 16
          %s932 = scalar_lea.vmem [#allocation14], %s931
          %s934 = ssub.s32 256, 256
          %935 = vsyncadd %s929, %s934
          %s936 = smul.addr %s49, 4
          %s937 = smul.addr %s936, 64
          %s938 = scalar_lea.hbm %s7, %s937
          %s939 = sshll.u32 %s932, 4
          %s940 = int_to_ptr.vmem [resolvable:$true] %s939
          %945 = dma.hbm_to_vmem [thread:$0]  %s938, 256, %s940, %s929, 64, 64, 4
        $region56: #{tpu_custom_call.1} parent=27 // pred_fallthru
          _
        // Predicated region
        $region57: #{tpu_custom_call.1} parent=27 // pred_check
          %p946 = pneg %p276
        $region58: #{tpu_custom_call.1} parent=27 // pred_check_branch
          %948 = sbr.rel (%p946) target = $region60
        $region59: #{tpu_custom_call.1} parent=27 // pred_region
          %s949 = sand.u32 %s41, 1
          %s950 = scalar_lea.sflag [#allocation5], %s949
          %s951 = sand.u32 %s266, 1
          %s952 = scalar_lea.vmem [#allocation15], %s951
          %s954 = ssub.s32 16, 16
          %955 = vsyncadd %s950, %s954
          %s956 = smul.addr %s49, 16
          %s957 = scalar_lea.hbm %s8, %s956
          %s959 = sshll.u32 %s952, 4
          %s960 = int_to_ptr.vmem [resolvable:$true] %s959
          %962 = dma.hbm_to_vmem [thread:$0]  %s957, 16, %s960, %s950
        $region60: #{tpu_custom_call.1} parent=27 // pred_fallthru
          _
        // Predicated region
        $region61: #{tpu_custom_call.1} parent=27 // pred_check
          %p963 = pneg %p302
        $region62: #{tpu_custom_call.1} parent=27 // pred_check_branch
          %965 = sbr.rel (%p963) target = $region64
        $region63: #{tpu_custom_call.1} parent=27 // pred_region
          %s966 = sand.u32 %s41, 1
          %s967 = scalar_lea.sflag [#allocation5], %s966
          %s968 = sand.u32 %s292, 1
          %s969 = scalar_lea.vmem [#allocation16], %s968
          %s971 = ssub.s32 16, 16
          %972 = vsyncadd %s967, %s971
          %s973 = smul.addr %s49, 16
          %s974 = scalar_lea.hbm %s9, %s973
          %s976 = sshll.u32 %s969, 4
          %s977 = int_to_ptr.vmem [resolvable:$true] %s976
          %979 = dma.hbm_to_vmem [thread:$0]  %s974, 16, %s977, %s967
        $region64: #{tpu_custom_call.1} parent=27 // pred_fallthru
          _
        // Predicated region
        $region65: #{tpu_custom_call.1} parent=27 // pred_check
          %p980 = pneg %p328
        $region66: #{tpu_custom_call.1} parent=27 // pred_check_branch
          %982 = sbr.rel (%p980) target = $region68
        $region67: #{tpu_custom_call.1} parent=27 // pred_region
          %s983 = sand.u32 %s41, 1
          %s984 = scalar_lea.sflag [#allocation5], %s983
          %s985 = sand.u32 %s318, 1
          %s986 = scalar_lea.vmem [#allocation17], %s985
          %s988 = ssub.s32 16, 16
          %989 = vsyncadd %s984, %s988
          %s990 = smul.addr %s49, 16
          %s991 = scalar_lea.hbm %s10, %s990
          %s993 = sshll.u32 %s986, 4
          %s994 = int_to_ptr.vmem [resolvable:$true] %s993
          %996 = dma.hbm_to_vmem [thread:$0]  %s991, 16, %s994, %s984
        $region68: #{tpu_custom_call.1} parent=27 // pred_fallthru
          _
        // Predicated region
        $region69: #{tpu_custom_call.1} parent=27 // pred_check
          %p997 = pneg %p354
        $region70: #{tpu_custom_call.1} parent=27 // pred_check_branch
          %999 = sbr.rel (%p997) target = $region72
        $region71: #{tpu_custom_call.1} parent=27 // pred_region
          %s1000 = sand.u32 %s41, 1
          %s1001 = scalar_lea.sflag [#allocation5], %s1000
          %s1002 = sand.u32 %s344, 1
          %s1003 = smul.addr %s1002, 16
          %s1004 = scalar_lea.vmem [#allocation18], %s1003
          %s1006 = ssub.s32 256, 256
          %1007 = vsyncadd %s1001, %s1006
          %s1008 = smul.addr %s49, 4
          %s1009 = smul.addr %s1008, 64
          %s1010 = scalar_lea.hbm %s11, %s1009
          %s1011 = sshll.u32 %s1004, 4
          %s1012 = int_to_ptr.vmem [resolvable:$true] %s1011
          %1017 = dma.hbm_to_vmem [thread:$0]  %s1010, 256, %s1012, %s1001, 64, 64, 4
        $region72: #{tpu_custom_call.1} parent=27 // pred_fallthru
          _
        // Predicated region
        $region73: #{tpu_custom_call.1} parent=27 // pred_check
          %p1018 = pneg %p380
        $region74: #{tpu_custom_call.1} parent=27 // pred_check_branch
          %1020 = sbr.rel (%p1018) target = $region76
        $region75: #{tpu_custom_call.1} parent=27 // pred_region
          %s1021 = sand.u32 %s41, 1
          %s1022 = scalar_lea.sflag [#allocation5], %s1021
          %s1023 = sand.u32 %s370, 1
          %s1024 = scalar_lea.vmem [#allocation19], %s1023
          %s1026 = ssub.s32 16, 16
          %1027 = vsyncadd %s1022, %s1026
          %s1028 = smul.addr %s49, 16
          %s1029 = scalar_lea.hbm %s12, %s1028
          %s1031 = sshll.u32 %s1024, 4
          %s1032 = int_to_ptr.vmem [resolvable:$true] %s1031
          %1034 = dma.hbm_to_vmem [thread:$0]  %s1029, 16, %s1032, %s1022
        $region76: #{tpu_custom_call.1} parent=27 // pred_fallthru
          _
        // Predicated region
        $region77: #{tpu_custom_call.1} parent=27 // pred_check
          %p1035 = pneg %p406
        $region78: #{tpu_custom_call.1} parent=27 // pred_check_branch
          %1037 = sbr.rel (%p1035) target = $region80
        $region79: #{tpu_custom_call.1} parent=27 // pred_region
          %s1038 = sand.u32 %s41, 1
          %s1039 = scalar_lea.sflag [#allocation5], %s1038
          %s1040 = sand.u32 %s396, 1
          %s1041 = smul.addr %s1040, 16
          %s1042 = scalar_lea.vmem [#allocation20], %s1041
          %s1044 = ssub.s32 256, 256
          %1045 = vsyncadd %s1039, %s1044
          %s1046 = smul.addr %s49, 4
          %s1047 = smul.addr %s1046, 64
          %s1048 = scalar_lea.hbm %s13, %s1047
          %s1049 = sshll.u32 %s1042, 4
          %s1050 = int_to_ptr.vmem [resolvable:$true] %s1049
          %1055 = dma.hbm_to_vmem [thread:$0]  %s1048, 256, %s1050, %s1039, 64, 64, 4
        $region80: #{tpu_custom_call.1} parent=27 // pred_fallthru
          _
        // Predicated region
        $region81: #{tpu_custom_call.1} parent=27 // pred_check
          %p1056 = pneg %p432
        $region82: #{tpu_custom_call.1} parent=27 // pred_check_branch
          %1058 = sbr.rel (%p1056) target = $region84
        $region83: #{tpu_custom_call.1} parent=27 // pred_region
          %s1059 = sand.u32 %s41, 1
          %s1060 = scalar_lea.sflag [#allocation5], %s1059
          %s1061 = sand.u32 %s422, 1
          %s1062 = scalar_lea.vmem [#allocation21], %s1061
          %s1064 = ssub.s32 16, 16
          %1065 = vsyncadd %s1060, %s1064
          %s1066 = smul.addr %s49, 16
          %s1067 = scalar_lea.hbm %s14, %s1066
          %s1069 = sshll.u32 %s1062, 4
          %s1070 = int_to_ptr.vmem [resolvable:$true] %s1069
          %1072 = dma.hbm_to_vmem [thread:$0]  %s1067, 16, %s1070, %s1060
        $region84: #{tpu_custom_call.1} parent=27 // pred_fallthru
          _
        // Predicated region
        $region85: #{tpu_custom_call.1} parent=27 // pred_check
          %p1073 = pneg %p458
        $region86: #{tpu_custom_call.1} parent=27 // pred_check_branch
          %1075 = sbr.rel (%p1073) target = $region88
        $region87: #{tpu_custom_call.1} parent=27 // pred_region
          %s1076 = sand.u32 %s41, 1
          %s1077 = scalar_lea.sflag [#allocation5], %s1076
          %s1078 = sand.u32 %s448, 1
          %s1079 = smul.addr %s1078, 16
          %s1080 = scalar_lea.vmem [#allocation22], %s1079
          %s1082 = ssub.s32 256, 256
          %1083 = vsyncadd %s1077, %s1082
          %s1084 = smul.addr %s49, 4
          %s1085 = smul.addr %s1084, 64
          %s1086 = scalar_lea.hbm %s15, %s1085
          %s1087 = sshll.u32 %s1080, 4
          %s1088 = int_to_ptr.vmem [resolvable:$true] %s1087
          %1093 = dma.hbm_to_vmem [thread:$0]  %s1086, 256, %s1088, %s1077, 64, 64, 4
        $region88: #{tpu_custom_call.1} parent=27 // pred_fallthru
          _
        // Predicated region
        $region89: #{tpu_custom_call.1} parent=27 // pred_check
          %p1094 = pneg %p484
        $region90: #{tpu_custom_call.1} parent=27 // pred_check_branch
          %1096 = sbr.rel (%p1094) target = $region92
        $region91: #{tpu_custom_call.1} parent=27 // pred_region
          %s1097 = sand.u32 %s41, 1
          %s1098 = scalar_lea.sflag [#allocation5], %s1097
          %s1099 = sand.u32 %s474, 1
          %s1100 = scalar_lea.vmem [#allocation23], %s1099
          %s1102 = ssub.s32 16, 16
          %1103 = vsyncadd %s1098, %s1102
          %s1104 = smul.addr %s49, 16
          %s1105 = scalar_lea.hbm %s16, %s1104
          %s1107 = sshll.u32 %s1100, 4
          %s1108 = int_to_ptr.vmem [resolvable:$true] %s1107
          %1110 = dma.hbm_to_vmem [thread:$0]  %s1105, 16, %s1108, %s1098
        $region92: #{tpu_custom_call.1} parent=27 // pred_fallthru
          _
        // Predicated region
        $region93: #{tpu_custom_call.1} parent=27 // pred_check
          %p1111 = pneg %p510
        $region94: #{tpu_custom_call.1} parent=27 // pred_check_branch
          %1113 = sbr.rel (%p1111) target = $region96
        $region95: #{tpu_custom_call.1} parent=27 // pred_region
          %s1114 = sand.u32 %s41, 1
          %s1115 = scalar_lea.sflag [#allocation5], %s1114
          %s1116 = sand.u32 %s500, 1
          %s1117 = smul.addr %s1116, 16
          %s1118 = scalar_lea.vmem [#allocation24], %s1117
          %s1120 = ssub.s32 256, 256
          %1121 = vsyncadd %s1115, %s1120
          %s1122 = smul.addr %s49, 4
          %s1123 = smul.addr %s1122, 64
          %s1124 = scalar_lea.hbm %s17, %s1123
          %s1125 = sshll.u32 %s1118, 4
          %s1126 = int_to_ptr.vmem [resolvable:$true] %s1125
          %1131 = dma.hbm_to_vmem [thread:$0]  %s1124, 256, %s1126, %s1115, 64, 64, 4
        $region96: #{tpu_custom_call.1} parent=27 // pred_fallthru
          _
        // Predicated region
        $region97: #{tpu_custom_call.1} parent=27 // pred_check
          %p1132 = pneg %p536
        $region98: #{tpu_custom_call.1} parent=27 // pred_check_branch
          %1134 = sbr.rel (%p1132) target = $region100
        $region99: #{tpu_custom_call.1} parent=27 // pred_region
          %s1135 = sand.u32 %s41, 1
          %s1136 = scalar_lea.sflag [#allocation5], %s1135
          %s1137 = sand.u32 %s526, 1
          %s1138 = scalar_lea.vmem [#allocation25], %s1137
          %s1140 = ssub.s32 16, 16
          %1141 = vsyncadd %s1136, %s1140
          %s1142 = smul.addr %s49, 16
          %s1143 = scalar_lea.hbm %s18, %s1142
          %s1145 = sshll.u32 %s1138, 4
          %s1146 = int_to_ptr.vmem [resolvable:$true] %s1145
          %1148 = dma.hbm_to_vmem [thread:$0]  %s1143, 16, %s1146, %s1136
        $region100: #{tpu_custom_call.1} parent=27 // pred_fallthru
          _
        // Predicated region
        $region101: #{tpu_custom_call.1} parent=27 // pred_check
          %p1149 = pneg %p562
        $region102: #{tpu_custom_call.1} parent=27 // pred_check_branch
          %1151 = sbr.rel (%p1149) target = $region104
        $region103: #{tpu_custom_call.1} parent=27 // pred_region
          %s1152 = sand.u32 %s41, 1
          %s1153 = scalar_lea.sflag [#allocation5], %s1152
          %s1154 = sand.u32 %s552, 1
          %s1155 = scalar_lea.vmem [#allocation26], %s1154
          %s1157 = ssub.s32 16, 16
          %1158 = vsyncadd %s1153, %s1157
          %s1159 = smul.addr %s49, 16
          %s1160 = scalar_lea.hbm %s19, %s1159
          %s1162 = sshll.u32 %s1155, 4
          %s1163 = int_to_ptr.vmem [resolvable:$true] %s1162
          %1165 = dma.hbm_to_vmem [thread:$0]  %s1160, 16, %s1163, %s1153
        $region104: #{tpu_custom_call.1} parent=27 // pred_fallthru
          _
        // Predicated region
        $region105: #{tpu_custom_call.1} parent=27 // pred_check
          %p1166 = pneg %p588
        $region106: #{tpu_custom_call.1} parent=27 // pred_check_branch
          %1168 = sbr.rel (%p1166) target = $region108
        $region107: #{tpu_custom_call.1} parent=27 // pred_region
          %s1169 = sand.u32 %s41, 1
          %s1170 = scalar_lea.sflag [#allocation5], %s1169
          %s1171 = sand.u32 %s578, 1
          %s1172 = scalar_lea.vmem [#allocation27], %s1171
          %s1174 = ssub.s32 16, 16
          %1175 = vsyncadd %s1170, %s1174
          %s1176 = smul.addr %s49, 16
          %s1177 = scalar_lea.hbm %s20, %s1176
          %s1179 = sshll.u32 %s1172, 4
          %s1180 = int_to_ptr.vmem [resolvable:$true] %s1179
          %1182 = dma.hbm_to_vmem [thread:$0]  %s1177, 16, %s1180, %s1170
        $region108: #{tpu_custom_call.1} parent=27 // pred_fallthru
          _
        // Predicated region
        $region109: #{tpu_custom_call.1} parent=27 // pred_check
          %p1183 = pneg %p614
        $region110: #{tpu_custom_call.1} parent=27 // pred_check_branch
          %1185 = sbr.rel (%p1183) target = $region112
        $region111: #{tpu_custom_call.1} parent=27 // pred_region
          %s1186 = sand.u32 %s41, 1
          %s1187 = scalar_lea.sflag [#allocation5], %s1186
          %s1188 = sand.u32 %s604, 1
          %s1189 = smul.addr %s1188, 16
          %s1190 = scalar_lea.vmem [#allocation28], %s1189
          %s1192 = ssub.s32 256, 256
          %1193 = vsyncadd %s1187, %s1192
          %s1194 = smul.addr %s49, 4
          %s1195 = smul.addr %s1194, 64
          %s1196 = scalar_lea.hbm %s21, %s1195
          %s1197 = sshll.u32 %s1190, 4
          %s1198 = int_to_ptr.vmem [resolvable:$true] %s1197
          %1203 = dma.hbm_to_vmem [thread:$0]  %s1196, 256, %s1198, %s1187, 64, 64, 4
        $region112: #{tpu_custom_call.1} parent=27 // pred_fallthru
          _
        // Predicated region
        $region113: #{tpu_custom_call.1} parent=27 // pred_check
          %p1204 = pneg %p640
        $region114: #{tpu_custom_call.1} parent=27 // pred_check_branch
          %1206 = sbr.rel (%p1204) target = $region116
        $region115: #{tpu_custom_call.1} parent=27 // pred_region
          %s1207 = sand.u32 %s41, 1
          %s1208 = scalar_lea.sflag [#allocation5], %s1207
          %s1209 = sand.u32 %s630, 1
          %s1210 = scalar_lea.vmem [#allocation29], %s1209
          %s1212 = ssub.s32 16, 16
          %1213 = vsyncadd %s1208, %s1212
          %s1214 = smul.addr %s49, 16
          %s1215 = scalar_lea.hbm %s22, %s1214
          %s1217 = sshll.u32 %s1210, 4
          %s1218 = int_to_ptr.vmem [resolvable:$true] %s1217
          %1220 = dma.hbm_to_vmem [thread:$0]  %s1215, 16, %s1218, %s1208
        $region116: #{tpu_custom_call.1} parent=27 // pred_fallthru
          _
        // Predicated region
        $region117: #{tpu_custom_call.1} parent=27 // pred_check
          %p1221 = pneg %p666
        $region118: #{tpu_custom_call.1} parent=27 // pred_check_branch
          %1223 = sbr.rel (%p1221) target = $region120
        $region119: #{tpu_custom_call.1} parent=27 // pred_region
          %s1224 = sand.u32 %s41, 1
          %s1225 = scalar_lea.sflag [#allocation5], %s1224
          %s1226 = sand.u32 %s656, 1
          %s1227 = smul.addr %s1226, 32
          %s1228 = scalar_lea.vmem [#allocation30], %s1227
          %s1230 = ssub.s32 512, 512
          %1231 = vsyncadd %s1225, %s1230
          %s1232 = smul.addr %s49, 8
          %s1233 = smul.addr %s1232, 64
          %s1234 = scalar_lea.hbm %s23, %s1233
          %s1235 = sshll.u32 %s1228, 4
          %s1236 = int_to_ptr.vmem [resolvable:$true] %s1235
          %1241 = dma.hbm_to_vmem [thread:$0]  %s1234, 512, %s1236, %s1225, 64, 64, 4
        $region120: #{tpu_custom_call.1} parent=27 // pred_fallthru
          _
        // Predicated region
        $region121: #{tpu_custom_call.1} parent=27 // pred_check
          %p1242 = pneg %p692
        $region122: #{tpu_custom_call.1} parent=27 // pred_check_branch
          %1244 = sbr.rel (%p1242) target = $region124
        $region123: #{tpu_custom_call.1} parent=27 // pred_region
          %s1245 = sand.u32 %s41, 1
          %s1246 = scalar_lea.sflag [#allocation5], %s1245
          %s1247 = sand.u32 %s682, 1
          %s1248 = scalar_lea.vmem [#allocation31], %s1247
          %s1250 = ssub.s32 16, 16
          %1251 = vsyncadd %s1246, %s1250
          %s1252 = smul.addr %s49, 16
          %s1253 = scalar_lea.hbm %s24, %s1252
          %s1255 = sshll.u32 %s1248, 4
          %s1256 = int_to_ptr.vmem [resolvable:$true] %s1255
          %1258 = dma.hbm_to_vmem [thread:$0]  %s1253, 16, %s1256, %s1246
        $region124: #{tpu_custom_call.1} parent=27 // pred_fallthru
          _
      $region28: #{tpu_custom_call.1} parent=5 // pred_fallthru
        _
      %p1259 = scmp.le.s32.totalorder 1, %s41
      %p1260 = scmp.lt.s32.totalorder %s41, 5
      %p1261 = pnand %p1259, %p1260
      %p1262 = pneg %p1261
      // Predicated region
      $region125: #{tpu_custom_call.1} parent=5 // pred_check
        _
      $region126: #{tpu_custom_call.1} parent=5 // pred_check_branch
        %1264 = sbr.rel (%p1261) target = $region128
      $region127: #{tpu_custom_call.1} parent=5 // pred_region
        %s1265 = ssub.s32 %s41, 1
        %s1266 = sand.u32 %s46, 1
        %s1267 = scalar_lea.sflag [#allocation5], %s1266
        %s1268 = sand.u32 %s66, 1
        %s1269 = smul.addr %s1268, 8
        %s1270 = scalar_lea.vmem [#allocation4], %s1269
        // Predicated region
        $region129: #{tpu_custom_call.1} parent=127 // pred_check
          %p1271 = pneg %p79
        $region130: #{tpu_custom_call.1} parent=127 // pred_check_branch
          %1273 = sbr.rel (%p1271) target = $region132
        $region131: #{tpu_custom_call.1} parent=127 // pred_region
          %1274 = dma.done %s1267, 128
        $region132: #{tpu_custom_call.1} parent=127 // pred_fallthru
          _
        // Predicated region
        $region133: #{tpu_custom_call.1} parent=127 // pred_check
          %p1275 = pneg %p100
        $region134: #{tpu_custom_call.1} parent=127 // pred_check_branch
          %1277 = sbr.rel (%p1275) target = $region136
        $region135: #{tpu_custom_call.1} parent=127 // pred_region
          %1278 = dma.done [#allocation8], 128
        $region136: #{tpu_custom_call.1} parent=127 // pred_fallthru
          _
        %s1279 = sand.u32 %s46, 1
        %s1280 = scalar_lea.sflag [#allocation5], %s1279
        %s1281 = sand.u32 %s113, 1
        %s1282 = scalar_lea.vmem [#allocation9], %s1281
        // Predicated region
        $region137: #{tpu_custom_call.1} parent=127 // pred_check
          %p1283 = pneg %p126
        $region138: #{tpu_custom_call.1} parent=127 // pred_check_branch
          %1285 = sbr.rel (%p1283) target = $region140
        $region139: #{tpu_custom_call.1} parent=127 // pred_region
          %1286 = dma.done %s1280, 16
        $region140: #{tpu_custom_call.1} parent=127 // pred_fallthru
          _
        %s1287 = sand.u32 %s46, 1
        %s1288 = scalar_lea.sflag [#allocation5], %s1287
        %s1289 = sand.u32 %s139, 1
        %s1290 = scalar_lea.vmem [#allocation10], %s1289
        // Predicated region
        $region141: #{tpu_custom_call.1} parent=127 // pred_check
          %p1291 = pneg %p152
        $region142: #{tpu_custom_call.1} parent=127 // pred_check_branch
          %1293 = sbr.rel (%p1291) target = $region144
        $region143: #{tpu_custom_call.1} parent=127 // pred_region
          %1294 = dma.done %s1288, 16
        $region144: #{tpu_custom_call.1} parent=127 // pred_fallthru
          _
        %s1295 = sand.u32 %s46, 1
        %s1296 = scalar_lea.sflag [#allocation5], %s1295
        %s1297 = sand.u32 %s165, 1
        %s1298 = scalar_lea.vmem [#allocation11], %s1297
        // Predicated region
        $region145: #{tpu_custom_call.1} parent=127 // pred_check
          %p1299 = pneg %p178
        $region146: #{tpu_custom_call.1} parent=127 // pred_check_branch
          %1301 = sbr.rel (%p1299) target = $region148
        $region147: #{tpu_custom_call.1} parent=127 // pred_region
          %1302 = dma.done %s1296, 16
        $region148: #{tpu_custom_call.1} parent=127 // pred_fallthru
          _
        %s1303 = sand.u32 %s46, 1
        %s1304 = scalar_lea.sflag [#allocation5], %s1303
        %s1305 = sand.u32 %s191, 1
        %s1306 = smul.addr %s1305, 16
        %s1307 = scalar_lea.vmem [#allocation12], %s1306
        // Predicated region
        $region149: #{tpu_custom_call.1} parent=127 // pred_check
          %p1308 = pneg %p204
        $region150: #{tpu_custom_call.1} parent=127 // pred_check_branch
          %1310 = sbr.rel (%p1308) target = $region152
        $region151: #{tpu_custom_call.1} parent=127 // pred_region
          %1311 = dma.done %s1304, 256
        $region152: #{tpu_custom_call.1} parent=127 // pred_fallthru
          _
        %s1312 = sand.u32 %s46, 1
        %s1313 = scalar_lea.sflag [#allocation5], %s1312
        %s1314 = sand.u32 %s217, 1
        %s1315 = scalar_lea.vmem [#allocation13], %s1314
        // Predicated region
        $region153: #{tpu_custom_call.1} parent=127 // pred_check
          %p1316 = pneg %p230
        $region154: #{tpu_custom_call.1} parent=127 // pred_check_branch
          %1318 = sbr.rel (%p1316) target = $region156
        $region155: #{tpu_custom_call.1} parent=127 // pred_region
          %1319 = dma.done %s1313, 16
        $region156: #{tpu_custom_call.1} parent=127 // pred_fallthru
          _
        %s1320 = sand.u32 %s46, 1
        %s1321 = scalar_lea.sflag [#allocation5], %s1320
        %s1322 = sand.u32 %s243, 1
        %s1323 = smul.addr %s1322, 16
        %s1324 = scalar_lea.vmem [#allocation14], %s1323
        // Predicated region
        $region157: #{tpu_custom_call.1} parent=127 // pred_check
          %p1325 = pneg %p256
        $region158: #{tpu_custom_call.1} parent=127 // pred_check_branch
          %1327 = sbr.rel (%p1325) target = $region160
        $region159: #{tpu_custom_call.1} parent=127 // pred_region
          %1328 = dma.done %s1321, 256
        $region160: #{tpu_custom_call.1} parent=127 // pred_fallthru
          _
        %s1329 = sand.u32 %s46, 1
        %s1330 = scalar_lea.sflag [#allocation5], %s1329
        %s1331 = sand.u32 %s269, 1
        %s1332 = scalar_lea.vmem [#allocation15], %s1331
        // Predicated region
        $region161: #{tpu_custom_call.1} parent=127 // pred_check
          %p1333 = pneg %p282
        $region162: #{tpu_custom_call.1} parent=127 // pred_check_branch
          %1335 = sbr.rel (%p1333) target = $region164
        $region163: #{tpu_custom_call.1} parent=127 // pred_region
          %1336 = dma.done %s1330, 16
        $region164: #{tpu_custom_call.1} parent=127 // pred_fallthru
          _
        %s1337 = sand.u32 %s46, 1
        %s1338 = scalar_lea.sflag [#allocation5], %s1337
        %s1339 = sand.u32 %s295, 1
        %s1340 = scalar_lea.vmem [#allocation16], %s1339
        // Predicated region
        $region165: #{tpu_custom_call.1} parent=127 // pred_check
          %p1341 = pneg %p308
        $region166: #{tpu_custom_call.1} parent=127 // pred_check_branch
          %1343 = sbr.rel (%p1341) target = $region168
        $region167: #{tpu_custom_call.1} parent=127 // pred_region
          %1344 = dma.done %s1338, 16
        $region168: #{tpu_custom_call.1} parent=127 // pred_fallthru
          _
        %s1345 = sand.u32 %s46, 1
        %s1346 = scalar_lea.sflag [#allocation5], %s1345
        %s1347 = sand.u32 %s321, 1
        %s1348 = scalar_lea.vmem [#allocation17], %s1347
        // Predicated region
        $region169: #{tpu_custom_call.1} parent=127 // pred_check
          %p1349 = pneg %p334
        $region170: #{tpu_custom_call.1} parent=127 // pred_check_branch
          %1351 = sbr.rel (%p1349) target = $region172
        $region171: #{tpu_custom_call.1} parent=127 // pred_region
          %1352 = dma.done %s1346, 16
        $region172: #{tpu_custom_call.1} parent=127 // pred_fallthru
          _
        %s1353 = sand.u32 %s46, 1
        %s1354 = scalar_lea.sflag [#allocation5], %s1353
        %s1355 = sand.u32 %s347, 1
        %s1356 = smul.addr %s1355, 16
        %s1357 = scalar_lea.vmem [#allocation18], %s1356
        // Predicated region
        $region173: #{tpu_custom_call.1} parent=127 // pred_check
          %p1358 = pneg %p360
        $region174: #{tpu_custom_call.1} parent=127 // pred_check_branch
          %1360 = sbr.rel (%p1358) target = $region176
        $region175: #{tpu_custom_call.1} parent=127 // pred_region
          %1361 = dma.done %s1354, 256
        $region176: #{tpu_custom_call.1} parent=127 // pred_fallthru
          _
        %s1362 = sand.u32 %s46, 1
        %s1363 = scalar_lea.sflag [#allocation5], %s1362
        %s1364 = sand.u32 %s373, 1
        %s1365 = scalar_lea.vmem [#allocation19], %s1364
        // Predicated region
        $region177: #{tpu_custom_call.1} parent=127 // pred_check
          %p1366 = pneg %p386
        $region178: #{tpu_custom_call.1} parent=127 // pred_check_branch
          %1368 = sbr.rel (%p1366) target = $region180
        $region179: #{tpu_custom_call.1} parent=127 // pred_region
          %1369 = dma.done %s1363, 16
        $region180: #{tpu_custom_call.1} parent=127 // pred_fallthru
          _
        %s1370 = sand.u32 %s46, 1
        %s1371 = scalar_lea.sflag [#allocation5], %s1370
        %s1372 = sand.u32 %s399, 1
        %s1373 = smul.addr %s1372, 16
        %s1374 = scalar_lea.vmem [#allocation20], %s1373
        // Predicated region
        $region181: #{tpu_custom_call.1} parent=127 // pred_check
          %p1375 = pneg %p412
        $region182: #{tpu_custom_call.1} parent=127 // pred_check_branch
          %1377 = sbr.rel (%p1375) target = $region184
        $region183: #{tpu_custom_call.1} parent=127 // pred_region
          %1378 = dma.done %s1371, 256
        $region184: #{tpu_custom_call.1} parent=127 // pred_fallthru
          _
        %s1379 = sand.u32 %s46, 1
        %s1380 = scalar_lea.sflag [#allocation5], %s1379
        %s1381 = sand.u32 %s425, 1
        %s1382 = scalar_lea.vmem [#allocation21], %s1381
        // Predicated region
        $region185: #{tpu_custom_call.1} parent=127 // pred_check
          %p1383 = pneg %p438
        $region186: #{tpu_custom_call.1} parent=127 // pred_check_branch
          %1385 = sbr.rel (%p1383) target = $region188
        $region187: #{tpu_custom_call.1} parent=127 // pred_region
          %1386 = dma.done %s1380, 16
        $region188: #{tpu_custom_call.1} parent=127 // pred_fallthru
          _
        %s1387 = sand.u32 %s46, 1
        %s1388 = scalar_lea.sflag [#allocation5], %s1387
        %s1389 = sand.u32 %s451, 1
        %s1390 = smul.addr %s1389, 16
        %s1391 = scalar_lea.vmem [#allocation22], %s1390
        // Predicated region
        $region189: #{tpu_custom_call.1} parent=127 // pred_check
          %p1392 = pneg %p464
        $region190: #{tpu_custom_call.1} parent=127 // pred_check_branch
          %1394 = sbr.rel (%p1392) target = $region192
        $region191: #{tpu_custom_call.1} parent=127 // pred_region
          %1395 = dma.done %s1388, 256
        $region192: #{tpu_custom_call.1} parent=127 // pred_fallthru
          _
        %s1396 = sand.u32 %s46, 1
        %s1397 = scalar_lea.sflag [#allocation5], %s1396
        %s1398 = sand.u32 %s477, 1
        %s1399 = scalar_lea.vmem [#allocation23], %s1398
        // Predicated region
        $region193: #{tpu_custom_call.1} parent=127 // pred_check
          %p1400 = pneg %p490
        $region194: #{tpu_custom_call.1} parent=127 // pred_check_branch
          %1402 = sbr.rel (%p1400) target = $region196
        $region195: #{tpu_custom_call.1} parent=127 // pred_region
          %1403 = dma.done %s1397, 16
        $region196: #{tpu_custom_call.1} parent=127 // pred_fallthru
          _
        %s1404 = sand.u32 %s46, 1
        %s1405 = scalar_lea.sflag [#allocation5], %s1404
        %s1406 = sand.u32 %s503, 1
        %s1407 = smul.addr %s1406, 16
        %s1408 = scalar_lea.vmem [#allocation24], %s1407
        // Predicated region
        $region197: #{tpu_custom_call.1} parent=127 // pred_check
          %p1409 = pneg %p516
        $region198: #{tpu_custom_call.1} parent=127 // pred_check_branch
          %1411 = sbr.rel (%p1409) target = $region200
        $region199: #{tpu_custom_call.1} parent=127 // pred_region
          %1412 = dma.done %s1405, 256
        $region200: #{tpu_custom_call.1} parent=127 // pred_fallthru
          _
        %s1413 = sand.u32 %s46, 1
        %s1414 = scalar_lea.sflag [#allocation5], %s1413
        %s1415 = sand.u32 %s529, 1
        %s1416 = scalar_lea.vmem [#allocation25], %s1415
        // Predicated region
        $region201: #{tpu_custom_call.1} parent=127 // pred_check
          %p1417 = pneg %p542
        $region202: #{tpu_custom_call.1} parent=127 // pred_check_branch
          %1419 = sbr.rel (%p1417) target = $region204
        $region203: #{tpu_custom_call.1} parent=127 // pred_region
          %1420 = dma.done %s1414, 16
        $region204: #{tpu_custom_call.1} parent=127 // pred_fallthru
          _
        %s1421 = sand.u32 %s46, 1
        %s1422 = scalar_lea.sflag [#allocation5], %s1421
        %s1423 = sand.u32 %s555, 1
        %s1424 = scalar_lea.vmem [#allocation26], %s1423
        // Predicated region
        $region205: #{tpu_custom_call.1} parent=127 // pred_check
          %p1425 = pneg %p568
        $region206: #{tpu_custom_call.1} parent=127 // pred_check_branch
          %1427 = sbr.rel (%p1425) target = $region208
        $region207: #{tpu_custom_call.1} parent=127 // pred_region
          %1428 = dma.done %s1422, 16
        $region208: #{tpu_custom_call.1} parent=127 // pred_fallthru
          _
        %s1429 = sand.u32 %s46, 1
        %s1430 = scalar_lea.sflag [#allocation5], %s1429
        %s1431 = sand.u32 %s581, 1
        %s1432 = scalar_lea.vmem [#allocation27], %s1431
        // Predicated region
        $region209: #{tpu_custom_call.1} parent=127 // pred_check
          %p1433 = pneg %p594
        $region210: #{tpu_custom_call.1} parent=127 // pred_check_branch
          %1435 = sbr.rel (%p1433) target = $region212
        $region211: #{tpu_custom_call.1} parent=127 // pred_region
          %1436 = dma.done %s1430, 16
        $region212: #{tpu_custom_call.1} parent=127 // pred_fallthru
          _
        %s1437 = sand.u32 %s46, 1
        %s1438 = scalar_lea.sflag [#allocation5], %s1437
        %s1439 = sand.u32 %s607, 1
        %s1440 = smul.addr %s1439, 16
        %s1441 = scalar_lea.vmem [#allocation28], %s1440
        // Predicated region
        $region213: #{tpu_custom_call.1} parent=127 // pred_check
          %p1442 = pneg %p620
        $region214: #{tpu_custom_call.1} parent=127 // pred_check_branch
          %1444 = sbr.rel (%p1442) target = $region216
        $region215: #{tpu_custom_call.1} parent=127 // pred_region
          %1445 = dma.done %s1438, 256
        $region216: #{tpu_custom_call.1} parent=127 // pred_fallthru
          _
        %s1446 = sand.u32 %s46, 1
        %s1447 = scalar_lea.sflag [#allocation5], %s1446
        %s1448 = sand.u32 %s633, 1
        %s1449 = scalar_lea.vmem [#allocation29], %s1448
        // Predicated region
        $region217: #{tpu_custom_call.1} parent=127 // pred_check
          %p1450 = pneg %p646
        $region218: #{tpu_custom_call.1} parent=127 // pred_check_branch
          %1452 = sbr.rel (%p1450) target = $region220
        $region219: #{tpu_custom_call.1} parent=127 // pred_region
          %1453 = dma.done %s1447, 16
        $region220: #{tpu_custom_call.1} parent=127 // pred_fallthru
          _
        %s1454 = sand.u32 %s46, 1
        %s1455 = scalar_lea.sflag [#allocation5], %s1454
        %s1456 = sand.u32 %s659, 1
        %s1457 = smul.addr %s1456, 32
        %s1458 = scalar_lea.vmem [#allocation30], %s1457
        // Predicated region
        $region221: #{tpu_custom_call.1} parent=127 // pred_check
          %p1459 = pneg %p672
        $region222: #{tpu_custom_call.1} parent=127 // pred_check_branch
          %1461 = sbr.rel (%p1459) target = $region224
        $region223: #{tpu_custom_call.1} parent=127 // pred_region
          %1462 = dma.done %s1455, 512
        $region224: #{tpu_custom_call.1} parent=127 // pred_fallthru
          _
        %s1463 = sand.u32 %s46, 1
        %s1464 = scalar_lea.sflag [#allocation5], %s1463
        %s1465 = sand.u32 %s685, 1
        %s1466 = scalar_lea.vmem [#allocation31], %s1465
        // Predicated region
        $region225: #{tpu_custom_call.1} parent=127 // pred_check
          %p1467 = pneg %p698
        $region226: #{tpu_custom_call.1} parent=127 // pred_check_branch
          %1469 = sbr.rel (%p1467) target = $region228
        $region227: #{tpu_custom_call.1} parent=127 // pred_region
          %1470 = dma.done %s1464, 16
        $region228: #{tpu_custom_call.1} parent=127 // pred_fallthru
          _
        // Predicated region
        $region229: #{tpu_custom_call.1} parent=127 // pred_check
          %p1471 = pneg %p719
        $region230: #{tpu_custom_call.1} parent=127 // pred_check_branch
          %1473 = sbr.rel (%p1471) target = $region232
        $region231: #{tpu_custom_call.1} parent=127 // pred_region
          %1474 = dma.done [#allocation8], 16
        $region232: #{tpu_custom_call.1} parent=127 // pred_fallthru
          _
        // Predicated region
        $region233: #{tpu_custom_call.1} parent=127 // pred_check
          %p1475 = pneg %p740
        $region234: #{tpu_custom_call.1} parent=127 // pred_check_branch
          %1477 = sbr.rel (%p1475) target = $region236
        $region235: #{tpu_custom_call.1} parent=127 // pred_region
          %1478 = dma.done [#allocation34], 16
        $region236: #{tpu_custom_call.1} parent=127 // pred_fallthru
          _
        %s1479 = sand.u32 %s46, 1
        %s1480 = scalar_lea.sflag [#allocation5], %s1479
        %s1481 = sand.u32 %s66, 1
        %s1482 = smul.addr %s1481, 8
        %s1483 = scalar_lea.vmem [#allocation4], %s1482
        %p1484 = pneg %p79
        %p1485 = pneg %p76
        %p1486 = pneg %p100
        %p1487 = pneg %p97
        %s1488 = sand.u32 %s46, 1
        %s1489 = scalar_lea.sflag [#allocation5], %s1488
        %s1490 = sand.u32 %s113, 1
        %s1491 = scalar_lea.vmem [#allocation9], %s1490
        %p1492 = pneg %p126
        %p1493 = pneg %p123
        %s1494 = sand.u32 %s46, 1
        %s1495 = scalar_lea.sflag [#allocation5], %s1494
        %s1496 = sand.u32 %s139, 1
        %s1497 = scalar_lea.vmem [#allocation10], %s1496
        %p1498 = pneg %p152
        %p1499 = pneg %p149
        %s1500 = sand.u32 %s46, 1
        %s1501 = scalar_lea.sflag [#allocation5], %s1500
        %s1502 = sand.u32 %s165, 1
        %s1503 = scalar_lea.vmem [#allocation11], %s1502
        %p1504 = pneg %p178
        %p1505 = pneg %p175
        %s1506 = sand.u32 %s46, 1
        %s1507 = scalar_lea.sflag [#allocation5], %s1506
        %s1508 = sand.u32 %s191, 1
        %s1509 = smul.addr %s1508, 16
        %s1510 = scalar_lea.vmem [#allocation12], %s1509
        %p1511 = pneg %p204
        %p1512 = pneg %p201
        %s1513 = sand.u32 %s46, 1
        %s1514 = scalar_lea.sflag [#allocation5], %s1513
        %s1515 = sand.u32 %s217, 1
        %s1516 = scalar_lea.vmem [#allocation13], %s1515
        %p1517 = pneg %p230
        %p1518 = pneg %p227
        %s1519 = sand.u32 %s46, 1
        %s1520 = scalar_lea.sflag [#allocation5], %s1519
        %s1521 = sand.u32 %s243, 1
        %s1522 = smul.addr %s1521, 16
        %s1523 = scalar_lea.vmem [#allocation14], %s1522
        %p1524 = pneg %p256
        %p1525 = pneg %p253
        %s1526 = sand.u32 %s46, 1
        %s1527 = scalar_lea.sflag [#allocation5], %s1526
        %s1528 = sand.u32 %s269, 1
        %s1529 = scalar_lea.vmem [#allocation15], %s1528
        %p1530 = pneg %p282
        %p1531 = pneg %p279
        %s1532 = sand.u32 %s46, 1
        %s1533 = scalar_lea.sflag [#allocation5], %s1532
        %s1534 = sand.u32 %s295, 1
        %s1535 = scalar_lea.vmem [#allocation16], %s1534
        %p1536 = pneg %p308
        %p1537 = pneg %p305
        %s1538 = sand.u32 %s46, 1
        %s1539 = scalar_lea.sflag [#allocation5], %s1538
        %s1540 = sand.u32 %s321, 1
        %s1541 = scalar_lea.vmem [#allocation17], %s1540
        %p1542 = pneg %p334
        %p1543 = pneg %p331
        %s1544 = sand.u32 %s46, 1
        %s1545 = scalar_lea.sflag [#allocation5], %s1544
        %s1546 = sand.u32 %s347, 1
        %s1547 = smul.addr %s1546, 16
        %s1548 = scalar_lea.vmem [#allocation18], %s1547
        %p1549 = pneg %p360
        %p1550 = pneg %p357
        %s1551 = sand.u32 %s46, 1
        %s1552 = scalar_lea.sflag [#allocation5], %s1551
        %s1553 = sand.u32 %s373, 1
        %s1554 = scalar_lea.vmem [#allocation19], %s1553
        %p1555 = pneg %p386
        %p1556 = pneg %p383
        %s1557 = sand.u32 %s46, 1
        %s1558 = scalar_lea.sflag [#allocation5], %s1557
        %s1559 = sand.u32 %s399, 1
        %s1560 = smul.addr %s1559, 16
        %s1561 = scalar_lea.vmem [#allocation20], %s1560
        %p1562 = pneg %p412
        %p1563 = pneg %p409
        %s1564 = sand.u32 %s46, 1
        %s1565 = scalar_lea.sflag [#allocation5], %s1564
        %s1566 = sand.u32 %s425, 1
        %s1567 = scalar_lea.vmem [#allocation21], %s1566
        %p1568 = pneg %p438
        %p1569 = pneg %p435
        %s1570 = sand.u32 %s46, 1
        %s1571 = scalar_lea.sflag [#allocation5], %s1570
        %s1572 = sand.u32 %s451, 1
        %s1573 = smul.addr %s1572, 16
        %s1574 = scalar_lea.vmem [#allocation22], %s1573
        %p1575 = pneg %p464
        %p1576 = pneg %p461
        %s1577 = sand.u32 %s46, 1
        %s1578 = scalar_lea.sflag [#allocation5], %s1577
        %s1579 = sand.u32 %s477, 1
        %s1580 = scalar_lea.vmem [#allocation23], %s1579
        %p1581 = pneg %p490
        %p1582 = pneg %p487
        %s1583 = sand.u32 %s46, 1
        %s1584 = scalar_lea.sflag [#allocation5], %s1583
        %s1585 = sand.u32 %s503, 1
        %s1586 = smul.addr %s1585, 16
        %s1587 = scalar_lea.vmem [#allocation24], %s1586
        %p1588 = pneg %p516
        %p1589 = pneg %p513
        %s1590 = sand.u32 %s46, 1
        %s1591 = scalar_lea.sflag [#allocation5], %s1590
        %s1592 = sand.u32 %s529, 1
        %s1593 = scalar_lea.vmem [#allocation25], %s1592
        %p1594 = pneg %p542
        %p1595 = pneg %p539
        %s1596 = sand.u32 %s46, 1
        %s1597 = scalar_lea.sflag [#allocation5], %s1596
        %s1598 = sand.u32 %s555, 1
        %s1599 = scalar_lea.vmem [#allocation26], %s1598
        %p1600 = pneg %p568
        %p1601 = pneg %p565
        %s1602 = sand.u32 %s46, 1
        %s1603 = scalar_lea.sflag [#allocation5], %s1602
        %s1604 = sand.u32 %s581, 1
        %s1605 = scalar_lea.vmem [#allocation27], %s1604
        %p1606 = pneg %p594
        %p1607 = pneg %p591
        %s1608 = sand.u32 %s46, 1
        %s1609 = scalar_lea.sflag [#allocation5], %s1608
        %s1610 = sand.u32 %s607, 1
        %s1611 = smul.addr %s1610, 16
        %s1612 = scalar_lea.vmem [#allocation28], %s1611
        %p1613 = pneg %p620
        %p1614 = pneg %p617
        %s1615 = sand.u32 %s46, 1
        %s1616 = scalar_lea.sflag [#allocation5], %s1615
        %s1617 = sand.u32 %s633, 1
        %s1618 = scalar_lea.vmem [#allocation29], %s1617
        %p1619 = pneg %p646
        %p1620 = pneg %p643
        %s1621 = sand.u32 %s46, 1
        %s1622 = scalar_lea.sflag [#allocation5], %s1621
        %s1623 = sand.u32 %s659, 1
        %s1624 = smul.addr %s1623, 32
        %s1625 = scalar_lea.vmem [#allocation30], %s1624
        %p1626 = pneg %p672
        %p1627 = pneg %p669
        %s1628 = sand.u32 %s46, 1
        %s1629 = scalar_lea.sflag [#allocation5], %s1628
        %s1630 = sand.u32 %s685, 1
        %s1631 = scalar_lea.vmem [#allocation31], %s1630
        %p1632 = pneg %p698
        %p1633 = pneg %p695
        %p1634 = pneg %p719
        %p1635 = pneg %p716
        %p1636 = pneg %p740
        %p1637 = pneg %p737
        %p1638 = pneg %p766
        %p1639 = pneg %p763
        %s1640 = sand.u32 %s753, 1
        %s1641 = scalar_lea.sflag [#allocation6], %s1640
        %s1642 = sand.u32 %s753, 1
        %s1643 = smul.addr %s1642, 8
        %s1644 = scalar_lea.vmem [#allocation35], %s1643
        %p1646 = scmp.eq.s32.totalorder %s51, 0
        // Predicated region
        $region237: #{tpu_custom_call.1} parent=127 // pred_check
          %p1647 = pneg %p1646
        $region238: #{tpu_custom_call.1} parent=127 // pred_check_branch
          %1649 = sbr.rel (%p1647) target = $region240
        $region239: #{tpu_custom_call.1} parent=127 // pred_region
          %v1650 = vld [vmem:[%s1270] sm:$0xff]
          %v1651 = vld [vmem:[#allocation7] sm:$0xff]
          %v1652 = vadd.f32 %v1650, %v1651
          %vm1653 = vcmask 261120
          %1654 = vst.msk [vmem:[#allocation2] sm:$0xff] %vm1653, %v1652
          %vm1655 = vcmask 64512
          %1656 = vst.msk [vmem:[#allocation3] sm:$0xff] %vm1655, 0.0
        $region240: #{tpu_custom_call.1} parent=127 // pred_fallthru
          _
        %v1657 = vld [vmem:[#allocation2] sm:$0xff]
        %v1658 = vld [vmem:[#allocation3] sm:$0xff]
        %v1659 = vld [vmem:[%s1282] sm:$0x1]
        %vm1660 = vcmp.gt.f32.partialorder %v1659, 0.0
        %v1661 = vlaneseq
        %v1662 = vshrl.u32 %v1661, 7
        %v1663 = vlaneseq
        %v1664 = vand.u32 %v1663, 127
        %v1665 = vsub.s32 %v1662, %v1664
        %vm1666 = vcmp.lt.s32.totalorder %v1665, 0
        %v1667 = vsub.s32 0, %v1665
        %v1668 = vsel %vm1666, %v1667, %v1665
        %vm1669 = vcmp.eq.s32.totalorder %v1668, 1
        %v1670 = vadd.s32 %v1662, 1
        %vm1671 = vcmp.eq.s32.totalorder %v1664, %v1670
        %vm1672 = vcmp.eq.s32.totalorder %v1662, %v1664
        %vm1673 = vcmp.ge.s32.totalorder %v1664, %v1662
        %v1674 = vsel %vm1673, 1, 0
        %v1675 = vcvt.s32.f32 %v1674
        %vm1676 = vcmp.gt.s32.totalorder %v1664, %v1662
        %v1677 = vld [vmem:[%s1290] sm:$0x1]
        %v1678 = vld [vmem:[%s1298] sm:$0x1]
        %vm1679 = vcmask 261120
        %v1680 = vsel %vm1679, %v1657, 0.0
        %1681 = vadd.xlane.f32.xlu0 %v1680
        %v1682 = vpop.xlane.xlu0 %1681
        %v1683 = vrcp.pop 32.0
        %v1684 = vmul.f32 %v1682, %v1683
        %v1685 = vsub.f32 %v1657, %v1684
        %v1686 = vmul.f32 %v1685, %v1685
        %v1687 = vsel %vm1679, %v1686, 0.0
        %1688 = vadd.xlane.f32.xlu0 %v1687
        %v1689 = vpop.xlane.xlu0 %1688
        %v1690 = vrcp.pop 31.0
        %v1691 = vmul.f32 %v1689, %v1690
        %v1692 = vrsqrt.pop %v1691
        %v1693 = vmul.f32 %v1691, %v1692
        %vm1694 = vcmp.eq.f32.partialorder %v1691, inf
        %v1695 = vsel %vm1694, %v1691, %v1693
        %vm1696 = vcmp.eq.f32.partialorder %v1691, 0.0
        %v1697 = vand.u32 %v1691, 2147483648
        %v1698 = vsel %vm1696, %v1697, %v1695
        %v1700 = vlaneseq
        %v1701 = vshrl.u32 %v1700, 7
        %v1702 = vsub.s32 0, %v1701
        %v1703 = vrot.slane %v1677, %v1702
        %v1705 = vmul.f32 %v1703, %v1685
        %v1706 = vadd.f32 %v1698, 1e-06
        %v1707 = vrcp.pop %v1706
        %v1708 = vmul.f32 %v1705, %v1707
        %v1710 = vlaneseq
        %v1711 = vshrl.u32 %v1710, 7
        %v1712 = vsub.s32 0, %v1711
        %v1713 = vrot.slane %v1678, %v1712
        %v1715 = vadd.f32 %v1708, %v1713
        %v1716 = vpack.c.bf16 %v1715, %v1715
        %v1717 = vld [vmem:[%s1307] sm:$0xf]
        %v1718 = vld [vmem:[%s1307 + $0x4] sm:$0xf]
        %v1719 = vld [vmem:[%s1307 + $0x8] sm:$0xf]
        %v1720 = vld [vmem:[%s1307 + $0xc] sm:$0xf]
        %v1721 = vld [vmem:[%s1315] sm:$0x1]
        %v1723 = vlaneseq
        %v1724 = vshrl.u32 %v1723, 7
        %v1725 = vsub.s32 0, %v1724
        %v1726 = vrot.slane %v1721, %v1725
        %v1732 = vunpack.c.l.b16 %v1717
        %v1733 = vunpack.c.l.b16 %v1718
        %v1734 = vunpack.c.l.b16 %v1719
        %v1735 = vunpack.c.l.b16 %v1720
        %v1736 = vpack.c.b16 %v1733, %v1732
        %v1737 = vpack.c.b16 %v1735, %v1734
        %v1741 = vsel %vm1679, %v1716, 0
        %1743 = vmatprep.subr.bf16.mxu0 0
        %1744 = vmatpush1.bf16.msra.mxu0 %v1736
        %1745 = vmatprep.subr.bf16.mxu0 0
        %1746 = vmatpush1.bf16.msra.mxu0 %v1737
        %1747 = vmatprep.subr.bf16.mxu0 0
        %1748 = vmatpush1.bf16.msra.mxu0 0
        %1749 = vmatprep.subr.bf16.mxu0 0
        %1750 = vmatpush1.bf16.msra.mxu0 0
        %1751 = vmatprep.subr.bf16.mxu0 0
        %1752 = vmatpush1.bf16.msra.mxu0 0
        %1753 = vmatprep.subr.bf16.mxu0 0
        %1754 = vmatpush1.bf16.msra.mxu0 0
        %1755 = vmatprep.subr.bf16.mxu0 0
        %1756 = vmatpush1.bf16.msra.mxu0 0
        %1757 = vmatprep.subr.bf16.mxu0 0
        %1758 = vmatpush1.bf16.msra.mxu0 0
        %1759 = vmatprep.subr.bf16.mxu0 0
        %1760 = vmatpush1.bf16.msra.mxu0 0
        %1761 = vmatprep.subr.bf16.mxu0 0
        %1762 = vmatpush1.bf16.msra.mxu0 0
        %1763 = vmatprep.subr.bf16.mxu0 0
        %1764 = vmatpush1.bf16.msra.mxu0 0
        %1765 = vmatprep.subr.bf16.mxu0 0
        %1766 = vmatpush1.bf16.msra.mxu0 0
        %1767 = vmatprep.subr.bf16.mxu0 0
        %1768 = vmatpush1.bf16.msra.mxu0 0
        %1769 = vmatprep.subr.bf16.mxu0 0
        %1770 = vmatpush1.bf16.msra.mxu0 0
        %1771 = vmatprep.subr.bf16.mxu0 0
        %1772 = vmatpush1.bf16.msra.mxu0 0
        %1773 = vmatprep.subr.bf16.mxu0 0
        %1774 = vmatpush1.bf16.msra.mxu0 0
        %1775 = vmatprep.mubr.bf16.mxu0 0
        %1776 = vmatmul.mubr.bf16.gmra.mrb[0].mxu0 %v1741
        %v1777 = vpop.f32.mrb[0].mxu0
        %v1778 = vadd.f32 %v1726, %v1777
        %v1779 = vpop.f32.mrb[0].mxu0
        %v1780 = vpop.f32.mrb[0].mxu0
        %v1781 = vpop.f32.mrb[0].mxu0
        %1782 = vdwg.mxu0
        %v1783 = vld [vmem:[%s1324] sm:$0xf]
        %v1784 = vld [vmem:[%s1324 + $0x4] sm:$0xf]
        %v1785 = vld [vmem:[%s1324 + $0x8] sm:$0xf]
        %v1786 = vld [vmem:[%s1324 + $0xc] sm:$0xf]
        %v1787 = vld [vmem:[%s1332] sm:$0x1]
        %v1789 = vlaneseq
        %v1790 = vshrl.u32 %v1789, 7
        %v1791 = vsub.s32 0, %v1790
        %v1792 = vrot.slane %v1787, %v1791
        %v1798 = vunpack.c.l.b16 %v1783
        %v1799 = vunpack.c.l.b16 %v1784
        %v1800 = vunpack.c.l.b16 %v1785
        %v1801 = vunpack.c.l.b16 %v1786
        %v1802 = vpack.c.b16 %v1799, %v1798
        %v1803 = vpack.c.b16 %v1801, %v1800
        %1806 = vmatprep.subr.bf16.mxu0 0
        %1807 = vmatpush1.bf16.msra.mxu0 %v1802
        %1808 = vmatprep.subr.bf16.mxu0 0
        %1809 = vmatpush1.bf16.msra.mxu0 %v1803
        %1810 = vmatprep.subr.bf16.mxu0 0
        %1811 = vmatpush1.bf16.msra.mxu0 0
        %1812 = vmatprep.subr.bf16.mxu0 0
        %1813 = vmatpush1.bf16.msra.mxu0 0
        %1814 = vmatprep.subr.bf16.mxu0 0
        %1815 = vmatpush1.bf16.msra.mxu0 0
        %1816 = vmatprep.subr.bf16.mxu0 0
        %1817 = vmatpush1.bf16.msra.mxu0 0
        %1818 = vmatprep.subr.bf16.mxu0 0
        %1819 = vmatpush1.bf16.msra.mxu0 0
        %1820 = vmatprep.subr.bf16.mxu0 0
        %1821 = vmatpush1.bf16.msra.mxu0 0
        %1822 = vmatprep.subr.bf16.mxu0 0
        %1823 = vmatpush1.bf16.msra.mxu0 0
        %1824 = vmatprep.subr.bf16.mxu0 0
        %1825 = vmatpush1.bf16.msra.mxu0 0
        %1826 = vmatprep.subr.bf16.mxu0 0
        %1827 = vmatpush1.bf16.msra.mxu0 0
        %1828 = vmatprep.subr.bf16.mxu0 0
        %1829 = vmatpush1.bf16.msra.mxu0 0
        %1830 = vmatprep.subr.bf16.mxu0 0
        %1831 = vmatpush1.bf16.msra.mxu0 0
        %1832 = vmatprep.subr.bf16.mxu0 0
        %1833 = vmatpush1.bf16.msra.mxu0 0
        %1834 = vmatprep.subr.bf16.mxu0 0
        %1835 = vmatpush1.bf16.msra.mxu0 0
        %1836 = vmatprep.subr.bf16.mxu0 0
        %1837 = vmatpush1.bf16.msra.mxu0 0
        %1838 = vmatprep.mubr.bf16.mxu0 0
        %1839 = vmatmul.mubr.bf16.gmra.mrb[0].mxu0 %v1741
        %v1840 = vpop.f32.mrb[0].mxu0
        %v1841 = vadd.f32 %v1792, %v1840
        %v1842 = vpop.f32.mrb[0].mxu0
        %v1843 = vpop.f32.mrb[0].mxu0
        %v1844 = vpop.f32.mrb[0].mxu0
        %1845 = vdwg.mxu0
        %v1847 = vsel %vm1679, %v1841, 0
        %v1850 = vsel %vm1679, %v1778, 0
        %1852 = vmatprep.subr.mxu0 0.0
        %1853 = vmatpush1.xpose.msra.mxu0 %v1850
        %1854 = vmatprep.subr.mxu0 0.0
        %1855 = vmatpush1.xpose.msra.mxu0 0.0
        %1856 = vmatprep.subr.mxu0 0.0
        %1857 = vmatpush1.xpose.msra.mxu0 0.0
        %1858 = vmatprep.subr.mxu0 0.0
        %1859 = vmatpush1.xpose.msra.mxu0 0.0
        %1860 = vmatprep.subr.mxu0 0.0
        %1861 = vmatpush1.xpose.msra.mxu0 0.0
        %1862 = vmatprep.subr.mxu0 0.0
        %1863 = vmatpush1.xpose.msra.mxu0 0.0
        %1864 = vmatprep.subr.mxu0 0.0
        %1865 = vmatpush1.xpose.msra.mxu0 0.0
        %1866 = vmatprep.subr.mxu0 0.0
        %1867 = vmatpush1.xpose.msra.mxu0 0.0
        %1868 = vmatprep.subr.mxu0 0.0
        %1869 = vmatpush1.xpose.msra.mxu0 0.0
        %1870 = vmatprep.subr.mxu0 0.0
        %1871 = vmatpush1.xpose.msra.mxu0 0.0
        %1872 = vmatprep.subr.mxu0 0.0
        %1873 = vmatpush1.xpose.msra.mxu0 0.0
        %1874 = vmatprep.subr.mxu0 0.0
        %1875 = vmatpush1.xpose.msra.mxu0 0.0
        %1876 = vmatprep.subr.mxu0 0.0
        %1877 = vmatpush1.xpose.msra.mxu0 0.0
        %1878 = vmatprep.subr.mxu0 0.0
        %1879 = vmatpush1.xpose.msra.mxu0 0.0
        %1880 = vmatprep.subr.mxu0 0.0
        %1881 = vmatpush1.xpose.msra.mxu0 0.0
        %1882 = vmatprep.subr.mxu0 0.0
        %1883 = vmatpush1.xpose.msra.mxu0 0.0
        %1884 = vmatprep.subr.mxu0 0.0
        %1885 = vmatpush1.xpose.msra.mxu0 0.0
        %1886 = vmatprep.subr.mxu0 0.0
        %1887 = vmatpush1.xpose.msra.mxu0 0.0
        %1888 = vmatprep.subr.mxu0 0.0
        %1889 = vmatpush1.xpose.msra.mxu0 0.0
        %1890 = vmatprep.subr.mxu0 0.0
        %1891 = vmatpush1.xpose.msra.mxu0 0.0
        %1892 = vmatprep.subr.mxu0 0.0
        %1893 = vmatpush1.xpose.msra.mxu0 0.0
        %1894 = vmatprep.subr.mxu0 0.0
        %1895 = vmatpush1.xpose.msra.mxu0 0.0
        %1896 = vmatprep.subr.mxu0 0.0
        %1897 = vmatpush1.xpose.msra.mxu0 0.0
        %1898 = vmatprep.subr.mxu0 0.0
        %1899 = vmatpush1.xpose.msra.mxu0 0.0
        %1900 = vmatprep.subr.mxu0 0.0
        %1901 = vmatpush1.xpose.msra.mxu0 0.0
        %1902 = vmatprep.subr.mxu0 0.0
        %1903 = vmatpush1.xpose.msra.mxu0 0.0
        %1904 = vmatprep.subr.mxu0 0.0
        %1905 = vmatpush1.xpose.msra.mxu0 0.0
        %1906 = vmatprep.subr.mxu0 0.0
        %1907 = vmatpush1.xpose.msra.mxu0 0.0
        %1908 = vmatprep.subr.mxu0 0.0
        %1909 = vmatpush1.xpose.msra.mxu0 0.0
        %1910 = vmatprep.subr.mxu0 0.0
        %1911 = vmatpush1.xpose.msra.mxu0 0.0
        %1912 = vmatprep.subr.mxu0 0.0
        %1913 = vmatpush1.xpose.msra.mxu0 0.0
        %1914 = vmatprep.subr.mxu0 0.0
        %1915 = vmatpush1.xpose.msra.mxu0 0.0
        %1916 = vmatprep.mubr.f32.mxu0 0.0
        %1917 = vmatmul.mubr.f32.gmra.mrb[0].mxu0 %v1847
        %v1918 = vpop.f32.mrb[0].mxu0
        %v1919 = vadd.f32 0.0, %v1918
        %v1920 = vpop.f32.mrb[0].mxu0
        %1921 = vdwg.mxu0
        %v1922 = vrcp.pop 256.0
        %v1923 = vmul.f32 %v1919, %v1922
        %v1924 = vsel %vm1660, 1, 0
        %v1925 = vlaneseq
        %v1926 = vshrl.u32 %v1925, 7
        %v1927 = vsub.s32 0, %v1926
        %v1928 = vrot.slane %v1924, %v1927
        %vm1929 = vcmp.eq.s32.totalorder %v1928, 1
        %vm1930 = vmand %vm1669, %vm1929
        %v1931 = vsel %vm1930, %v1923, -1e+09
        %vm1932 = vcmask 64512
        %v1933 = vsel %vm1932, %v1931, -inf
        %1934 = vmax.xlane.f32.xlu0 %v1933
        %v1935 = vpop.xlane.xlu0 %1934
        %v1936 = vsub.f32 %v1931, %v1935
        %v1937 = vmul.f32 %v1936, 1.442695
        %v1938 = vpow.pop %v1937
        %v1939 = vsel %vm1932, %v1938, 0.0
        %1940 = vadd.xlane.f32.xlu0 %v1939
        %v1941 = vpop.xlane.xlu0 %1940
        %v1942 = vrcp.pop %v1941
        %v1943 = vmul.f32 %v1938, %v1942
        %1944 = vxpose.xlu0.b32.start [1/16] %v1943, 128
        %1945 = vxpose.xlu0.b32.cont [2/16] 0.0, 128
        %1946 = vxpose.xlu0.b32.cont [3/16] 0.0, 128
        %1947 = vxpose.xlu0.b32.cont [4/16] 0.0, 128
        %1948 = vxpose.xlu0.b32.cont [5/16] 0.0, 128
        %1949 = vxpose.xlu0.b32.cont [6/16] 0.0, 128
        %1950 = vxpose.xlu0.b32.cont [7/16] 0.0, 128
        %1951 = vxpose.xlu0.b32.cont [8/16] 0.0, 128
        %1952 = vxpose.xlu0.b32.cont [9/16] 0.0, 128
        %1953 = vxpose.xlu0.b32.cont [10/16] 0.0, 128
        %1954 = vxpose.xlu0.b32.cont [11/16] 0.0, 128
        %1955 = vxpose.xlu0.b32.cont [12/16] 0.0, 128
        %1956 = vxpose.xlu0.b32.cont [13/16] 0.0, 128
        %1957 = vxpose.xlu0.b32.cont [14/16] 0.0, 128
        %1958 = vxpose.xlu0.b32.cont [15/16] 0.0, 128
        %1959 = vxpose.xlu0.b32.end [16/16] 0.0, 128
        %v1960 = vpop.trf.xlu0
        %v1961 = vpop.trf.xlu0
        %v1962 = vpop.trf.xlu0
        %v1963 = vpop.trf.xlu0
        %v1964 = vpop.trf.xlu0
        %v1965 = vpop.trf.xlu0
        %v1966 = vpop.trf.xlu0
        %v1967 = vpop.trf.xlu0
        %v1968 = vpop.trf.xlu0
        %v1969 = vpop.trf.xlu0
        %v1970 = vpop.trf.xlu0
        %v1971 = vpop.trf.xlu0
        %v1972 = vpop.trf.xlu0
        %v1973 = vpop.trf.xlu0
        %v1974 = vpop.trf.xlu0
        %v1975 = vpop.trf.xlu0
        %v1976 = vmul.f32 %v1943, %v1960
        %v1977 = vadd.f32 %v1976, 1e-09
        %v1978 = vrsqrt.pop %v1977
        %v1979 = vmul.f32 %v1977, %v1978
        %vm1980 = vcmp.eq.f32.partialorder %v1977, inf
        %v1981 = vsel %vm1980, %v1977, %v1979
        %vm1982 = vcmp.eq.f32.partialorder %v1977, 0.0
        %v1983 = vand.u32 %v1977, 2147483648
        %v1984 = vsel %vm1982, %v1983, %v1981
        %v1985 = vsub.f32 1.0, %v1658
        %v1986 = vmul.f32 %v1985, %v1984
        %v1987 = vadd.f32 %v1658, %v1986
        %v1988 = vadd.f32 %v1987, 1e-09
        %v1989 = vlog2.pop %v1988
        %v1990 = vmul.f32 %v1989, 0.6931472
        %v1991 = vsel %vm1671, %v1990, 0.0
        %v1993 = vsel %vm1932, %v1991, 0
        %1995 = vmatprep.subr.mxu0 0.0
        %1996 = vmatpush1.msra.mxu0 %v1675
        %1997 = vmatprep.subr.mxu0 0.0
        %1998 = vmatpush1.msra.mxu0 0.0
        %1999 = vmatprep.subr.mxu0 0.0
        %2000 = vmatpush1.msra.mxu0 0.0
        %2001 = vmatprep.subr.mxu0 0.0
        %2002 = vmatpush1.msra.mxu0 0.0
        %2003 = vmatprep.subr.mxu0 0.0
        %2004 = vmatpush1.msra.mxu0 0.0
        %2005 = vmatprep.subr.mxu0 0.0
        %2006 = vmatpush1.msra.mxu0 0.0
        %2007 = vmatprep.subr.mxu0 0.0
        %2008 = vmatpush1.msra.mxu0 0.0
        %2009 = vmatprep.subr.mxu0 0.0
        %2010 = vmatpush1.msra.mxu0 0.0
        %2011 = vmatprep.subr.mxu0 0.0
        %2012 = vmatpush1.msra.mxu0 0.0
        %2013 = vmatprep.subr.mxu0 0.0
        %2014 = vmatpush1.msra.mxu0 0.0
        %2015 = vmatprep.subr.mxu0 0.0
        %2016 = vmatpush1.msra.mxu0 0.0
        %2017 = vmatprep.subr.mxu0 0.0
        %2018 = vmatpush1.msra.mxu0 0.0
        %2019 = vmatprep.subr.mxu0 0.0
        %2020 = vmatpush1.msra.mxu0 0.0
        %2021 = vmatprep.subr.mxu0 0.0
        %2022 = vmatpush1.msra.mxu0 0.0
        %2023 = vmatprep.subr.mxu0 0.0
        %2024 = vmatpush1.msra.mxu0 0.0
        %2025 = vmatprep.subr.mxu0 0.0
        %2026 = vmatpush1.msra.mxu0 0.0
        %2027 = vmatprep.subr.mxu0 0.0
        %2028 = vmatpush1.msra.mxu0 0.0
        %2029 = vmatprep.subr.mxu0 0.0
        %2030 = vmatpush1.msra.mxu0 0.0
        %2031 = vmatprep.subr.mxu0 0.0
        %2032 = vmatpush1.msra.mxu0 0.0
        %2033 = vmatprep.subr.mxu0 0.0
        %2034 = vmatpush1.msra.mxu0 0.0
        %2035 = vmatprep.subr.mxu0 0.0
        %2036 = vmatpush1.msra.mxu0 0.0
        %2037 = vmatprep.subr.mxu0 0.0
        %2038 = vmatpush1.msra.mxu0 0.0
        %2039 = vmatprep.subr.mxu0 0.0
        %2040 = vmatpush1.msra.mxu0 0.0
        %2041 = vmatprep.subr.mxu0 0.0
        %2042 = vmatpush1.msra.mxu0 0.0
        %2043 = vmatprep.subr.mxu0 0.0
        %2044 = vmatpush1.msra.mxu0 0.0
        %2045 = vmatprep.subr.mxu0 0.0
        %2046 = vmatpush1.msra.mxu0 0.0
        %2047 = vmatprep.subr.mxu0 0.0
        %2048 = vmatpush1.msra.mxu0 0.0
        %2049 = vmatprep.subr.mxu0 0.0
        %2050 = vmatpush1.msra.mxu0 0.0
        %2051 = vmatprep.subr.mxu0 0.0
        %2052 = vmatpush1.msra.mxu0 0.0
        %2053 = vmatprep.subr.mxu0 0.0
        %2054 = vmatpush1.msra.mxu0 0.0
        %2055 = vmatprep.subr.mxu0 0.0
        %2056 = vmatpush1.msra.mxu0 0.0
        %2057 = vmatprep.subr.mxu0 0.0
        %2058 = vmatpush1.msra.mxu0 0.0
        %2059 = vmatprep.mubr.f32.mxu0 0.0
        %2060 = vmatmul.mubr.f32.gmra.mrb[0].mxu0 %v1993
        %v2061 = vpop.f32.mrb[0].mxu0
        %v2062 = vadd.f32 0.0, %v2061
        %v2063 = vpop.f32.mrb[0].mxu0
        %2064 = vdwg.mxu0
        %v2066 = vsel %vm1932, %v1675, 0
        %2068 = vmatprep.subr.mxu0 0.0
        %2069 = vmatpush1.msra.mxu0 %v2062
        %2070 = vmatprep.subr.mxu0 0.0
        %2071 = vmatpush1.msra.mxu0 0.0
        %2072 = vmatprep.subr.mxu0 0.0
        %2073 = vmatpush1.msra.mxu0 0.0
        %2074 = vmatprep.subr.mxu0 0.0
        %2075 = vmatpush1.msra.mxu0 0.0
        %2076 = vmatprep.subr.mxu0 0.0
        %2077 = vmatpush1.msra.mxu0 0.0
        %2078 = vmatprep.subr.mxu0 0.0
        %2079 = vmatpush1.msra.mxu0 0.0
        %2080 = vmatprep.subr.mxu0 0.0
        %2081 = vmatpush1.msra.mxu0 0.0
        %2082 = vmatprep.subr.mxu0 0.0
        %2083 = vmatpush1.msra.mxu0 0.0
        %2084 = vmatprep.subr.mxu0 0.0
        %2085 = vmatpush1.msra.mxu0 0.0
        %2086 = vmatprep.subr.mxu0 0.0
        %2087 = vmatpush1.msra.mxu0 0.0
        %2088 = vmatprep.subr.mxu0 0.0
        %2089 = vmatpush1.msra.mxu0 0.0
        %2090 = vmatprep.subr.mxu0 0.0
        %2091 = vmatpush1.msra.mxu0 0.0
        %2092 = vmatprep.subr.mxu0 0.0
        %2093 = vmatpush1.msra.mxu0 0.0
        %2094 = vmatprep.subr.mxu0 0.0
        %2095 = vmatpush1.msra.mxu0 0.0
        %2096 = vmatprep.subr.mxu0 0.0
        %2097 = vmatpush1.msra.mxu0 0.0
        %2098 = vmatprep.subr.mxu0 0.0
        %2099 = vmatpush1.msra.mxu0 0.0
        %2100 = vmatprep.subr.mxu0 0.0
        %2101 = vmatpush1.msra.mxu0 0.0
        %2102 = vmatprep.subr.mxu0 0.0
        %2103 = vmatpush1.msra.mxu0 0.0
        %2104 = vmatprep.subr.mxu0 0.0
        %2105 = vmatpush1.msra.mxu0 0.0
        %2106 = vmatprep.subr.mxu0 0.0
        %2107 = vmatpush1.msra.mxu0 0.0
        %2108 = vmatprep.subr.mxu0 0.0
        %2109 = vmatpush1.msra.mxu0 0.0
        %2110 = vmatprep.subr.mxu0 0.0
        %2111 = vmatpush1.msra.mxu0 0.0
        %2112 = vmatprep.subr.mxu0 0.0
        %2113 = vmatpush1.msra.mxu0 0.0
        %2114 = vmatprep.subr.mxu0 0.0
        %2115 = vmatpush1.msra.mxu0 0.0
        %2116 = vmatprep.subr.mxu0 0.0
        %2117 = vmatpush1.msra.mxu0 0.0
        %2118 = vmatprep.subr.mxu0 0.0
        %2119 = vmatpush1.msra.mxu0 0.0
        %2120 = vmatprep.subr.mxu0 0.0
        %2121 = vmatpush1.msra.mxu0 0.0
        %2122 = vmatprep.subr.mxu0 0.0
        %2123 = vmatpush1.msra.mxu0 0.0
        %2124 = vmatprep.subr.mxu0 0.0
        %2125 = vmatpush1.msra.mxu0 0.0
        %2126 = vmatprep.subr.mxu0 0.0
        %2127 = vmatpush1.msra.mxu0 0.0
        %2128 = vmatprep.subr.mxu0 0.0
        %2129 = vmatpush1.msra.mxu0 0.0
        %2130 = vmatprep.subr.mxu0 0.0
        %2131 = vmatpush1.msra.mxu0 0.0
        %2132 = vmatprep.mubr.f32.mxu0 0.0
        %2133 = vmatmul.mubr.f32.gmra.mrb[0].mxu0 %v2066
        %v2134 = vpop.f32.mrb[0].mxu0
        %v2135 = vadd.f32 0.0, %v2134
        %v2136 = vpop.f32.mrb[0].mxu0
        %2137 = vdwg.mxu0
        %v2138 = vmul.f32 %v2135, 1.442695
        %v2139 = vpow.pop %v2138
        %v2140 = vsel %vm1676, %v2139, 0.0
        %2141 = vxpose.xlu0.b32.start [1/16] %v2140, 128
        %2142 = vxpose.xlu0.b32.cont [2/16] 0.0, 128
        %2143 = vxpose.xlu0.b32.cont [3/16] 0.0, 128
        %2144 = vxpose.xlu0.b32.cont [4/16] 0.0, 128
        %2145 = vxpose.xlu0.b32.cont [5/16] 0.0, 128
        %2146 = vxpose.xlu0.b32.cont [6/16] 0.0, 128
        %2147 = vxpose.xlu0.b32.cont [7/16] 0.0, 128
        %2148 = vxpose.xlu0.b32.cont [8/16] 0.0, 128
        %2149 = vxpose.xlu0.b32.cont [9/16] 0.0, 128
        %2150 = vxpose.xlu0.b32.cont [10/16] 0.0, 128
        %2151 = vxpose.xlu0.b32.cont [11/16] 0.0, 128
        %2152 = vxpose.xlu0.b32.cont [12/16] 0.0, 128
        %2153 = vxpose.xlu0.b32.cont [13/16] 0.0, 128
        %2154 = vxpose.xlu0.b32.cont [14/16] 0.0, 128
        %2155 = vxpose.xlu0.b32.cont [15/16] 0.0, 128
        %2156 = vxpose.xlu0.b32.end [16/16] 0.0, 128
        %v2157 = vpop.trf.xlu0
        %v2158 = vpop.trf.xlu0
        %v2159 = vpop.trf.xlu0
        %v2160 = vpop.trf.xlu0
        %v2161 = vpop.trf.xlu0
        %v2162 = vpop.trf.xlu0
        %v2163 = vpop.trf.xlu0
        %v2164 = vpop.trf.xlu0
        %v2165 = vpop.trf.xlu0
        %v2166 = vpop.trf.xlu0
        %v2167 = vpop.trf.xlu0
        %v2168 = vpop.trf.xlu0
        %v2169 = vpop.trf.xlu0
        %v2170 = vpop.trf.xlu0
        %v2171 = vpop.trf.xlu0
        %v2172 = vpop.trf.xlu0
        %v2173 = vadd.f32 %v2140, %v2157
        %v2174 = vsel %vm1672, %v1987, 1e-09
        %v2175 = vadd.f32 %v2173, %v2174
        %v2176 = vld [vmem:[%s1340] sm:$0x1]
        %v2177 = vld [vmem:[%s1348] sm:$0x1]
        %v2179 = vlaneseq
        %v2180 = vshrl.u32 %v2179, 7
        %v2181 = vsub.s32 0, %v2180
        %v2182 = vrot.slane %v2176, %v2181
        %v2184 = vmul.f32 %v2182, %v1685
        %v2185 = vmul.f32 %v2184, %v1707
        %v2187 = vlaneseq
        %v2188 = vshrl.u32 %v2187, 7
        %v2189 = vsub.s32 0, %v2188
        %v2190 = vrot.slane %v2177, %v2189
        %v2192 = vadd.f32 %v2185, %v2190
        %v2193 = vpack.c.bf16 %v2192, %v2192
        %v2194 = vld [vmem:[%s1357] sm:$0xf]
        %v2195 = vld [vmem:[%s1357 + $0x4] sm:$0xf]
        %v2196 = vld [vmem:[%s1357 + $0x8] sm:$0xf]
        %v2197 = vld [vmem:[%s1357 + $0xc] sm:$0xf]
        %v2198 = vld [vmem:[%s1365] sm:$0x1]
        %v2200 = vlaneseq
        %v2201 = vshrl.u32 %v2200, 7
        %v2202 = vsub.s32 0, %v2201
        %v2203 = vrot.slane %v2198, %v2202
        %v2209 = vunpack.c.l.b16 %v2194
        %v2210 = vunpack.c.l.b16 %v2195
        %v2211 = vunpack.c.l.b16 %v2196
        %v2212 = vunpack.c.l.b16 %v2197
        %v2213 = vpack.c.b16 %v2210, %v2209
        %v2214 = vpack.c.b16 %v2212, %v2211
        %v2218 = vsel %vm1679, %v2193, 0
        %2220 = vmatprep.subr.bf16.mxu0 0
        %2221 = vmatpush1.bf16.msra.mxu0 %v2213
        %2222 = vmatprep.subr.bf16.mxu0 0
        %2223 = vmatpush1.bf16.msra.mxu0 %v2214
        %2224 = vmatprep.subr.bf16.mxu0 0
        %2225 = vmatpush1.bf16.msra.mxu0 0
        %2226 = vmatprep.subr.bf16.mxu0 0
        %2227 = vmatpush1.bf16.msra.mxu0 0
        %2228 = vmatprep.subr.bf16.mxu0 0
        %2229 = vmatpush1.bf16.msra.mxu0 0
        %2230 = vmatprep.subr.bf16.mxu0 0
        %2231 = vmatpush1.bf16.msra.mxu0 0
        %2232 = vmatprep.subr.bf16.mxu0 0
        %2233 = vmatpush1.bf16.msra.mxu0 0
        %2234 = vmatprep.subr.bf16.mxu0 0
        %2235 = vmatpush1.bf16.msra.mxu0 0
        %2236 = vmatprep.subr.bf16.mxu0 0
        %2237 = vmatpush1.bf16.msra.mxu0 0
        %2238 = vmatprep.subr.bf16.mxu0 0
        %2239 = vmatpush1.bf16.msra.mxu0 0
        %2240 = vmatprep.subr.bf16.mxu0 0
        %2241 = vmatpush1.bf16.msra.mxu0 0
        %2242 = vmatprep.subr.bf16.mxu0 0
        %2243 = vmatpush1.bf16.msra.mxu0 0
        %2244 = vmatprep.subr.bf16.mxu0 0
        %2245 = vmatpush1.bf16.msra.mxu0 0
        %2246 = vmatprep.subr.bf16.mxu0 0
        %2247 = vmatpush1.bf16.msra.mxu0 0
        %2248 = vmatprep.subr.bf16.mxu0 0
        %2249 = vmatpush1.bf16.msra.mxu0 0
        %2250 = vmatprep.subr.bf16.mxu0 0
        %2251 = vmatpush1.bf16.msra.mxu0 0
        %2252 = vmatprep.mubr.bf16.mxu0 0
        %2253 = vmatmul.mubr.bf16.gmra.mrb[0].mxu0 %v2218
        %v2254 = vpop.f32.mrb[0].mxu0
        %v2255 = vadd.f32 %v2203, %v2254
        %v2256 = vpop.f32.mrb[0].mxu0
        %v2257 = vpop.f32.mrb[0].mxu0
        %v2258 = vpop.f32.mrb[0].mxu0
        %2259 = vdwg.mxu0
        %v2260 = vld [vmem:[%s1374] sm:$0xf]
        %v2261 = vld [vmem:[%s1374 + $0x4] sm:$0xf]
        %v2262 = vld [vmem:[%s1374 + $0x8] sm:$0xf]
        %v2263 = vld [vmem:[%s1374 + $0xc] sm:$0xf]
        %v2264 = vld [vmem:[%s1382] sm:$0x1]
        %v2266 = vlaneseq
        %v2267 = vshrl.u32 %v2266, 7
        %v2268 = vsub.s32 0, %v2267
        %v2269 = vrot.slane %v2264, %v2268
        %v2275 = vunpack.c.l.b16 %v2260
        %v2276 = vunpack.c.l.b16 %v2261
        %v2277 = vunpack.c.l.b16 %v2262
        %v2278 = vunpack.c.l.b16 %v2263
        %v2279 = vpack.c.b16 %v2276, %v2275
        %v2280 = vpack.c.b16 %v2278, %v2277
        %2283 = vmatprep.subr.bf16.mxu0 0
        %2284 = vmatpush1.bf16.msra.mxu0 %v2279
        %2285 = vmatprep.subr.bf16.mxu0 0
        %2286 = vmatpush1.bf16.msra.mxu0 %v2280
        %2287 = vmatprep.subr.bf16.mxu0 0
        %2288 = vmatpush1.bf16.msra.mxu0 0
        %2289 = vmatprep.subr.bf16.mxu0 0
        %2290 = vmatpush1.bf16.msra.mxu0 0
        %2291 = vmatprep.subr.bf16.mxu0 0
        %2292 = vmatpush1.bf16.msra.mxu0 0
        %2293 = vmatprep.subr.bf16.mxu0 0
        %2294 = vmatpush1.bf16.msra.mxu0 0
        %2295 = vmatprep.subr.bf16.mxu0 0
        %2296 = vmatpush1.bf16.msra.mxu0 0
        %2297 = vmatprep.subr.bf16.mxu0 0
        %2298 = vmatpush1.bf16.msra.mxu0 0
        %2299 = vmatprep.subr.bf16.mxu0 0
        %2300 = vmatpush1.bf16.msra.mxu0 0
        %2301 = vmatprep.subr.bf16.mxu0 0
        %2302 = vmatpush1.bf16.msra.mxu0 0
        %2303 = vmatprep.subr.bf16.mxu0 0
        %2304 = vmatpush1.bf16.msra.mxu0 0
        %2305 = vmatprep.subr.bf16.mxu0 0
        %2306 = vmatpush1.bf16.msra.mxu0 0
        %2307 = vmatprep.subr.bf16.mxu0 0
        %2308 = vmatpush1.bf16.msra.mxu0 0
        %2309 = vmatprep.subr.bf16.mxu0 0
        %2310 = vmatpush1.bf16.msra.mxu0 0
        %2311 = vmatprep.subr.bf16.mxu0 0
        %2312 = vmatpush1.bf16.msra.mxu0 0
        %2313 = vmatprep.subr.bf16.mxu0 0
        %2314 = vmatpush1.bf16.msra.mxu0 0
        %2315 = vmatprep.mubr.bf16.mxu0 0
        %2316 = vmatmul.mubr.bf16.gmra.mrb[0].mxu0 %v2218
        %v2317 = vpop.f32.mrb[0].mxu0
        %v2318 = vadd.f32 %v2269, %v2317
        %v2319 = vpop.f32.mrb[0].mxu0
        %v2320 = vpop.f32.mrb[0].mxu0
        %v2321 = vpop.f32.mrb[0].mxu0
        %2322 = vdwg.mxu0
        %v2323 = vld [vmem:[%s1391] sm:$0xf]
        %v2324 = vld [vmem:[%s1391 + $0x4] sm:$0xf]
        %v2325 = vld [vmem:[%s1391 + $0x8] sm:$0xf]
        %v2326 = vld [vmem:[%s1391 + $0xc] sm:$0xf]
        %v2327 = vld [vmem:[%s1399] sm:$0x1]
        %v2329 = vlaneseq
        %v2330 = vshrl.u32 %v2329, 7
        %v2331 = vsub.s32 0, %v2330
        %v2332 = vrot.slane %v2327, %v2331
        %v2338 = vunpack.c.l.b16 %v2323
        %v2339 = vunpack.c.l.b16 %v2324
        %v2340 = vunpack.c.l.b16 %v2325
        %v2341 = vunpack.c.l.b16 %v2326
        %v2342 = vpack.c.b16 %v2339, %v2338
        %v2343 = vpack.c.b16 %v2341, %v2340
        %2346 = vmatprep.subr.bf16.mxu0 0
        %2347 = vmatpush1.bf16.msra.mxu0 %v2342
        %2348 = vmatprep.subr.bf16.mxu0 0
        %2349 = vmatpush1.bf16.msra.mxu0 %v2343
        %2350 = vmatprep.subr.bf16.mxu0 0
        %2351 = vmatpush1.bf16.msra.mxu0 0
        %2352 = vmatprep.subr.bf16.mxu0 0
        %2353 = vmatpush1.bf16.msra.mxu0 0
        %2354 = vmatprep.subr.bf16.mxu0 0
        %2355 = vmatpush1.bf16.msra.mxu0 0
        %2356 = vmatprep.subr.bf16.mxu0 0
        %2357 = vmatpush1.bf16.msra.mxu0 0
        %2358 = vmatprep.subr.bf16.mxu0 0
        %2359 = vmatpush1.bf16.msra.mxu0 0
        %2360 = vmatprep.subr.bf16.mxu0 0
        %2361 = vmatpush1.bf16.msra.mxu0 0
        %2362 = vmatprep.subr.bf16.mxu0 0
        %2363 = vmatpush1.bf16.msra.mxu0 0
        %2364 = vmatprep.subr.bf16.mxu0 0
        %2365 = vmatpush1.bf16.msra.mxu0 0
        %2366 = vmatprep.subr.bf16.mxu0 0
        %2367 = vmatpush1.bf16.msra.mxu0 0
        %2368 = vmatprep.subr.bf16.mxu0 0
        %2369 = vmatpush1.bf16.msra.mxu0 0
        %2370 = vmatprep.subr.bf16.mxu0 0
        %2371 = vmatpush1.bf16.msra.mxu0 0
        %2372 = vmatprep.subr.bf16.mxu0 0
        %2373 = vmatpush1.bf16.msra.mxu0 0
        %2374 = vmatprep.subr.bf16.mxu0 0
        %2375 = vmatpush1.bf16.msra.mxu0 0
        %2376 = vmatprep.subr.bf16.mxu0 0
        %2377 = vmatpush1.bf16.msra.mxu0 0
        %2378 = vmatprep.mubr.bf16.mxu0 0
        %2379 = vmatmul.mubr.bf16.gmra.mrb[0].mxu0 %v2218
        %v2380 = vpop.f32.mrb[0].mxu0
        %v2381 = vadd.f32 %v2332, %v2380
        %v2382 = vpop.f32.mrb[0].mxu0
        %v2383 = vpop.f32.mrb[0].mxu0
        %v2384 = vpop.f32.mrb[0].mxu0
        %2385 = vdwg.mxu0
        %v2386 = vpack.c.bf16 %v2255, %v2255
        %v2387 = vpack.c.bf16 %v2318, %v2318
        %v2389 = vsel %vm1932, %v2386, 0
        %v2392 = vsel %vm1932, %v2387, 0
        %2394 = vmatprep.subr.bf16.mxu0 0
        %2395 = vmatpush1.bf16.xpose.msra.mxu0 %v2392
        %2396 = vmatprep.subr.bf16.mxu0 0
        %2397 = vmatpush1.bf16.xpose.msra.mxu0 0
        %2398 = vmatprep.subr.bf16.mxu0 0
        %2399 = vmatpush1.bf16.xpose.msra.mxu0 0
        %2400 = vmatprep.subr.bf16.mxu0 0
        %2401 = vmatpush1.bf16.xpose.msra.mxu0 0
        %2402 = vmatprep.subr.bf16.mxu0 0
        %2403 = vmatpush1.bf16.xpose.msra.mxu0 0
        %2404 = vmatprep.subr.bf16.mxu0 0
        %2405 = vmatpush1.bf16.xpose.msra.mxu0 0
        %2406 = vmatprep.subr.bf16.mxu0 0
        %2407 = vmatpush1.bf16.xpose.msra.mxu0 0
        %2408 = vmatprep.subr.bf16.mxu0 0
        %2409 = vmatpush1.bf16.xpose.msra.mxu0 0
        %2410 = vmatprep.subr.bf16.mxu0 0
        %2411 = vmatpush1.bf16.xpose.msra.mxu0 0
        %2412 = vmatprep.subr.bf16.mxu0 0
        %2413 = vmatpush1.bf16.xpose.msra.mxu0 0
        %2414 = vmatprep.subr.bf16.mxu0 0
        %2415 = vmatpush1.bf16.xpose.msra.mxu0 0
        %2416 = vmatprep.subr.bf16.mxu0 0
        %2417 = vmatpush1.bf16.xpose.msra.mxu0 0
        %2418 = vmatprep.subr.bf16.mxu0 0
        %2419 = vmatpush1.bf16.xpose.msra.mxu0 0
        %2420 = vmatprep.subr.bf16.mxu0 0
        %2421 = vmatpush1.bf16.xpose.msra.mxu0 0
        %2422 = vmatprep.subr.bf16.mxu0 0
        %2423 = vmatpush1.bf16.xpose.msra.mxu0 0
        %2424 = vmatprep.subr.bf16.mxu0 0
        %2425 = vmatpush1.bf16.xpose.msra.mxu0 0
        %2426 = vmatprep.mubr.bf16.mxu0 0
        %2427 = vmatmul.mubr.bf16.gmra.mrb[0].mxu0 %v2389
        %v2428 = vpop.f32.mrb[0].mxu0
        %v2429 = vadd.f32 0.0, %v2428
        %v2430 = vpop.f32.mrb[0].mxu0
        %v2431 = vpop.f32.mrb[0].mxu0
        %v2432 = vpop.f32.mrb[0].mxu0
        %2433 = vdwg.mxu0
        %v2434 = vmul.f32 %v2429, 0.35355338
        %v2435 = vsel %vm1929, %v2434, -1e+09
        %v2436 = vsel %vm1932, %v2435, -inf
        %2437 = vmax.xlane.f32.xlu0 %v2436
        %v2438 = vpop.xlane.xlu0 %2437
        %v2439 = vsub.f32 %v2435, %v2438
        %v2440 = vmul.f32 %v2439, 1.442695
        %v2441 = vpow.pop %v2440
        %v2442 = vsel %vm1932, %v2441, 0.0
        %2443 = vadd.xlane.f32.xlu0 %v2442
        %v2444 = vpop.xlane.xlu0 %2443
        %v2445 = vrcp.pop %v2444
        %v2446 = vmul.f32 %v2441, %v2445
        %v2447 = vmul.f32 %v2446, %v2175
        %v2448 = vpack.c.bf16 %v2447, %v2447
        %v2449 = vpack.c.bf16 %v2381, %v2381
        %v2451 = vsel %vm1932, %v2448, 0
        %vm2453 = vcmask 1043456
        %v2455 = vsel %vm2453, %v2449, 0
        %2457 = vmatprep.subr.bf16.mxu0 0
        %2458 = vmatpush1.bf16.msra.mxu0 %v2455
        %2459 = vmatprep.subr.bf16.mxu0 0
        %2460 = vmatpush1.bf16.msra.mxu0 0
        %2461 = vmatprep.subr.bf16.mxu0 0
        %2462 = vmatpush1.bf16.msra.mxu0 0
        %2463 = vmatprep.subr.bf16.mxu0 0
        %2464 = vmatpush1.bf16.msra.mxu0 0
        %2465 = vmatprep.subr.bf16.mxu0 0
        %2466 = vmatpush1.bf16.msra.mxu0 0
        %2467 = vmatprep.subr.bf16.mxu0 0
        %2468 = vmatpush1.bf16.msra.mxu0 0
        %2469 = vmatprep.subr.bf16.mxu0 0
        %2470 = vmatpush1.bf16.msra.mxu0 0
        %2471 = vmatprep.subr.bf16.mxu0 0
        %2472 = vmatpush1.bf16.msra.mxu0 0
        %2473 = vmatprep.subr.bf16.mxu0 0
        %2474 = vmatpush1.bf16.msra.mxu0 0
        %2475 = vmatprep.subr.bf16.mxu0 0
        %2476 = vmatpush1.bf16.msra.mxu0 0
        %2477 = vmatprep.subr.bf16.mxu0 0
        %2478 = vmatpush1.bf16.msra.mxu0 0
        %2479 = vmatprep.subr.bf16.mxu0 0
        %2480 = vmatpush1.bf16.msra.mxu0 0
        %2481 = vmatprep.subr.bf16.mxu0 0
        %2482 = vmatpush1.bf16.msra.mxu0 0
        %2483 = vmatprep.subr.bf16.mxu0 0
        %2484 = vmatpush1.bf16.msra.mxu0 0
        %2485 = vmatprep.subr.bf16.mxu0 0
        %2486 = vmatpush1.bf16.msra.mxu0 0
        %2487 = vmatprep.subr.bf16.mxu0 0
        %2488 = vmatpush1.bf16.msra.mxu0 0
        %2489 = vmatprep.mubr.bf16.mxu0 0
        %2490 = vmatmul.mubr.bf16.gmra.mrb[0].mxu0 %v2451
        %v2491 = vpop.f32.mrb[0].mxu0
        %v2492 = vadd.f32 0.0, %v2491
        %v2493 = vpop.f32.mrb[0].mxu0
        %v2494 = vpop.f32.mrb[0].mxu0
        %v2495 = vpop.f32.mrb[0].mxu0
        %2496 = vdwg.mxu0
        %2498 = vrot.lane.b32.xlu0 %v2386, 120
        %v2499 = vpop.permute.xlu0 %2498
        %2501 = vrot.lane.b32.xlu0 %v2387, 120
        %v2502 = vpop.permute.xlu0 %2501
        %v2504 = vsel %vm1932, %v2499, 0
        %v2507 = vsel %vm1932, %v2502, 0
        %2509 = vmatprep.subr.bf16.mxu0 0
        %2510 = vmatpush1.bf16.xpose.msra.mxu0 %v2507
        %2511 = vmatprep.subr.bf16.mxu0 0
        %2512 = vmatpush1.bf16.xpose.msra.mxu0 0
        %2513 = vmatprep.subr.bf16.mxu0 0
        %2514 = vmatpush1.bf16.xpose.msra.mxu0 0
        %2515 = vmatprep.subr.bf16.mxu0 0
        %2516 = vmatpush1.bf16.xpose.msra.mxu0 0
        %2517 = vmatprep.subr.bf16.mxu0 0
        %2518 = vmatpush1.bf16.xpose.msra.mxu0 0
        %2519 = vmatprep.subr.bf16.mxu0 0
        %2520 = vmatpush1.bf16.xpose.msra.mxu0 0
        %2521 = vmatprep.subr.bf16.mxu0 0
        %2522 = vmatpush1.bf16.xpose.msra.mxu0 0
        %2523 = vmatprep.subr.bf16.mxu0 0
        %2524 = vmatpush1.bf16.xpose.msra.mxu0 0
        %2525 = vmatprep.subr.bf16.mxu0 0
        %2526 = vmatpush1.bf16.xpose.msra.mxu0 0
        %2527 = vmatprep.subr.bf16.mxu0 0
        %2528 = vmatpush1.bf16.xpose.msra.mxu0 0
        %2529 = vmatprep.subr.bf16.mxu0 0
        %2530 = vmatpush1.bf16.xpose.msra.mxu0 0
        %2531 = vmatprep.subr.bf16.mxu0 0
        %2532 = vmatpush1.bf16.xpose.msra.mxu0 0
        %2533 = vmatprep.subr.bf16.mxu0 0
        %2534 = vmatpush1.bf16.xpose.msra.mxu0 0
        %2535 = vmatprep.subr.bf16.mxu0 0
        %2536 = vmatpush1.bf16.xpose.msra.mxu0 0
        %2537 = vmatprep.subr.bf16.mxu0 0
        %2538 = vmatpush1.bf16.xpose.msra.mxu0 0
        %2539 = vmatprep.subr.bf16.mxu0 0
        %2540 = vmatpush1.bf16.xpose.msra.mxu0 0
        %2541 = vmatprep.mubr.bf16.mxu0 0
        %2542 = vmatmul.mubr.bf16.gmra.mrb[0].mxu0 %v2504
        %v2543 = vpop.f32.mrb[0].mxu0
        %v2544 = vadd.f32 0.0, %v2543
        %v2545 = vpop.f32.mrb[0].mxu0
        %v2546 = vpop.f32.mrb[0].mxu0
        %v2547 = vpop.f32.mrb[0].mxu0
        %2548 = vdwg.mxu0
        %v2549 = vmul.f32 %v2544, 0.35355338
        %v2550 = vsel %vm1929, %v2549, -1e+09
        %v2551 = vsel %vm1932, %v2550, -inf
        %2552 = vmax.xlane.f32.xlu0 %v2551
        %v2553 = vpop.xlane.xlu0 %2552
        %v2554 = vsub.f32 %v2550, %v2553
        %v2555 = vmul.f32 %v2554, 1.442695
        %v2556 = vpow.pop %v2555
        %v2557 = vsel %vm1932, %v2556, 0.0
        %2558 = vadd.xlane.f32.xlu0 %v2557
        %v2559 = vpop.xlane.xlu0 %2558
        %v2560 = vrcp.pop %v2559
        %v2561 = vmul.f32 %v2556, %v2560
        %v2562 = vmul.f32 %v2561, %v2175
        %v2563 = vpack.c.bf16 %v2562, %v2562
        %2565 = vrot.lane.b32.xlu0 %v2449, 120
        %v2566 = vpop.permute.xlu0 %2565
        %v2568 = vsel %vm1932, %v2563, 0
        %v2571 = vsel %vm2453, %v2566, 0
        %2573 = vmatprep.subr.bf16.mxu0 0
        %2574 = vmatpush1.bf16.msra.mxu0 %v2571
        %2575 = vmatprep.subr.bf16.mxu0 0
        %2576 = vmatpush1.bf16.msra.mxu0 0
        %2577 = vmatprep.subr.bf16.mxu0 0
        %2578 = vmatpush1.bf16.msra.mxu0 0
        %2579 = vmatprep.subr.bf16.mxu0 0
        %2580 = vmatpush1.bf16.msra.mxu0 0
        %2581 = vmatprep.subr.bf16.mxu0 0
        %2582 = vmatpush1.bf16.msra.mxu0 0
        %2583 = vmatprep.subr.bf16.mxu0 0
        %2584 = vmatpush1.bf16.msra.mxu0 0
        %2585 = vmatprep.subr.bf16.mxu0 0
        %2586 = vmatpush1.bf16.msra.mxu0 0
        %2587 = vmatprep.subr.bf16.mxu0 0
        %2588 = vmatpush1.bf16.msra.mxu0 0
        %2589 = vmatprep.subr.bf16.mxu0 0
        %2590 = vmatpush1.bf16.msra.mxu0 0
        %2591 = vmatprep.subr.bf16.mxu0 0
        %2592 = vmatpush1.bf16.msra.mxu0 0
        %2593 = vmatprep.subr.bf16.mxu0 0
        %2594 = vmatpush1.bf16.msra.mxu0 0
        %2595 = vmatprep.subr.bf16.mxu0 0
        %2596 = vmatpush1.bf16.msra.mxu0 0
        %2597 = vmatprep.subr.bf16.mxu0 0
        %2598 = vmatpush1.bf16.msra.mxu0 0
        %2599 = vmatprep.subr.bf16.mxu0 0
        %2600 = vmatpush1.bf16.msra.mxu0 0
        %2601 = vmatprep.subr.bf16.mxu0 0
        %2602 = vmatpush1.bf16.msra.mxu0 0
        %2603 = vmatprep.subr.bf16.mxu0 0
        %2604 = vmatpush1.bf16.msra.mxu0 0
        %2605 = vmatprep.mubr.bf16.mxu0 0
        %2606 = vmatmul.mubr.bf16.gmra.mrb[0].mxu0 %v2568
        %v2607 = vpop.f32.mrb[0].mxu0
        %v2608 = vadd.f32 0.0, %v2607
        %v2609 = vpop.f32.mrb[0].mxu0
        %v2610 = vpop.f32.mrb[0].mxu0
        %v2611 = vpop.f32.mrb[0].mxu0
        %2612 = vdwg.mxu0
        %2613 = vrot.lane.b32.xlu0 %v2386, 112
        %v2614 = vpop.permute.xlu0 %2613
        %2615 = vrot.lane.b32.xlu0 %v2387, 112
        %v2616 = vpop.permute.xlu0 %2615
        %v2618 = vsel %vm1932, %v2614, 0
        %v2621 = vsel %vm1932, %v2616, 0
        %2623 = vmatprep.subr.bf16.mxu0 0
        %2624 = vmatpush1.bf16.xpose.msra.mxu0 %v2621
        %2625 = vmatprep.subr.bf16.mxu0 0
        %2626 = vmatpush1.bf16.xpose.msra.mxu0 0
        %2627 = vmatprep.subr.bf16.mxu0 0
        %2628 = vmatpush1.bf16.xpose.msra.mxu0 0
        %2629 = vmatprep.subr.bf16.mxu0 0
        %2630 = vmatpush1.bf16.xpose.msra.mxu0 0
        %2631 = vmatprep.subr.bf16.mxu0 0
        %2632 = vmatpush1.bf16.xpose.msra.mxu0 0
        %2633 = vmatprep.subr.bf16.mxu0 0
        %2634 = vmatpush1.bf16.xpose.msra.mxu0 0
        %2635 = vmatprep.subr.bf16.mxu0 0
        %2636 = vmatpush1.bf16.xpose.msra.mxu0 0
        %2637 = vmatprep.subr.bf16.mxu0 0
        %2638 = vmatpush1.bf16.xpose.msra.mxu0 0
        %2639 = vmatprep.subr.bf16.mxu0 0
        %2640 = vmatpush1.bf16.xpose.msra.mxu0 0
        %2641 = vmatprep.subr.bf16.mxu0 0
        %2642 = vmatpush1.bf16.xpose.msra.mxu0 0
        %2643 = vmatprep.subr.bf16.mxu0 0
        %2644 = vmatpush1.bf16.xpose.msra.mxu0 0
        %2645 = vmatprep.subr.bf16.mxu0 0
        %2646 = vmatpush1.bf16.xpose.msra.mxu0 0
        %2647 = vmatprep.subr.bf16.mxu0 0
        %2648 = vmatpush1.bf16.xpose.msra.mxu0 0
        %2649 = vmatprep.subr.bf16.mxu0 0
        %2650 = vmatpush1.bf16.xpose.msra.mxu0 0
        %2651 = vmatprep.subr.bf16.mxu0 0
        %2652 = vmatpush1.bf16.xpose.msra.mxu0 0
        %2653 = vmatprep.subr.bf16.mxu0 0
        %2654 = vmatpush1.bf16.xpose.msra.mxu0 0
        %2655 = vmatprep.mubr.bf16.mxu0 0
        %2656 = vmatmul.mubr.bf16.gmra.mrb[0].mxu0 %v2618
        %v2657 = vpop.f32.mrb[0].mxu0
        %v2658 = vadd.f32 0.0, %v2657
        %v2659 = vpop.f32.mrb[0].mxu0
        %v2660 = vpop.f32.mrb[0].mxu0
        %v2661 = vpop.f32.mrb[0].mxu0
        %2662 = vdwg.mxu0
        %v2663 = vmul.f32 %v2658, 0.35355338
        %v2664 = vsel %vm1929, %v2663, -1e+09
        %v2665 = vsel %vm1932, %v2664, -inf
        %2666 = vmax.xlane.f32.xlu0 %v2665
        %v2667 = vpop.xlane.xlu0 %2666
        %v2668 = vsub.f32 %v2664, %v2667
        %v2669 = vmul.f32 %v2668, 1.442695
        %v2670 = vpow.pop %v2669
        %v2671 = vsel %vm1932, %v2670, 0.0
        %2672 = vadd.xlane.f32.xlu0 %v2671
        %v2673 = vpop.xlane.xlu0 %2672
        %v2674 = vrcp.pop %v2673
        %v2675 = vmul.f32 %v2670, %v2674
        %v2676 = vmul.f32 %v2675, %v2175
        %v2677 = vpack.c.bf16 %v2676, %v2676
        %2678 = vrot.lane.b32.xlu0 %v2449, 112
        %v2679 = vpop.permute.xlu0 %2678
        %v2681 = vsel %vm1932, %v2677, 0
        %v2684 = vsel %vm2453, %v2679, 0
        %2686 = vmatprep.subr.bf16.mxu0 0
        %2687 = vmatpush1.bf16.msra.mxu0 %v2684
        %2688 = vmatprep.subr.bf16.mxu0 0
        %2689 = vmatpush1.bf16.msra.mxu0 0
        %2690 = vmatprep.subr.bf16.mxu0 0
        %2691 = vmatpush1.bf16.msra.mxu0 0
        %2692 = vmatprep.subr.bf16.mxu0 0
        %2693 = vmatpush1.bf16.msra.mxu0 0
        %2694 = vmatprep.subr.bf16.mxu0 0
        %2695 = vmatpush1.bf16.msra.mxu0 0
        %2696 = vmatprep.subr.bf16.mxu0 0
        %2697 = vmatpush1.bf16.msra.mxu0 0
        %2698 = vmatprep.subr.bf16.mxu0 0
        %2699 = vmatpush1.bf16.msra.mxu0 0
        %2700 = vmatprep.subr.bf16.mxu0 0
        %2701 = vmatpush1.bf16.msra.mxu0 0
        %2702 = vmatprep.subr.bf16.mxu0 0
        %2703 = vmatpush1.bf16.msra.mxu0 0
        %2704 = vmatprep.subr.bf16.mxu0 0
        %2705 = vmatpush1.bf16.msra.mxu0 0
        %2706 = vmatprep.subr.bf16.mxu0 0
        %2707 = vmatpush1.bf16.msra.mxu0 0
        %2708 = vmatprep.subr.bf16.mxu0 0
        %2709 = vmatpush1.bf16.msra.mxu0 0
        %2710 = vmatprep.subr.bf16.mxu0 0
        %2711 = vmatpush1.bf16.msra.mxu0 0
        %2712 = vmatprep.subr.bf16.mxu0 0
        %2713 = vmatpush1.bf16.msra.mxu0 0
        %2714 = vmatprep.subr.bf16.mxu0 0
        %2715 = vmatpush1.bf16.msra.mxu0 0
        %2716 = vmatprep.subr.bf16.mxu0 0
        %2717 = vmatpush1.bf16.msra.mxu0 0
        %2718 = vmatprep.mubr.bf16.mxu0 0
        %2719 = vmatmul.mubr.bf16.gmra.mrb[0].mxu0 %v2681
        %v2720 = vpop.f32.mrb[0].mxu0
        %v2721 = vadd.f32 0.0, %v2720
        %v2722 = vpop.f32.mrb[0].mxu0
        %v2723 = vpop.f32.mrb[0].mxu0
        %v2724 = vpop.f32.mrb[0].mxu0
        %2725 = vdwg.mxu0
        %2726 = vrot.lane.b32.xlu0 %v2386, 104
        %v2727 = vpop.permute.xlu0 %2726
        %2728 = vrot.lane.b32.xlu0 %v2387, 104
        %v2729 = vpop.permute.xlu0 %2728
        %v2731 = vsel %vm1932, %v2727, 0
        %v2734 = vsel %vm1932, %v2729, 0
        %2736 = vmatprep.subr.bf16.mxu0 0
        %2737 = vmatpush1.bf16.xpose.msra.mxu0 %v2734
        %2738 = vmatprep.subr.bf16.mxu0 0
        %2739 = vmatpush1.bf16.xpose.msra.mxu0 0
        %2740 = vmatprep.subr.bf16.mxu0 0
        %2741 = vmatpush1.bf16.xpose.msra.mxu0 0
        %2742 = vmatprep.subr.bf16.mxu0 0
        %2743 = vmatpush1.bf16.xpose.msra.mxu0 0
        %2744 = vmatprep.subr.bf16.mxu0 0
        %2745 = vmatpush1.bf16.xpose.msra.mxu0 0
        %2746 = vmatprep.subr.bf16.mxu0 0
        %2747 = vmatpush1.bf16.xpose.msra.mxu0 0
        %2748 = vmatprep.subr.bf16.mxu0 0
        %2749 = vmatpush1.bf16.xpose.msra.mxu0 0
        %2750 = vmatprep.subr.bf16.mxu0 0
        %2751 = vmatpush1.bf16.xpose.msra.mxu0 0
        %2752 = vmatprep.subr.bf16.mxu0 0
        %2753 = vmatpush1.bf16.xpose.msra.mxu0 0
        %2754 = vmatprep.subr.bf16.mxu0 0
        %2755 = vmatpush1.bf16.xpose.msra.mxu0 0
        %2756 = vmatprep.subr.bf16.mxu0 0
        %2757 = vmatpush1.bf16.xpose.msra.mxu0 0
        %2758 = vmatprep.subr.bf16.mxu0 0
        %2759 = vmatpush1.bf16.xpose.msra.mxu0 0
        %2760 = vmatprep.subr.bf16.mxu0 0
        %2761 = vmatpush1.bf16.xpose.msra.mxu0 0
        %2762 = vmatprep.subr.bf16.mxu0 0
        %2763 = vmatpush1.bf16.xpose.msra.mxu0 0
        %2764 = vmatprep.subr.bf16.mxu0 0
        %2765 = vmatpush1.bf16.xpose.msra.mxu0 0
        %2766 = vmatprep.subr.bf16.mxu0 0
        %2767 = vmatpush1.bf16.xpose.msra.mxu0 0
        %2768 = vmatprep.mubr.bf16.mxu0 0
        %2769 = vmatmul.mubr.bf16.gmra.mrb[0].mxu0 %v2731
        %v2770 = vpop.f32.mrb[0].mxu0
        %v2771 = vadd.f32 0.0, %v2770
        %v2772 = vpop.f32.mrb[0].mxu0
        %v2773 = vpop.f32.mrb[0].mxu0
        %v2774 = vpop.f32.mrb[0].mxu0
        %2775 = vdwg.mxu0
        %v2776 = vmul.f32 %v2771, 0.35355338
        %v2777 = vsel %vm1929, %v2776, -1e+09
        %v2778 = vsel %vm1932, %v2777, -inf
        %2779 = vmax.xlane.f32.xlu0 %v2778
        %v2780 = vpop.xlane.xlu0 %2779
        %v2781 = vsub.f32 %v2777, %v2780
        %v2782 = vmul.f32 %v2781, 1.442695
        %v2783 = vpow.pop %v2782
        %v2784 = vsel %vm1932, %v2783, 0.0
        %2785 = vadd.xlane.f32.xlu0 %v2784
        %v2786 = vpop.xlane.xlu0 %2785
        %v2787 = vrcp.pop %v2786
        %v2788 = vmul.f32 %v2783, %v2787
        %v2789 = vmul.f32 %v2788, %v2175
        %v2790 = vpack.c.bf16 %v2789, %v2789
        %2791 = vrot.lane.b32.xlu0 %v2449, 104
        %v2792 = vpop.permute.xlu0 %2791
        %v2794 = vsel %vm1932, %v2790, 0
        %v2797 = vsel %vm2453, %v2792, 0
        %2799 = vmatprep.subr.bf16.mxu0 0
        %2800 = vmatpush1.bf16.msra.mxu0 %v2797
        %2801 = vmatprep.subr.bf16.mxu0 0
        %2802 = vmatpush1.bf16.msra.mxu0 0
        %2803 = vmatprep.subr.bf16.mxu0 0
        %2804 = vmatpush1.bf16.msra.mxu0 0
        %2805 = vmatprep.subr.bf16.mxu0 0
        %2806 = vmatpush1.bf16.msra.mxu0 0
        %2807 = vmatprep.subr.bf16.mxu0 0
        %2808 = vmatpush1.bf16.msra.mxu0 0
        %2809 = vmatprep.subr.bf16.mxu0 0
        %2810 = vmatpush1.bf16.msra.mxu0 0
        %2811 = vmatprep.subr.bf16.mxu0 0
        %2812 = vmatpush1.bf16.msra.mxu0 0
        %2813 = vmatprep.subr.bf16.mxu0 0
        %2814 = vmatpush1.bf16.msra.mxu0 0
        %2815 = vmatprep.subr.bf16.mxu0 0
        %2816 = vmatpush1.bf16.msra.mxu0 0
        %2817 = vmatprep.subr.bf16.mxu0 0
        %2818 = vmatpush1.bf16.msra.mxu0 0
        %2819 = vmatprep.subr.bf16.mxu0 0
        %2820 = vmatpush1.bf16.msra.mxu0 0
        %2821 = vmatprep.subr.bf16.mxu0 0
        %2822 = vmatpush1.bf16.msra.mxu0 0
        %2823 = vmatprep.subr.bf16.mxu0 0
        %2824 = vmatpush1.bf16.msra.mxu0 0
        %2825 = vmatprep.subr.bf16.mxu0 0
        %2826 = vmatpush1.bf16.msra.mxu0 0
        %2827 = vmatprep.subr.bf16.mxu0 0
        %2828 = vmatpush1.bf16.msra.mxu0 0
        %2829 = vmatprep.subr.bf16.mxu0 0
        %2830 = vmatpush1.bf16.msra.mxu0 0
        %2831 = vmatprep.mubr.bf16.mxu0 0
        %2832 = vmatmul.mubr.bf16.gmra.mrb[0].mxu0 %v2794
        %v2833 = vpop.f32.mrb[0].mxu0
        %v2834 = vadd.f32 0.0, %v2833
        %v2835 = vpop.f32.mrb[0].mxu0
        %v2836 = vpop.f32.mrb[0].mxu0
        %v2837 = vpop.f32.mrb[0].mxu0
        %2838 = vdwg.mxu0
        %2840 = vrot.lane.b32.xlu0 %v2608, 8
        %v2841 = vpop.permute.xlu0 %2840
        %2844 = vrot.lane.b32.xlu0 %v2721, 16
        %v2845 = vpop.permute.xlu0 %2844
        %2848 = vrot.lane.b32.xlu0 %v2834, 24
        %v2849 = vpop.permute.xlu0 %2848
        %v2851 = vsel %vm1932, %v2492, %v2841
        %vm2852 = vcmask 130048
        %v2853 = vsel %vm2852, %v2851, %v2845
        %vm2854 = vcmask 195584
        %v2855 = vsel %vm2854, %v2853, %v2849
        %v2856 = vpack.c.bf16 %v2855, %v2855
        %v2857 = vld [vmem:[%s1408] sm:$0xf]
        %v2858 = vld [vmem:[%s1408 + $0x4] sm:$0xf]
        %v2859 = vld [vmem:[%s1408 + $0x8] sm:$0xf]
        %v2860 = vld [vmem:[%s1408 + $0xc] sm:$0xf]
        %v2861 = vld [vmem:[%s1416] sm:$0x1]
        %v2863 = vlaneseq
        %v2864 = vshrl.u32 %v2863, 7
        %v2865 = vsub.s32 0, %v2864
        %v2866 = vrot.slane %v2861, %v2865
        %v2872 = vunpack.c.l.b16 %v2857
        %v2873 = vunpack.c.l.b16 %v2858
        %v2874 = vunpack.c.l.b16 %v2859
        %v2875 = vunpack.c.l.b16 %v2860
        %v2876 = vpack.c.b16 %v2873, %v2872
        %v2877 = vpack.c.b16 %v2875, %v2874
        %v2881 = vsel %vm1679, %v2856, 0
        %2883 = vmatprep.subr.bf16.mxu0 0
        %2884 = vmatpush1.bf16.msra.mxu0 %v2876
        %2885 = vmatprep.subr.bf16.mxu0 0
        %2886 = vmatpush1.bf16.msra.mxu0 %v2877
        %2887 = vmatprep.subr.bf16.mxu0 0
        %2888 = vmatpush1.bf16.msra.mxu0 0
        %2889 = vmatprep.subr.bf16.mxu0 0
        %2890 = vmatpush1.bf16.msra.mxu0 0
        %2891 = vmatprep.subr.bf16.mxu0 0
        %2892 = vmatpush1.bf16.msra.mxu0 0
        %2893 = vmatprep.subr.bf16.mxu0 0
        %2894 = vmatpush1.bf16.msra.mxu0 0
        %2895 = vmatprep.subr.bf16.mxu0 0
        %2896 = vmatpush1.bf16.msra.mxu0 0
        %2897 = vmatprep.subr.bf16.mxu0 0
        %2898 = vmatpush1.bf16.msra.mxu0 0
        %2899 = vmatprep.subr.bf16.mxu0 0
        %2900 = vmatpush1.bf16.msra.mxu0 0
        %2901 = vmatprep.subr.bf16.mxu0 0
        %2902 = vmatpush1.bf16.msra.mxu0 0
        %2903 = vmatprep.subr.bf16.mxu0 0
        %2904 = vmatpush1.bf16.msra.mxu0 0
        %2905 = vmatprep.subr.bf16.mxu0 0
        %2906 = vmatpush1.bf16.msra.mxu0 0
        %2907 = vmatprep.subr.bf16.mxu0 0
        %2908 = vmatpush1.bf16.msra.mxu0 0
        %2909 = vmatprep.subr.bf16.mxu0 0
        %2910 = vmatpush1.bf16.msra.mxu0 0
        %2911 = vmatprep.subr.bf16.mxu0 0
        %2912 = vmatpush1.bf16.msra.mxu0 0
        %2913 = vmatprep.subr.bf16.mxu0 0
        %2914 = vmatpush1.bf16.msra.mxu0 0
        %2915 = vmatprep.mubr.bf16.mxu0 0
        %2916 = vmatmul.mubr.bf16.gmra.mrb[0].mxu0 %v2881
        %v2917 = vpop.f32.mrb[0].mxu0
        %v2918 = vadd.f32 %v2866, %v2917
        %v2919 = vpop.f32.mrb[0].mxu0
        %v2920 = vpop.f32.mrb[0].mxu0
        %v2921 = vpop.f32.mrb[0].mxu0
        %2922 = vdwg.mxu0
        %v2923 = vadd.f32 %v1657, %v2918
        %v2924 = vld [vmem:[%s1424] sm:$0x1]
        %v2925 = vld [vmem:[%s1432] sm:$0x1]
        %v2926 = vsel %vm1679, %v2923, 0.0
        %2927 = vadd.xlane.f32.xlu0 %v2926
        %v2928 = vpop.xlane.xlu0 %2927
        %v2929 = vmul.f32 %v2928, %v1683
        %v2930 = vsub.f32 %v2923, %v2929
        %v2931 = vmul.f32 %v2930, %v2930
        %v2932 = vsel %vm1679, %v2931, 0.0
        %2933 = vadd.xlane.f32.xlu0 %v2932
        %v2934 = vpop.xlane.xlu0 %2933
        %v2935 = vmul.f32 %v2934, %v1690
        %v2936 = vrsqrt.pop %v2935
        %v2937 = vmul.f32 %v2935, %v2936
        %vm2938 = vcmp.eq.f32.partialorder %v2935, inf
        %v2939 = vsel %vm2938, %v2935, %v2937
        %vm2940 = vcmp.eq.f32.partialorder %v2935, 0.0
        %v2941 = vand.u32 %v2935, 2147483648
        %v2942 = vsel %vm2940, %v2941, %v2939
        %v2944 = vlaneseq
        %v2945 = vshrl.u32 %v2944, 7
        %v2946 = vsub.s32 0, %v2945
        %v2947 = vrot.slane %v2924, %v2946
        %v2949 = vmul.f32 %v2947, %v2930
        %v2950 = vadd.f32 %v2942, 1e-06
        %v2951 = vrcp.pop %v2950
        %v2952 = vmul.f32 %v2949, %v2951
        %v2954 = vlaneseq
        %v2955 = vshrl.u32 %v2954, 7
        %v2956 = vsub.s32 0, %v2955
        %v2957 = vrot.slane %v2925, %v2956
        %v2959 = vadd.f32 %v2952, %v2957
        %v2960 = vpack.c.bf16 %v2959, %v2959
        %v2961 = vld [vmem:[%s1441] sm:$0xf]
        %v2962 = vld [vmem:[%s1441 + $0x4] sm:$0xf]
        %v2963 = vld [vmem:[%s1441 + $0x8] sm:$0xf]
        %v2964 = vld [vmem:[%s1441 + $0xc] sm:$0xf]
        %v2965 = vld [vmem:[%s1449] sm:$0x1]
        %v2967 = vlaneseq
        %v2968 = vshrl.u32 %v2967, 7
        %v2969 = vsub.s32 0, %v2968
        %v2970 = vrot.slane %v2965, %v2969
        %v2976 = vunpack.c.l.b16 %v2961
        %v2977 = vunpack.c.l.b16 %v2962
        %v2978 = vunpack.c.l.b16 %v2963
        %v2979 = vunpack.c.l.b16 %v2964
        %v2980 = vpack.c.b16 %v2977, %v2976
        %v2981 = vpack.c.b16 %v2979, %v2978
        %v2985 = vsel %vm1679, %v2960, 0
        %2987 = vmatprep.subr.bf16.mxu0 0
        %2988 = vmatpush1.bf16.msra.mxu0 %v2980
        %2989 = vmatprep.subr.bf16.mxu0 0
        %2990 = vmatpush1.bf16.msra.mxu0 %v2981
        %2991 = vmatprep.subr.bf16.mxu0 0
        %2992 = vmatpush1.bf16.msra.mxu0 0
        %2993 = vmatprep.subr.bf16.mxu0 0
        %2994 = vmatpush1.bf16.msra.mxu0 0
        %2995 = vmatprep.subr.bf16.mxu0 0
        %2996 = vmatpush1.bf16.msra.mxu0 0
        %2997 = vmatprep.subr.bf16.mxu0 0
        %2998 = vmatpush1.bf16.msra.mxu0 0
        %2999 = vmatprep.subr.bf16.mxu0 0
        %3000 = vmatpush1.bf16.msra.mxu0 0
        %3001 = vmatprep.subr.bf16.mxu0 0
        %3002 = vmatpush1.bf16.msra.mxu0 0
        %3003 = vmatprep.subr.bf16.mxu0 0
        %3004 = vmatpush1.bf16.msra.mxu0 0
        %3005 = vmatprep.subr.bf16.mxu0 0
        %3006 = vmatpush1.bf16.msra.mxu0 0
        %3007 = vmatprep.subr.bf16.mxu0 0
        %3008 = vmatpush1.bf16.msra.mxu0 0
        %3009 = vmatprep.subr.bf16.mxu0 0
        %3010 = vmatpush1.bf16.msra.mxu0 0
        %3011 = vmatprep.subr.bf16.mxu0 0
        %3012 = vmatpush1.bf16.msra.mxu0 0
        %3013 = vmatprep.subr.bf16.mxu0 0
        %3014 = vmatpush1.bf16.msra.mxu0 0
        %3015 = vmatprep.subr.bf16.mxu0 0
        %3016 = vmatpush1.bf16.msra.mxu0 0
        %3017 = vmatprep.subr.bf16.mxu0 0
        %3018 = vmatpush1.bf16.msra.mxu0 0
        %3019 = vmatprep.mubr.bf16.mxu0 0
        %3020 = vmatmul.mubr.bf16.gmra.mrb[0].mxu0 %v2985
        %v3021 = vpop.f32.mrb[0].mxu0
        %v3022 = vadd.f32 %v2970, %v3021
        %v3023 = vpop.f32.mrb[0].mxu0
        %v3024 = vpop.f32.mrb[0].mxu0
        %v3025 = vpop.f32.mrb[0].mxu0
        %3026 = vdwg.mxu0
        %v3027 = vmax.f32 %v3022, 0.0
        %v3028 = vpack.c.bf16 %v3027, %v3027
        %v3029 = vld [vmem:[%s1458] sm:$0xf]
        %v3030 = vld [vmem:[%s1458 + $0x4] sm:$0xf]
        %v3031 = vld [vmem:[%s1458 + $0x8] sm:$0xf]
        %v3032 = vld [vmem:[%s1458 + $0xc] sm:$0xf]
        %v3033 = vld [vmem:[%s1458 + $0x10] sm:$0xf]
        %v3034 = vld [vmem:[%s1458 + $0x14] sm:$0xf]
        %v3035 = vld [vmem:[%s1458 + $0x18] sm:$0xf]
        %v3036 = vld [vmem:[%s1458 + $0x1c] sm:$0xf]
        %v3037 = vld [vmem:[%s1466] sm:$0x1]
        %v3039 = vlaneseq
        %v3040 = vshrl.u32 %v3039, 7
        %v3041 = vsub.s32 0, %v3040
        %v3042 = vrot.slane %v3037, %v3041
        %v3052 = vunpack.c.l.b16 %v3029
        %v3053 = vunpack.c.l.b16 %v3030
        %v3054 = vunpack.c.l.b16 %v3031
        %v3055 = vunpack.c.l.b16 %v3032
        %v3056 = vunpack.c.l.b16 %v3033
        %v3057 = vunpack.c.l.b16 %v3034
        %v3058 = vunpack.c.l.b16 %v3035
        %v3059 = vunpack.c.l.b16 %v3036
        %v3060 = vpack.c.b16 %v3053, %v3052
        %v3061 = vpack.c.b16 %v3055, %v3054
        %v3062 = vpack.c.b16 %v3057, %v3056
        %v3063 = vpack.c.b16 %v3059, %v3058
        %vm3068 = vcmask 523264
        %v3070 = vsel %vm3068, %v3028, 0
        %3072 = vmatprep.subr.bf16.mxu0 0
        %3073 = vmatpush1.bf16.msra.mxu0 %v3060
        %3074 = vmatprep.subr.bf16.mxu0 0
        %3075 = vmatpush1.bf16.msra.mxu0 %v3061
        %3076 = vmatprep.subr.bf16.mxu0 0
        %3077 = vmatpush1.bf16.msra.mxu0 %v3062
        %3078 = vmatprep.subr.bf16.mxu0 0
        %3079 = vmatpush1.bf16.msra.mxu0 %v3063
        %3080 = vmatprep.subr.bf16.mxu0 0
        %3081 = vmatpush1.bf16.msra.mxu0 0
        %3082 = vmatprep.subr.bf16.mxu0 0
        %3083 = vmatpush1.bf16.msra.mxu0 0
        %3084 = vmatprep.subr.bf16.mxu0 0
        %3085 = vmatpush1.bf16.msra.mxu0 0
        %3086 = vmatprep.subr.bf16.mxu0 0
        %3087 = vmatpush1.bf16.msra.mxu0 0
        %3088 = vmatprep.subr.bf16.mxu0 0
        %3089 = vmatpush1.bf16.msra.mxu0 0
        %3090 = vmatprep.subr.bf16.mxu0 0
        %3091 = vmatpush1.bf16.msra.mxu0 0
        %3092 = vmatprep.subr.bf16.mxu0 0
        %3093 = vmatpush1.bf16.msra.mxu0 0
        %3094 = vmatprep.subr.bf16.mxu0 0
        %3095 = vmatpush1.bf16.msra.mxu0 0
        %3096 = vmatprep.subr.bf16.mxu0 0
        %3097 = vmatpush1.bf16.msra.mxu0 0
        %3098 = vmatprep.subr.bf16.mxu0 0
        %3099 = vmatpush1.bf16.msra.mxu0 0
        %3100 = vmatprep.subr.bf16.mxu0 0
        %3101 = vmatpush1.bf16.msra.mxu0 0
        %3102 = vmatprep.subr.bf16.mxu0 0
        %3103 = vmatpush1.bf16.msra.mxu0 0
        %3104 = vmatprep.mubr.bf16.mxu0 0
        %3105 = vmatmul.mubr.bf16.gmra.mrb[0].mxu0 %v3070
        %v3106 = vpop.f32.mrb[0].mxu0
        %v3107 = vadd.f32 %v3042, %v3106
        %v3108 = vpop.f32.mrb[0].mxu0
        %v3109 = vpop.f32.mrb[0].mxu0
        %v3110 = vpop.f32.mrb[0].mxu0
        %3111 = vdwg.mxu0
        %v3112 = vadd.f32 %v2923, %v3107
        %3113 = vst.msk [vmem:[#allocation2] sm:$0xff] %vm1679, %v3112
        %3114 = vst.msk [vmem:[#allocation3] sm:$0xff] %vm1932, %v2175
        %p3115 = scmp.eq.s32.totalorder %s51, 1
        // Predicated region
        $region241: #{tpu_custom_call.1} parent=127 // pred_check
          %p3116 = pneg %p3115
        $region242: #{tpu_custom_call.1} parent=127 // pred_check_branch
          %3118 = sbr.rel (%p3116) target = $region244
        $region243: #{tpu_custom_call.1} parent=127 // pred_region
          %v3119 = vld [vmem:[#allocation32] sm:$0x1]
          %v3120 = vld [vmem:[#allocation33] sm:$0x1]
          %v3121 = vsel %vm1679, %v3112, 0.0
          %3122 = vadd.xlane.f32.xlu0 %v3121
          %v3123 = vpop.xlane.xlu0 %3122
          %v3124 = vmul.f32 %v3123, %v1683
          %v3125 = vsub.f32 %v3112, %v3124
          %v3126 = vmul.f32 %v3125, %v3125
          %v3127 = vsel %vm1679, %v3126, 0.0
          %3128 = vadd.xlane.f32.xlu0 %v3127
          %v3129 = vpop.xlane.xlu0 %3128
          %v3130 = vmul.f32 %v3129, %v1690
          %v3131 = vrsqrt.pop %v3130
          %v3132 = vmul.f32 %v3130, %v3131
          %vm3133 = vcmp.eq.f32.partialorder %v3130, inf
          %v3134 = vsel %vm3133, %v3130, %v3132
          %vm3135 = vcmp.eq.f32.partialorder %v3130, 0.0
          %v3136 = vand.u32 %v3130, 2147483648
          %v3137 = vsel %vm3135, %v3136, %v3134
          %v3139 = vlaneseq
          %v3140 = vshrl.u32 %v3139, 7
          %v3141 = vsub.s32 0, %v3140
          %v3142 = vrot.slane %v3119, %v3141
          %v3144 = vmul.f32 %v3142, %v3125
          %v3145 = vadd.f32 %v3137, 1e-06
          %v3146 = vrcp.pop %v3145
          %v3147 = vmul.f32 %v3144, %v3146
          %v3149 = vlaneseq
          %v3150 = vshrl.u32 %v3149, 7
          %v3151 = vsub.s32 0, %v3150
          %v3152 = vrot.slane %v3120, %v3151
          %v3154 = vadd.f32 %v3147, %v3152
          %3155 = vst.msk [vmem:[%s1644] sm:$0xff] %vm1679, %v3154
        $region244: #{tpu_custom_call.1} parent=127 // pred_fallthru
          _
        %s3156 = sand.u32 %s753, 1
        %s3157 = scalar_lea.sflag [#allocation6], %s3156
        %s3158 = sand.u32 %s753, 1
        %s3159 = smul.addr %s3158, 8
        %s3160 = scalar_lea.vmem [#allocation35], %s3159
        // Predicated region
        $region245: #{tpu_custom_call.1} parent=127 // pred_check
          %p3161 = pneg %p763
        $region246: #{tpu_custom_call.1} parent=127 // pred_check_branch
          %3163 = sbr.rel (%p3161) target = $region248
        $region247: #{tpu_custom_call.1} parent=127 // pred_region
          %s3165 = ssub.s32 128, 128
          %3166 = vsyncadd %s3157, %s3165
          %s3167 = smul.addr %s50, 128
          %s3168 = scalar_lea.hbm %s27, %s3167
          %s3170 = sshll.u32 %s3160, 4
          %s3171 = int_to_ptr.vmem [resolvable:$true] %s3170
          %3173 = dma.vmem_to_hbm [thread:$0]  %s3171, 128, %s3168, %s3157
        $region248: #{tpu_custom_call.1} parent=127 // pred_fallthru
          _
      $region128: #{tpu_custom_call.1} parent=5 // pred_fallthru
        _
      %p3174 = scmp.le.s32.totalorder 2, %s41
      // Predicated region
      $region249: #{tpu_custom_call.1} parent=5 // pred_check
        %p3175 = pneg %p3174
      $region250: #{tpu_custom_call.1} parent=5 // pred_check_branch
        %3177 = sbr.rel (%p3175) target = $region252
      $region251: #{tpu_custom_call.1} parent=5 // pred_region
        %s3178 = ssub.s32 %s41, 2
        // Predicated region
        $region253: #{tpu_custom_call.1} parent=251 // pred_check
          %p3179 = pneg %p769
        $region254: #{tpu_custom_call.1} parent=251 // pred_check_branch
          %3181 = sbr.rel (%p3179) target = $region256
        $region255: #{tpu_custom_call.1} parent=251 // pred_region
          %s3182 = sand.u32 %s754, 1
          %s3183 = scalar_lea.sflag [#allocation6], %s3182
          %s3184 = sand.u32 %s754, 1
          %s3185 = smul.addr %s3184, 8
          %s3186 = scalar_lea.vmem [#allocation35], %s3185
          %3187 = dma.done %s3183, 128
        $region256: #{tpu_custom_call.1} parent=251 // pred_fallthru
          _
      $region252: #{tpu_custom_call.1} parent=5 // pred_fallthru
        _
    $region6: #{tpu_custom_call.1} parent=1 // loop_footer
      %s45 = sadd.s32 1, %s41
    $region7: #{tpu_custom_call.1} parent=1 // loop_footer_branch
      %40 = sbr.rel target = $region3
    $region8: #{tpu_custom_call.1} parent=1 // loop_exit
      _
    %3188 = vsyncpa [#allocation5], 1
    %s3189 = scalar_lea.sflag [#allocation5], 1
    %3190 = vsyncpa %s3189, 1
    %3191 = vsyncpa [#allocation8], 1
    %3192 = vsyncpa [#allocation34], 1
    %3193 = vsyncpa [#allocation6], 1
    %s3194 = scalar_lea.sflag [#allocation6], 1
    %3195 = vsyncpa %s3194, 1

</llo_original>
